<compile_context>
chip_gen: v7x
topology: tpu7x:2x2x1
jax: 0.10.0
libtpu: 0.0.40
codegen_flags: <defaults>
</compile_context>

<pallas_src>
import jax
import jax.numpy as jnp
from jax.experimental import pallas as pl
from jax.experimental.pallas import tpu as pltpu

IN_DIM = 28 * 28                                  # 784
LAYER_DIMS = [784, 390, 100, 20, 2, 20, 100, 390, 784]
_PAD = {784: 784, 390: 512, 100: 128, 20: 128}    # lane-dense padded dims


def _round_up(n, m):
    return ((n + m - 1) // m) * m


# ---------------------------------------------------------------------------
# Kernel: whole folded 7-layer MLP on one (TB, 784) batch tile.
# ---------------------------------------------------------------------------
def ae_kernel(x_ref, *refs):
    # refs = (w0, b0, w1, b1, ..., w6, b6, out_ref)
    out_ref = refs[-1]
    param_refs = refs[:-1]
    n_layers = len(param_refs) // 2               # 7 (after folding)

    h = x_ref[...]                                # (TB, 784) f32
    for i in range(n_layers):
        w = param_refs[2 * i][...]                # (Kp, Np) bf16, VMEM-resident
        b = param_refs[2 * i + 1][...]            # (1, Np)  f32, implicit bcast
        h = jnp.dot(h.astype(jnp.bfloat16), w,
                    preferred_element_type=jnp.float32) + b
        if i < n_layers - 1:
            h = jnp.maximum(h, 0.0)               # ReLU on every hidden layer
        else:
            # Sigmoid: EUP exp + approximate EUP reciprocal (VPU divide avoided)
            h = pl.reciprocal(1.0 + jnp.exp(-h), approx=True)
    out_ref[...] = h


# ---------------------------------------------------------------------------
# Wrapper
# ---------------------------------------------------------------------------
@jax.jit
def ae_forward(x, *prepped):
    """x: (B, 784) f32.  prepped: folded + padded params from prepare_params()."""
    B = x.shape[0]
    TB = min(256, _round_up(B, 8))                # batch tile (multiple of 8)
    Bp = _round_up(B, TB)
    if Bp != B:
        x = jnp.pad(x, ((0, Bp - B), (0, 0)))

    in_specs = [pl.BlockSpec((TB, IN_DIM), lambda i: (i, 0))]
    for p in prepped:
        # Whole-array VMEM blocks; constant index_map -> fetched once, resident.
        in_specs.append(pl.BlockSpec(p.shape, lambda i: (0, 0)))

    out = pl.pallas_call(
        ae_kernel,
        out_shape=jax.ShapeDtypeStruct((Bp, IN_DIM), jnp.float32),
        grid=(Bp // TB,),
        in_specs=in_specs,
        out_specs=pl.BlockSpec((TB, IN_DIM), lambda i: (i, 0)),
        compiler_params=pltpu.CompilerParams(
            dimension_semantics=("parallel",)),
    )(x, *prepped)
    return out[:B]


# ---------------------------------------------------------------------------
# Parameters
# ---------------------------------------------------------------------------
def init_params(key):
    """PyTorch-style uniform(-1/sqrt(fan_in), 1/sqrt(fan_in)) init, f32.

    Returns the flat list [w0, b0, ..., w7, b7]; w is (in, out), b is (1, out).
    """
    params = []
    for i in range(len(LAYER_DIMS) - 1):
        fan_in, fan_out = LAYER_DIMS[i], LAYER_DIMS[i + 1]
        key, kw, kb = jax.random.split(key, 3)
        bound = 1.0 / jnp.sqrt(fan_in)
        w = jax.random.uniform(kw, (fan_in, fan_out), jnp.float32, -bound, bound)
        b = jax.random.uniform(kb, (1, fan_out), jnp.float32, -bound, bound)
        params.extend([w, b])
    return params


def prepare_params(params):
    """Fold the activation-free 20->2->20 pair, zero-pad hidden dims to
    multiples of 128, cast weights to bf16 (biases stay f32)."""
    w = [params[2 * i] for i in range(8)]
    b = [params[2 * i + 1] for i in range(8)]
    # Fold encoder layer 3 (20->2, no activation) with decoder layer 0 (2->20).
    wf = w[3] @ w[4]                               # (20, 20)
    bf = b[3] @ w[4] + b[4]                        # (1, 20)
    ws = [w[0], w[1], w[2], wf, w[5], w[6], w[7]]
    bs = [b[0], b[1], b[2], bf, b[5], b[6], b[7]]

    prepped = []
    for wi, bi in zip(ws, bs):
        kp = _PAD[wi.shape[0]]
        np_ = _PAD[wi.shape[1]]
        wp = jnp.pad(wi, ((0, kp - wi.shape[0]), (0, np_ - wi.shape[1])))
        bp = jnp.pad(bi, ((0, 0), (0, np_ - bi.shape[1])))
        prepped.append(wp.astype(jnp.bfloat16))    # bf16 weights
        prepped.append(bp)                         # f32 biases
    return prepped


# ---------------------------------------------------------------------------
# References for correctness checking
# ---------------------------------------------------------------------------
def ae_reference_spec(x, params):
    """Exact f32 reference of the original 8-layer PyTorch module."""
    h = x
    for i in range(8):
        h = h @ params[2 * i] + params[2 * i + 1]
        if i in (0, 1, 2, 4, 5, 6):
            h = jnp.maximum(h, 0.0)
        elif i == 7:
            h = jax.nn.sigmoid(h)
    return h


def ae_reference_prepped(x, prepped):
    """Same folded/padded/bf16 math as the kernel, in plain JAX."""
    h = x
    n = len(prepped) // 2
    for i in range(n):
        w = prepped[2 * i]
        b = prepped[2 * i + 1]
        h = jnp.dot(h.astype(jnp.bfloat16), w,
                    preferred_element_type=jnp.float32) + b
        if i < n - 1:
            h = jnp.maximum(h, 0.0)
        else:
            h = jax.nn.sigmoid(h)
    return h


if __name__ == "__main__":
    key = jax.random.PRNGKey(0)
    key, kx = jax.random.split(key)

    params = init_params(key)
    prepped = prepare_params(params)

    for B in (8, 300):                 # small batch + ragged multi-tile batch
        kx, sub = jax.random.split(kx)
        x = jax.random.normal(sub, (B, IN_DIM), dtype=jnp.float32)

        out = ae_forward(x, *prepped)
        jax.block_until_ready(out)
        assert out.shape == (B, IN_DIM)

        ref_same_math = ae_reference_prepped(x, prepped)
        ref_spec = ae_reference_spec(x, params)
        err_same = float(jnp.max(jnp.abs(out - ref_same_math)))
        err_spec = float(jnp.max(jnp.abs(out - ref_spec)))
        assert err_same < 5e-3, f"kernel vs bf16 reference diff {err_same}"
        assert err_spec < 2e-2, f"kernel vs f32 spec reference diff {err_spec}"

    print("KERNEL_OK")
</pallas_src>

<mosaic_0001>
module attributes {stable_mosaic.version = 11 : i64} {
  func.func @ae_kernel(%arg0: i32, %arg1: memref<8x784xf32, #tpu.memory_space<vmem>>, %arg2: memref<784x512xbf16, #tpu.memory_space<vmem>>, %arg3: memref<1x512xf32, #tpu.memory_space<vmem>>, %arg4: memref<512x128xbf16, #tpu.memory_space<vmem>>, %arg5: memref<1x128xf32, #tpu.memory_space<vmem>>, %arg6: memref<128x128xbf16, #tpu.memory_space<vmem>>, %arg7: memref<1x128xf32, #tpu.memory_space<vmem>>, %arg8: memref<128x128xbf16, #tpu.memory_space<vmem>>, %arg9: memref<1x128xf32, #tpu.memory_space<vmem>>, %arg10: memref<128x128xbf16, #tpu.memory_space<vmem>>, %arg11: memref<1x128xf32, #tpu.memory_space<vmem>>, %arg12: memref<128x512xbf16, #tpu.memory_space<vmem>>, %arg13: memref<1x512xf32, #tpu.memory_space<vmem>>, %arg14: memref<512x784xbf16, #tpu.memory_space<vmem>>, %arg15: memref<1x784xf32, #tpu.memory_space<vmem>>, %arg16: memref<8x784xf32, #tpu.memory_space<vmem>>) attributes {dimension_semantics = [#tpu.dimension_semantics<parallel>], iteration_bounds = array<i64: 1>, scalar_prefetch = 0 : i64, scratch_operands = 0 : i64, tpu.core_type = #tpu.core_type<tc>, window_params = [{transform_indices = @transform_0, window_bounds = array<i64: 8, 784>}, {pipeline_mode = #tpu.pipeline_mode<synchronous>, transform_indices = @transform_1, window_bounds = array<i64: 784, 512>}, {pipeline_mode = #tpu.pipeline_mode<synchronous>, transform_indices = @transform_2, window_bounds = array<i64: 1, 512>}, {pipeline_mode = #tpu.pipeline_mode<synchronous>, transform_indices = @transform_3, window_bounds = array<i64: 512, 128>}, {pipeline_mode = #tpu.pipeline_mode<synchronous>, transform_indices = @transform_4, window_bounds = array<i64: 1, 128>}, {pipeline_mode = #tpu.pipeline_mode<synchronous>, transform_indices = @transform_5, window_bounds = array<i64: 128, 128>}, {pipeline_mode = #tpu.pipeline_mode<synchronous>, transform_indices = @transform_6, window_bounds = array<i64: 1, 128>}, {pipeline_mode = #tpu.pipeline_mode<synchronous>, transform_indices = @transform_7, window_bounds = array<i64: 128, 128>}, {pipeline_mode = #tpu.pipeline_mode<synchronous>, transform_indices = @transform_8, window_bounds = array<i64: 1, 128>}, {pipeline_mode = #tpu.pipeline_mode<synchronous>, transform_indices = @transform_9, window_bounds = array<i64: 128, 128>}, {pipeline_mode = #tpu.pipeline_mode<synchronous>, transform_indices = @transform_10, window_bounds = array<i64: 1, 128>}, {pipeline_mode = #tpu.pipeline_mode<synchronous>, transform_indices = @transform_11, window_bounds = array<i64: 128, 512>}, {pipeline_mode = #tpu.pipeline_mode<synchronous>, transform_indices = @transform_12, window_bounds = array<i64: 1, 512>}, {pipeline_mode = #tpu.pipeline_mode<synchronous>, transform_indices = @transform_13, window_bounds = array<i64: 512, 784>}, {pipeline_mode = #tpu.pipeline_mode<synchronous>, transform_indices = @transform_14, window_bounds = array<i64: 1, 784>}, {transform_indices = @transform_15, window_bounds = array<i64: 8, 784>}]} {
    %c0 = arith.constant 0 : index
    %c0_0 = arith.constant 0 : index
    %0 = vector.load %arg1[%c0, %c0_0] : memref<8x784xf32, #tpu.memory_space<vmem>>, vector<8x784xf32>
    %c0_1 = arith.constant 0 : index
    %c0_2 = arith.constant 0 : index
    %1 = vector.load %arg2[%c0_1, %c0_2] : memref<784x512xbf16, #tpu.memory_space<vmem>>, vector<784x512xbf16>
    %c0_3 = arith.constant 0 : index
    %c0_4 = arith.constant 0 : index
    %2 = vector.load %arg3[%c0_3, %c0_4] : memref<1x512xf32, #tpu.memory_space<vmem>>, vector<1x512xf32>
    %3 = arith.truncf %0 : vector<8x784xf32> to vector<8x784xbf16>
    %cst = arith.constant dense<0.000000e+00> : vector<8x512xf32>
    %4 = tpu.matmul %3, %1, %cst {dimension_numbers = #tpu.dot_dimension_numbers<[1], [0], [0], [1], [0, 0, 1, 1], [], []>} : vector<8x784xbf16>, vector<784x512xbf16>, vector<8x512xf32> -> vector<8x512xf32>
    %5 = vector.broadcast %2 : vector<1x512xf32> to vector<8x512xf32>
    %6 = arith.addf %4, %5 : vector<8x512xf32>
    %cst_5 = arith.constant 0.000000e+00 : f32
    %7 = vector.broadcast %cst_5 : f32 to vector<8x512xf32>
    %8 = arith.maximumf %6, %7 : vector<8x512xf32>
    %c0_6 = arith.constant 0 : index
    %c0_7 = arith.constant 0 : index
    %9 = vector.load %arg4[%c0_6, %c0_7] : memref<512x128xbf16, #tpu.memory_space<vmem>>, vector<512x128xbf16>
    %c0_8 = arith.constant 0 : index
    %c0_9 = arith.constant 0 : index
    %10 = vector.load %arg5[%c0_8, %c0_9] : memref<1x128xf32, #tpu.memory_space<vmem>>, vector<1x128xf32>
    %11 = arith.truncf %8 : vector<8x512xf32> to vector<8x512xbf16>
    %cst_10 = arith.constant dense<0.000000e+00> : vector<8x128xf32>
    %12 = tpu.matmul %11, %9, %cst_10 {dimension_numbers = #tpu.dot_dimension_numbers<[1], [0], [0], [1], [0, 0, 1, 1], [], []>} : vector<8x512xbf16>, vector<512x128xbf16>, vector<8x128xf32> -> vector<8x128xf32>
    %13 = vector.broadcast %10 : vector<1x128xf32> to vector<8x128xf32>
    %14 = arith.addf %12, %13 : vector<8x128xf32>
    %cst_11 = arith.constant 0.000000e+00 : f32
    %15 = vector.broadcast %cst_11 : f32 to vector<8x128xf32>
    %16 = arith.maximumf %14, %15 : vector<8x128xf32>
    %c0_12 = arith.constant 0 : index
    %c0_13 = arith.constant 0 : index
    %17 = vector.load %arg6[%c0_12, %c0_13] : memref<128x128xbf16, #tpu.memory_space<vmem>>, vector<128x128xbf16>
    %c0_14 = arith.constant 0 : index
    %c0_15 = arith.constant 0 : index
    %18 = vector.load %arg7[%c0_14, %c0_15] : memref<1x128xf32, #tpu.memory_space<vmem>>, vector<1x128xf32>
    %19 = arith.truncf %16 : vector<8x128xf32> to vector<8x128xbf16>
    %cst_16 = arith.constant dense<0.000000e+00> : vector<8x128xf32>
    %20 = tpu.matmul %19, %17, %cst_16 {dimension_numbers = #tpu.dot_dimension_numbers<[1], [0], [0], [1], [0, 0, 1, 1], [], []>} : vector<8x128xbf16>, vector<128x128xbf16>, vector<8x128xf32> -> vector<8x128xf32>
    %21 = vector.broadcast %18 : vector<1x128xf32> to vector<8x128xf32>
    %22 = arith.addf %20, %21 : vector<8x128xf32>
    %cst_17 = arith.constant 0.000000e+00 : f32
    %23 = vector.broadcast %cst_17 : f32 to vector<8x128xf32>
    %24 = arith.maximumf %22, %23 : vector<8x128xf32>
    %c0_18 = arith.constant 0 : index
    %c0_19 = arith.constant 0 : index
    %25 = vector.load %arg8[%c0_18, %c0_19] : memref<128x128xbf16, #tpu.memory_space<vmem>>, vector<128x128xbf16>
    %c0_20 = arith.constant 0 : index
    %c0_21 = arith.constant 0 : index
    %26 = vector.load %arg9[%c0_20, %c0_21] : memref<1x128xf32, #tpu.memory_space<vmem>>, vector<1x128xf32>
    %27 = arith.truncf %24 : vector<8x128xf32> to vector<8x128xbf16>
    %cst_22 = arith.constant dense<0.000000e+00> : vector<8x128xf32>
    %28 = tpu.matmul %27, %25, %cst_22 {dimension_numbers = #tpu.dot_dimension_numbers<[1], [0], [0], [1], [0, 0, 1, 1], [], []>} : vector<8x128xbf16>, vector<128x128xbf16>, vector<8x128xf32> -> vector<8x128xf32>
    %29 = vector.broadcast %26 : vector<1x128xf32> to vector<8x128xf32>
    %30 = arith.addf %28, %29 : vector<8x128xf32>
    %cst_23 = arith.constant 0.000000e+00 : f32
    %31 = vector.broadcast %cst_23 : f32 to vector<8x128xf32>
    %32 = arith.maximumf %30, %31 : vector<8x128xf32>
    %c0_24 = arith.constant 0 : index
    %c0_25 = arith.constant 0 : index
    %33 = vector.load %arg10[%c0_24, %c0_25] : memref<128x128xbf16, #tpu.memory_space<vmem>>, vector<128x128xbf16>
    %c0_26 = arith.constant 0 : index
    %c0_27 = arith.constant 0 : index
    %34 = vector.load %arg11[%c0_26, %c0_27] : memref<1x128xf32, #tpu.memory_space<vmem>>, vector<1x128xf32>
    %35 = arith.truncf %32 : vector<8x128xf32> to vector<8x128xbf16>
    %cst_28 = arith.constant dense<0.000000e+00> : vector<8x128xf32>
    %36 = tpu.matmul %35, %33, %cst_28 {dimension_numbers = #tpu.dot_dimension_numbers<[1], [0], [0], [1], [0, 0, 1, 1], [], []>} : vector<8x128xbf16>, vector<128x128xbf16>, vector<8x128xf32> -> vector<8x128xf32>
    %37 = vector.broadcast %34 : vector<1x128xf32> to vector<8x128xf32>
    %38 = arith.addf %36, %37 : vector<8x128xf32>
    %cst_29 = arith.constant 0.000000e+00 : f32
    %39 = vector.broadcast %cst_29 : f32 to vector<8x128xf32>
    %40 = arith.maximumf %38, %39 : vector<8x128xf32>
    %c0_30 = arith.constant 0 : index
    %c0_31 = arith.constant 0 : index
    %41 = vector.load %arg12[%c0_30, %c0_31] : memref<128x512xbf16, #tpu.memory_space<vmem>>, vector<128x512xbf16>
    %c0_32 = arith.constant 0 : index
    %c0_33 = arith.constant 0 : index
    %42 = vector.load %arg13[%c0_32, %c0_33] : memref<1x512xf32, #tpu.memory_space<vmem>>, vector<1x512xf32>
    %43 = arith.truncf %40 : vector<8x128xf32> to vector<8x128xbf16>
    %cst_34 = arith.constant dense<0.000000e+00> : vector<8x512xf32>
    %44 = tpu.matmul %43, %41, %cst_34 {dimension_numbers = #tpu.dot_dimension_numbers<[1], [0], [0], [1], [0, 0, 1, 1], [], []>} : vector<8x128xbf16>, vector<128x512xbf16>, vector<8x512xf32> -> vector<8x512xf32>
    %45 = vector.broadcast %42 : vector<1x512xf32> to vector<8x512xf32>
    %46 = arith.addf %44, %45 : vector<8x512xf32>
    %cst_35 = arith.constant 0.000000e+00 : f32
    %47 = vector.broadcast %cst_35 : f32 to vector<8x512xf32>
    %48 = arith.maximumf %46, %47 : vector<8x512xf32>
    %c0_36 = arith.constant 0 : index
    %c0_37 = arith.constant 0 : index
    %49 = vector.load %arg14[%c0_36, %c0_37] : memref<512x784xbf16, #tpu.memory_space<vmem>>, vector<512x784xbf16>
    %c0_38 = arith.constant 0 : index
    %c0_39 = arith.constant 0 : index
    %50 = vector.load %arg15[%c0_38, %c0_39] : memref<1x784xf32, #tpu.memory_space<vmem>>, vector<1x784xf32>
    %51 = arith.truncf %48 : vector<8x512xf32> to vector<8x512xbf16>
    %cst_40 = arith.constant dense<0.000000e+00> : vector<8x784xf32>
    %52 = tpu.matmul %51, %49, %cst_40 {dimension_numbers = #tpu.dot_dimension_numbers<[1], [0], [0], [1], [0, 0, 1, 1], [], []>} : vector<8x512xbf16>, vector<512x784xbf16>, vector<8x784xf32> -> vector<8x784xf32>
    %53 = vector.broadcast %50 : vector<1x784xf32> to vector<8x784xf32>
    %54 = arith.addf %52, %53 : vector<8x784xf32>
    %cst_41 = arith.constant 0.000000e+00 : f32
    %55 = vector.broadcast %cst_41 : f32 to vector<8x784xf32>
    %56 = arith.subf %55, %54 : vector<8x784xf32>
    %57 = math.exp %56 : vector<8x784xf32>
    %cst_42 = arith.constant 1.000000e+00 : f32
    %58 = vector.broadcast %cst_42 : f32 to vector<8x784xf32>
    %59 = arith.addf %58, %57 : vector<8x784xf32>
    %60 = tpu.reciprocal %59 {approx = true} : vector<8x784xf32> -> vector<8x784xf32>
    %c0_43 = arith.constant 0 : index
    %c0_44 = arith.constant 0 : index
    %61 = vector.load %arg16[%c0_43, %c0_44] : memref<8x784xf32, #tpu.memory_space<vmem>>, vector<8x784xf32>
    tpu.vector_store %arg16[%c0_43, %c0_44], %60 {strides = array<i32>} : memref<8x784xf32, #tpu.memory_space<vmem>>, vector<8x784xf32>,
    return
  }
  func.func @transform_0(%arg0: i32) -> (i32, i32) {
    %c0_i32 = arith.constant 0 : i32
    %c0_i32_0 = arith.constant 0 : i32
    return %arg0, %c0_i32 : i32, i32
  }
  func.func @transform_1(%arg0: i32) -> (i32, i32) {
    %c0_i32 = arith.constant 0 : i32
    %c0_i32_0 = arith.constant 0 : i32
    %c0_i32_1 = arith.constant 0 : i32
    return %c0_i32, %c0_i32_0 : i32, i32
  }
  func.func @transform_2(%arg0: i32) -> (i32, i32) {
    %c0_i32 = arith.constant 0 : i32
    %c0_i32_0 = arith.constant 0 : i32
    %c0_i32_1 = arith.constant 0 : i32
    return %c0_i32, %c0_i32_0 : i32, i32
  }
  func.func @transform_3(%arg0: i32) -> (i32, i32) {
    %c0_i32 = arith.constant 0 : i32
    %c0_i32_0 = arith.constant 0 : i32
    %c0_i32_1 = arith.constant 0 : i32
    return %c0_i32, %c0_i32_0 : i32, i32
  }
  func.func @transform_4(%arg0: i32) -> (i32, i32) {
    %c0_i32 = arith.constant 0 : i32
    %c0_i32_0 = arith.constant 0 : i32
    %c0_i32_1 = arith.constant 0 : i32
    return %c0_i32, %c0_i32_0 : i32, i32
  }
  func.func @transform_5(%arg0: i32) -> (i32, i32) {
    %c0_i32 = arith.constant 0 : i32
    %c0_i32_0 = arith.constant 0 : i32
    %c0_i32_1 = arith.constant 0 : i32
    return %c0_i32, %c0_i32_0 : i32, i32
  }
  func.func @transform_6(%arg0: i32) -> (i32, i32) {
    %c0_i32 = arith.constant 0 : i32
    %c0_i32_0 = arith.constant 0 : i32
    %c0_i32_1 = arith.constant 0 : i32
    return %c0_i32, %c0_i32_0 : i32, i32
  }
  func.func @transform_7(%arg0: i32) -> (i32, i32) {
    %c0_i32 = arith.constant 0 : i32
    %c0_i32_0 = arith.constant 0 : i32
    %c0_i32_1 = arith.constant 0 : i32
    return %c0_i32, %c0_i32_0 : i32, i32
  }
  func.func @transform_8(%arg0: i32) -> (i32, i32) {
    %c0_i32 = arith.constant 0 : i32
    %c0_i32_0 = arith.constant 0 : i32
    %c0_i32_1 = arith.constant 0 : i32
    return %c0_i32, %c0_i32_0 : i32, i32
  }
  func.func @transform_9(%arg0: i32) -> (i32, i32) {
    %c0_i32 = arith.constant 0 : i32
    %c0_i32_0 = arith.constant 0 : i32
    %c0_i32_1 = arith.constant 0 : i32
    return %c0_i32, %c0_i32_0 : i32, i32
  }
  func.func @transform_10(%arg0: i32) -> (i32, i32) {
    %c0_i32 = arith.constant 0 : i32
    %c0_i32_0 = arith.constant 0 : i32
    %c0_i32_1 = arith.constant 0 : i32
    return %c0_i32, %c0_i32_0 : i32, i32
  }
  func.func @transform_11(%arg0: i32) -> (i32, i32) {
    %c0_i32 = arith.constant 0 : i32
    %c0_i32_0 = arith.constant 0 : i32
    %c0_i32_1 = arith.constant 0 : i32
    return %c0_i32, %c0_i32_0 : i32, i32
  }
  func.func @transform_12(%arg0: i32) -> (i32, i32) {
    %c0_i32 = arith.constant 0 : i32
    %c0_i32_0 = arith.constant 0 : i32
    %c0_i32_1 = arith.constant 0 : i32
    return %c0_i32, %c0_i32_0 : i32, i32
  }
  func.func @transform_13(%arg0: i32) -> (i32, i32) {
    %c0_i32 = arith.constant 0 : i32
    %c0_i32_0 = arith.constant 0 : i32
    %c0_i32_1 = arith.constant 0 : i32
    return %c0_i32, %c0_i32_0 : i32, i32
  }
  func.func @transform_14(%arg0: i32) -> (i32, i32) {
    %c0_i32 = arith.constant 0 : i32
    %c0_i32_0 = arith.constant 0 : i32
    %c0_i32_1 = arith.constant 0 : i32
    return %c0_i32, %c0_i32_0 : i32, i32
  }
  func.func @transform_15(%arg0: i32) -> (i32, i32) {
    %c0_i32 = arith.constant 0 : i32
    %c0_i32_0 = arith.constant 0 : i32
    return %arg0, %c0_i32 : i32, i32
  }
}

</mosaic_0001>

<llo_original>
// kernel: ae_forward.1
$region0: #{ae_forward.1}
  #allocation0 [shape = 'u32[]', space=smem, size = 0x4, offset = 0x4, fixed_abs, tag = 'smem constant byte address 0x4 - core index']
  #allocation1 [shape = 'u32[144,128]{1,0:T(1,128)}', space=vmem, size = 0x12000, scoped, tag = 'internal scratch']
  %s0 = inlined_call_operand.vmem [shape: f32[8,784], index: 0, kind: input, shape index: {}]
  %s1 = inlined_call_operand.vmem [shape: bf16[784,512], index: 1, kind: input, shape index: {}]
  %s2 = inlined_call_operand.vmem [shape: f32[1,512], index: 2, kind: input, shape index: {}]
  %s3 = inlined_call_operand.vmem [shape: bf16[512,128], index: 3, kind: input, shape index: {}]
  %s4 = inlined_call_operand.vmem [shape: f32[1,128], index: 4, kind: input, shape index: {}]
  %s5 = inlined_call_operand.vmem [shape: bf16[128,128], index: 5, kind: input, shape index: {}]
  %s6 = inlined_call_operand.vmem [shape: f32[1,128], index: 6, kind: input, shape index: {}]
  %s7 = inlined_call_operand.vmem [shape: bf16[128,128], index: 7, kind: input, shape index: {}]
  %s8 = inlined_call_operand.vmem [shape: f32[1,128], index: 8, kind: input, shape index: {}]
  %s9 = inlined_call_operand.vmem [shape: bf16[128,128], index: 9, kind: input, shape index: {}]
  %s10 = inlined_call_operand.vmem [shape: f32[1,128], index: 10, kind: input, shape index: {}]
  %s11 = inlined_call_operand.vmem [shape: bf16[128,512], index: 11, kind: input, shape index: {}]
  %s12 = inlined_call_operand.vmem [shape: f32[1,512], index: 12, kind: input, shape index: {}]
  %s13 = inlined_call_operand.vmem [shape: bf16[512,784], index: 13, kind: input, shape index: {}]
  %s14 = inlined_call_operand.vmem [shape: f32[1,784], index: 14, kind: input, shape index: {}]
  %s15 = inlined_call_operand.hbm [shape: f32[8,784], index: 15, kind: output, shape index: {}]
  %s16 = sld [smem:[#allocation0]]
  $region70: #{ae_forward.1} parent=0
    _
  %s18 = ssub.s32 1, %s16
  %s19 = scalar_select 0, %s18, %s16
  $region1: #{ae_forward.1} parent=0
    #allocation2 [shape = 'u8[28672]{0}', space=vmem, size = 0x7000, scoped, tag = 'output window, operand 0, single buffered']
    #allocation3 [shape = 's32[1]{0}', space=sflag, size = 0x4, scoped, tag = 'scoped memory for ae_forward.1']
    %20 = vsyncpa [#allocation3], 0
    // Predicated region
    $region2: #{ae_forward.1} parent=1 // pred_check
      _
    $region3: #{ae_forward.1} parent=1 // pred_check_branch
      %22 = sbr.rel (0) target = $region5
    $region4: #{ae_forward.1} parent=1 // pred_region
      _
    $region5: #{ae_forward.1} parent=1 // pred_fallthru
      _
    // Predicated region
    $region6: #{ae_forward.1} parent=1 // pred_check
      _
    $region7: #{ae_forward.1} parent=1 // pred_check_branch
      %24 = sbr.rel (0) target = $region9
    $region8: #{ae_forward.1} parent=1 // pred_region
      _
    $region9: #{ae_forward.1} parent=1 // pred_fallthru
      _
    // Predicated region
    $region10: #{ae_forward.1} parent=1 // pred_check
      _
    $region11: #{ae_forward.1} parent=1 // pred_check_branch
      %26 = sbr.rel (0) target = $region13
    $region12: #{ae_forward.1} parent=1 // pred_region
      _
    $region13: #{ae_forward.1} parent=1 // pred_fallthru
      _
    // Predicated region
    $region14: #{ae_forward.1} parent=1 // pred_check
      _
    $region15: #{ae_forward.1} parent=1 // pred_check_branch
      %28 = sbr.rel (0) target = $region17
    $region16: #{ae_forward.1} parent=1 // pred_region
      _
    $region17: #{ae_forward.1} parent=1 // pred_fallthru
      _
    // Predicated region
    $region18: #{ae_forward.1} parent=1 // pred_check
      _
    $region19: #{ae_forward.1} parent=1 // pred_check_branch
      %30 = sbr.rel (0) target = $region21
    $region20: #{ae_forward.1} parent=1 // pred_region
      _
    $region21: #{ae_forward.1} parent=1 // pred_fallthru
      _
    // Predicated region
    $region22: #{ae_forward.1} parent=1 // pred_check
      _
    $region23: #{ae_forward.1} parent=1 // pred_check_branch
      %32 = sbr.rel (0) target = $region25
    $region24: #{ae_forward.1} parent=1 // pred_region
      _
    $region25: #{ae_forward.1} parent=1 // pred_fallthru
      _
    // Predicated region
    $region26: #{ae_forward.1} parent=1 // pred_check
      _
    $region27: #{ae_forward.1} parent=1 // pred_check_branch
      %34 = sbr.rel (0) target = $region29
    $region28: #{ae_forward.1} parent=1 // pred_region
      _
    $region29: #{ae_forward.1} parent=1 // pred_fallthru
      _
    // Predicated region
    $region30: #{ae_forward.1} parent=1 // pred_check
      _
    $region31: #{ae_forward.1} parent=1 // pred_check_branch
      %36 = sbr.rel (0) target = $region33
    $region32: #{ae_forward.1} parent=1 // pred_region
      _
    $region33: #{ae_forward.1} parent=1 // pred_fallthru
      _
    // Predicated region
    $region34: #{ae_forward.1} parent=1 // pred_check
      _
    $region35: #{ae_forward.1} parent=1 // pred_check_branch
      %38 = sbr.rel (0) target = $region37
    $region36: #{ae_forward.1} parent=1 // pred_region
      _
    $region37: #{ae_forward.1} parent=1 // pred_fallthru
      _
    // Predicated region
    $region38: #{ae_forward.1} parent=1 // pred_check
      _
    $region39: #{ae_forward.1} parent=1 // pred_check_branch
      %40 = sbr.rel (0) target = $region41
    $region40: #{ae_forward.1} parent=1 // pred_region
      _
    $region41: #{ae_forward.1} parent=1 // pred_fallthru
      _
    // Predicated region
    $region42: #{ae_forward.1} parent=1 // pred_check
      _
    $region43: #{ae_forward.1} parent=1 // pred_check_branch
      %42 = sbr.rel (0) target = $region45
    $region44: #{ae_forward.1} parent=1 // pred_region
      _
    $region45: #{ae_forward.1} parent=1 // pred_fallthru
      _
    // Predicated region
    $region46: #{ae_forward.1} parent=1 // pred_check
      _
    $region47: #{ae_forward.1} parent=1 // pred_check_branch
      %44 = sbr.rel (0) target = $region49
    $region48: #{ae_forward.1} parent=1 // pred_region
      _
    $region49: #{ae_forward.1} parent=1 // pred_fallthru
      _
    // Predicated region
    $region50: #{ae_forward.1} parent=1 // pred_check
      _
    $region51: #{ae_forward.1} parent=1 // pred_check_branch
      %46 = sbr.rel (0) target = $region53
    $region52: #{ae_forward.1} parent=1 // pred_region
      _
    $region53: #{ae_forward.1} parent=1 // pred_fallthru
      _
    // Predicated region
    $region54: #{ae_forward.1} parent=1 // pred_check
      _
    $region55: #{ae_forward.1} parent=1 // pred_check_branch
      %48 = sbr.rel (0) target = $region57
    $region56: #{ae_forward.1} parent=1 // pred_region
      _
    $region57: #{ae_forward.1} parent=1 // pred_fallthru
      _
    // Predicated region
    $region58: #{ae_forward.1} parent=1 // pred_check
      _
    $region59: #{ae_forward.1} parent=1 // pred_check_branch
      %50 = sbr.rel (0) target = $region61
    $region60: #{ae_forward.1} parent=1 // pred_region
      _
    $region61: #{ae_forward.1} parent=1 // pred_fallthru
      _
    %v52 = vld [vmem:[%s0] sm:$0xff]
    %v53 = vld [vmem:[%s0 + $0x8] sm:$0xff]
    %v54 = vld [vmem:[%s0 + $0x10] sm:$0xff]
    %v55 = vld [vmem:[%s0 + $0x18] sm:$0xff]
    %v56 = vld [vmem:[%s0 + $0x20] sm:$0xff]
    %v57 = vld [vmem:[%s0 + $0x28] sm:$0xff]
    %v58 = vld [vmem:[%s0 + $0x30] sm:$0xff]
    %v59 = vld [vmem:[%s1] sm:$0xff]
    %v60 = vld [vmem:[%s1 + $0x8] sm:$0xff]
    %v61 = vld [vmem:[%s1 + $0x10] sm:$0xff]
    %v62 = vld [vmem:[%s1 + $0x18] sm:$0xff]
    %v63 = vld [vmem:[%s1 + $0x20] sm:$0xff]
    %v64 = vld [vmem:[%s1 + $0x28] sm:$0xff]
    %v65 = vld [vmem:[%s1 + $0x30] sm:$0xff]
    %v66 = vld [vmem:[%s1 + $0x38] sm:$0xff]
    %v67 = vld [vmem:[%s1 + $0x40] sm:$0xff]
    %v68 = vld [vmem:[%s1 + $0x48] sm:$0xff]
    %v69 = vld [vmem:[%s1 + $0x50] sm:$0xff]
    %v70 = vld [vmem:[%s1 + $0x58] sm:$0xff]
    %v71 = vld [vmem:[%s1 + $0x60] sm:$0xff]
    %v72 = vld [vmem:[%s1 + $0x68] sm:$0xff]
    %v73 = vld [vmem:[%s1 + $0x70] sm:$0xff]
    %v74 = vld [vmem:[%s1 + $0x78] sm:$0xff]
    %v75 = vld [vmem:[%s1 + $0x80] sm:$0xff]
    %v76 = vld [vmem:[%s1 + $0x88] sm:$0xff]
    %v77 = vld [vmem:[%s1 + $0x90] sm:$0xff]
    %v78 = vld [vmem:[%s1 + $0x98] sm:$0xff]
    %v79 = vld [vmem:[%s1 + $0xa0] sm:$0xff]
    %v80 = vld [vmem:[%s1 + $0xa8] sm:$0xff]
    %v81 = vld [vmem:[%s1 + $0xb0] sm:$0xff]
    %v82 = vld [vmem:[%s1 + $0xb8] sm:$0xff]
    %v83 = vld [vmem:[%s1 + $0xc0] sm:$0xff]
    %v84 = vld [vmem:[%s1 + $0xc8] sm:$0xff]
    %v85 = vld [vmem:[%s1 + $0xd0] sm:$0xff]
    %v86 = vld [vmem:[%s1 + $0xd8] sm:$0xff]
    %v87 = vld [vmem:[%s1 + $0xe0] sm:$0xff]
    %v88 = vld [vmem:[%s1 + $0xe8] sm:$0xff]
    %v89 = vld [vmem:[%s1 + $0xf0] sm:$0xff]
    %v90 = vld [vmem:[%s1 + $0xf8] sm:$0xff]
    %v91 = vld [vmem:[%s1 + $0x100] sm:$0xff]
    %v92 = vld [vmem:[%s1 + $0x108] sm:$0xff]
    %v93 = vld [vmem:[%s1 + $0x110] sm:$0xff]
    %v94 = vld [vmem:[%s1 + $0x118] sm:$0xff]
    %v95 = vld [vmem:[%s1 + $0x120] sm:$0xff]
    %v96 = vld [vmem:[%s1 + $0x128] sm:$0xff]
    %v97 = vld [vmem:[%s1 + $0x130] sm:$0xff]
    %v98 = vld [vmem:[%s1 + $0x138] sm:$0xff]
    %v99 = vld [vmem:[%s1 + $0x140] sm:$0xff]
    %v100 = vld [vmem:[%s1 + $0x148] sm:$0xff]
    %v101 = vld [vmem:[%s1 + $0x150] sm:$0xff]
    %v102 = vld [vmem:[%s1 + $0x158] sm:$0xff]
    %v103 = vld [vmem:[%s1 + $0x160] sm:$0xff]
    %v104 = vld [vmem:[%s1 + $0x168] sm:$0xff]
    %v105 = vld [vmem:[%s1 + $0x170] sm:$0xff]
    %v106 = vld [vmem:[%s1 + $0x178] sm:$0xff]
    %v107 = vld [vmem:[%s1 + $0x180] sm:$0xff]
    %v108 = vld [vmem:[%s1 + $0x188] sm:$0xff]
    %v109 = vld [vmem:[%s1 + $0x190] sm:$0xff]
    %v110 = vld [vmem:[%s1 + $0x198] sm:$0xff]
    %v111 = vld [vmem:[%s1 + $0x1a0] sm:$0xff]
    %v112 = vld [vmem:[%s1 + $0x1a8] sm:$0xff]
    %v113 = vld [vmem:[%s1 + $0x1b0] sm:$0xff]
    %v114 = vld [vmem:[%s1 + $0x1b8] sm:$0xff]
    %v115 = vld [vmem:[%s1 + $0x1c0] sm:$0xff]
    %v116 = vld [vmem:[%s1 + $0x1c8] sm:$0xff]
    %v117 = vld [vmem:[%s1 + $0x1d0] sm:$0xff]
    %v118 = vld [vmem:[%s1 + $0x1d8] sm:$0xff]
    %v119 = vld [vmem:[%s1 + $0x1e0] sm:$0xff]
    %v120 = vld [vmem:[%s1 + $0x1e8] sm:$0xff]
    %v121 = vld [vmem:[%s1 + $0x1f0] sm:$0xff]
    %v122 = vld [vmem:[%s1 + $0x1f8] sm:$0xff]
    %v123 = vld [vmem:[%s1 + $0x200] sm:$0xff]
    %v124 = vld [vmem:[%s1 + $0x208] sm:$0xff]
    %v125 = vld [vmem:[%s1 + $0x210] sm:$0xff]
    %v126 = vld [vmem:[%s1 + $0x218] sm:$0xff]
    %v127 = vld [vmem:[%s1 + $0x220] sm:$0xff]
    %v128 = vld [vmem:[%s1 + $0x228] sm:$0xff]
    %v129 = vld [vmem:[%s1 + $0x230] sm:$0xff]
    %v130 = vld [vmem:[%s1 + $0x238] sm:$0xff]
    %v131 = vld [vmem:[%s1 + $0x240] sm:$0xff]
    %v132 = vld [vmem:[%s1 + $0x248] sm:$0xff]
    %v133 = vld [vmem:[%s1 + $0x250] sm:$0xff]
    %v134 = vld [vmem:[%s1 + $0x258] sm:$0xff]
    %v135 = vld [vmem:[%s1 + $0x260] sm:$0xff]
    %v136 = vld [vmem:[%s1 + $0x268] sm:$0xff]
    %v137 = vld [vmem:[%s1 + $0x270] sm:$0xff]
    %v138 = vld [vmem:[%s1 + $0x278] sm:$0xff]
    %v139 = vld [vmem:[%s1 + $0x280] sm:$0xff]
    %v140 = vld [vmem:[%s1 + $0x288] sm:$0xff]
    %v141 = vld [vmem:[%s1 + $0x290] sm:$0xff]
    %v142 = vld [vmem:[%s1 + $0x298] sm:$0xff]
    %v143 = vld [vmem:[%s1 + $0x2a0] sm:$0xff]
    %v144 = vld [vmem:[%s1 + $0x2a8] sm:$0xff]
    %v145 = vld [vmem:[%s1 + $0x2b0] sm:$0xff]
    %v146 = vld [vmem:[%s1 + $0x2b8] sm:$0xff]
    %v147 = vld [vmem:[%s1 + $0x2c0] sm:$0xff]
    %v148 = vld [vmem:[%s1 + $0x2c8] sm:$0xff]
    %v149 = vld [vmem:[%s1 + $0x2d0] sm:$0xff]
    %v150 = vld [vmem:[%s1 + $0x2d8] sm:$0xff]
    %v151 = vld [vmem:[%s1 + $0x2e0] sm:$0xff]
    %v152 = vld [vmem:[%s1 + $0x2e8] sm:$0xff]
    %v153 = vld [vmem:[%s1 + $0x2f0] sm:$0xff]
    %v154 = vld [vmem:[%s1 + $0x2f8] sm:$0xff]
    %v155 = vld [vmem:[%s1 + $0x300] sm:$0xff]
    %v156 = vld [vmem:[%s1 + $0x308] sm:$0xff]
    %v157 = vld [vmem:[%s1 + $0x310] sm:$0xff]
    %v158 = vld [vmem:[%s1 + $0x318] sm:$0xff]
    %v159 = vld [vmem:[%s1 + $0x320] sm:$0xff]
    %v160 = vld [vmem:[%s1 + $0x328] sm:$0xff]
    %v161 = vld [vmem:[%s1 + $0x330] sm:$0xff]
    %v162 = vld [vmem:[%s1 + $0x338] sm:$0xff]
    %v163 = vld [vmem:[%s1 + $0x340] sm:$0xff]
    %v164 = vld [vmem:[%s1 + $0x348] sm:$0xff]
    %v165 = vld [vmem:[%s1 + $0x350] sm:$0xff]
    %v166 = vld [vmem:[%s1 + $0x358] sm:$0xff]
    %v167 = vld [vmem:[%s1 + $0x360] sm:$0xff]
    %v168 = vld [vmem:[%s1 + $0x368] sm:$0xff]
    %v169 = vld [vmem:[%s1 + $0x370] sm:$0xff]
    %v170 = vld [vmem:[%s1 + $0x378] sm:$0xff]
    %v171 = vld [vmem:[%s1 + $0x380] sm:$0xff]
    %v172 = vld [vmem:[%s1 + $0x388] sm:$0xff]
    %v173 = vld [vmem:[%s1 + $0x390] sm:$0xff]
    %v174 = vld [vmem:[%s1 + $0x398] sm:$0xff]
    %v175 = vld [vmem:[%s1 + $0x3a0] sm:$0xff]
    %v176 = vld [vmem:[%s1 + $0x3a8] sm:$0xff]
    %v177 = vld [vmem:[%s1 + $0x3b0] sm:$0xff]
    %v178 = vld [vmem:[%s1 + $0x3b8] sm:$0xff]
    %v179 = vld [vmem:[%s1 + $0x3c0] sm:$0xff]
    %v180 = vld [vmem:[%s1 + $0x3c8] sm:$0xff]
    %v181 = vld [vmem:[%s1 + $0x3d0] sm:$0xff]
    %v182 = vld [vmem:[%s1 + $0x3d8] sm:$0xff]
    %v183 = vld [vmem:[%s1 + $0x3e0] sm:$0xff]
    %v184 = vld [vmem:[%s1 + $0x3e8] sm:$0xff]
    %v185 = vld [vmem:[%s1 + $0x3f0] sm:$0xff]
    %v186 = vld [vmem:[%s1 + $0x3f8] sm:$0xff]
    %v187 = vld [vmem:[%s1 + $0x400] sm:$0xff]
    %v188 = vld [vmem:[%s1 + $0x408] sm:$0xff]
    %v189 = vld [vmem:[%s1 + $0x410] sm:$0xff]
    %v190 = vld [vmem:[%s1 + $0x418] sm:$0xff]
    %v191 = vld [vmem:[%s1 + $0x420] sm:$0xff]
    %v192 = vld [vmem:[%s1 + $0x428] sm:$0xff]
    %v193 = vld [vmem:[%s1 + $0x430] sm:$0xff]
    %v194 = vld [vmem:[%s1 + $0x438] sm:$0xff]
    %v195 = vld [vmem:[%s1 + $0x440] sm:$0xff]
    %v196 = vld [vmem:[%s1 + $0x448] sm:$0xff]
    %v197 = vld [vmem:[%s1 + $0x450] sm:$0xff]
    %v198 = vld [vmem:[%s1 + $0x458] sm:$0xff]
    %v199 = vld [vmem:[%s1 + $0x460] sm:$0xff]
    %v200 = vld [vmem:[%s1 + $0x468] sm:$0xff]
    %v201 = vld [vmem:[%s1 + $0x470] sm:$0xff]
    %v202 = vld [vmem:[%s1 + $0x478] sm:$0xff]
    %v203 = vld [vmem:[%s1 + $0x480] sm:$0xff]
    %v204 = vld [vmem:[%s1 + $0x488] sm:$0xff]
    %v205 = vld [vmem:[%s1 + $0x490] sm:$0xff]
    %v206 = vld [vmem:[%s1 + $0x498] sm:$0xff]
    %v207 = vld [vmem:[%s1 + $0x4a0] sm:$0xff]
    %v208 = vld [vmem:[%s1 + $0x4a8] sm:$0xff]
    %v209 = vld [vmem:[%s1 + $0x4b0] sm:$0xff]
    %v210 = vld [vmem:[%s1 + $0x4b8] sm:$0xff]
    %v211 = vld [vmem:[%s1 + $0x4c0] sm:$0xff]
    %v212 = vld [vmem:[%s1 + $0x4c8] sm:$0xff]
    %v213 = vld [vmem:[%s1 + $0x4d0] sm:$0xff]
    %v214 = vld [vmem:[%s1 + $0x4d8] sm:$0xff]
    %v215 = vld [vmem:[%s1 + $0x4e0] sm:$0xff]
    %v216 = vld [vmem:[%s1 + $0x4e8] sm:$0xff]
    %v217 = vld [vmem:[%s1 + $0x4f0] sm:$0xff]
    %v218 = vld [vmem:[%s1 + $0x4f8] sm:$0xff]
    %v219 = vld [vmem:[%s1 + $0x500] sm:$0xff]
    %v220 = vld [vmem:[%s1 + $0x508] sm:$0xff]
    %v221 = vld [vmem:[%s1 + $0x510] sm:$0xff]
    %v222 = vld [vmem:[%s1 + $0x518] sm:$0xff]
    %v223 = vld [vmem:[%s1 + $0x520] sm:$0xff]
    %v224 = vld [vmem:[%s1 + $0x528] sm:$0xff]
    %v225 = vld [vmem:[%s1 + $0x530] sm:$0xff]
    %v226 = vld [vmem:[%s1 + $0x538] sm:$0xff]
    %v227 = vld [vmem:[%s1 + $0x540] sm:$0xff]
    %v228 = vld [vmem:[%s1 + $0x548] sm:$0xff]
    %v229 = vld [vmem:[%s1 + $0x550] sm:$0xff]
    %v230 = vld [vmem:[%s1 + $0x558] sm:$0xff]
    %v231 = vld [vmem:[%s1 + $0x560] sm:$0xff]
    %v232 = vld [vmem:[%s1 + $0x568] sm:$0xff]
    %v233 = vld [vmem:[%s1 + $0x570] sm:$0xff]
    %v234 = vld [vmem:[%s1 + $0x578] sm:$0xff]
    %v235 = vld [vmem:[%s1 + $0x580] sm:$0xff]
    %v236 = vld [vmem:[%s1 + $0x588] sm:$0xff]
    %v237 = vld [vmem:[%s1 + $0x590] sm:$0xff]
    %v238 = vld [vmem:[%s1 + $0x598] sm:$0xff]
    %v239 = vld [vmem:[%s1 + $0x5a0] sm:$0xff]
    %v240 = vld [vmem:[%s1 + $0x5a8] sm:$0xff]
    %v241 = vld [vmem:[%s1 + $0x5b0] sm:$0xff]
    %v242 = vld [vmem:[%s1 + $0x5b8] sm:$0xff]
    %v243 = vld [vmem:[%s1 + $0x5c0] sm:$0xff]
    %v244 = vld [vmem:[%s1 + $0x5c8] sm:$0xff]
    %v245 = vld [vmem:[%s1 + $0x5d0] sm:$0xff]
    %v246 = vld [vmem:[%s1 + $0x5d8] sm:$0xff]
    %v247 = vld [vmem:[%s1 + $0x5e0] sm:$0xff]
    %v248 = vld [vmem:[%s1 + $0x5e8] sm:$0xff]
    %v249 = vld [vmem:[%s1 + $0x5f0] sm:$0xff]
    %v250 = vld [vmem:[%s1 + $0x5f8] sm:$0xff]
    %v251 = vld [vmem:[%s1 + $0x600] sm:$0xff]
    %v252 = vld [vmem:[%s1 + $0x608] sm:$0xff]
    %v253 = vld [vmem:[%s1 + $0x610] sm:$0xff]
    %v254 = vld [vmem:[%s1 + $0x618] sm:$0xff]
    %v255 = vld [vmem:[%s2] sm:$0xf]
    %v256 = vpack.c.bf16 %v52, %v52
    %v257 = vpack.c.bf16 %v53, %v53
    %v258 = vpack.c.bf16 %v54, %v54
    %v259 = vpack.c.bf16 %v55, %v55
    %v260 = vpack.c.bf16 %v56, %v56
    %v261 = vpack.c.bf16 %v57, %v57
    %v262 = vpack.c.bf16 %v58, %v58
    %v264 = vlaneseq
    %v265 = vshrl.u32 %v264, 7
    %v266 = vsub.s32 0, %v265
    %v267 = vrot.slane %v255, %v266
    %v268 = vlaneseq
    %v269 = vshrl.u32 %v268, 7
    %v270 = vsub.s32 1, %v269
    %v271 = vrot.slane %v255, %v270
    %v272 = vlaneseq
    %v273 = vshrl.u32 %v272, 7
    %v274 = vsub.s32 2, %v273
    %v275 = vrot.slane %v255, %v274
    %v276 = vlaneseq
    %v277 = vshrl.u32 %v276, 7
    %v278 = vsub.s32 3, %v277
    %v279 = vrot.slane %v255, %v278
    %v480 = vunpack.c.l.b16 %v59
    %v481 = vunpack.c.h.b16 %v59
    %v482 = vunpack.c.l.b16 %v60
    %v483 = vunpack.c.h.b16 %v60
    %v484 = vunpack.c.l.b16 %v61
    %v485 = vunpack.c.h.b16 %v61
    %v486 = vunpack.c.l.b16 %v62
    %v487 = vunpack.c.h.b16 %v62
    %v488 = vunpack.c.l.b16 %v63
    %v489 = vunpack.c.h.b16 %v63
    %v490 = vunpack.c.l.b16 %v64
    %v491 = vunpack.c.h.b16 %v64
    %v492 = vunpack.c.l.b16 %v65
    %v493 = vunpack.c.h.b16 %v65
    %v494 = vunpack.c.l.b16 %v66
    %v495 = vunpack.c.h.b16 %v66
    %v496 = vunpack.c.l.b16 %v67
    %v497 = vunpack.c.h.b16 %v67
    %v498 = vunpack.c.l.b16 %v68
    %v499 = vunpack.c.h.b16 %v68
    %v500 = vunpack.c.l.b16 %v69
    %v501 = vunpack.c.h.b16 %v69
    %v502 = vunpack.c.l.b16 %v70
    %v503 = vunpack.c.h.b16 %v70
    %v504 = vunpack.c.l.b16 %v71
    %v505 = vunpack.c.h.b16 %v71
    %v506 = vunpack.c.l.b16 %v72
    %v507 = vunpack.c.h.b16 %v72
    %v508 = vunpack.c.l.b16 %v73
    %v509 = vunpack.c.h.b16 %v73
    %v510 = vunpack.c.l.b16 %v74
    %v511 = vunpack.c.h.b16 %v74
    %v512 = vunpack.c.l.b16 %v75
    %v513 = vunpack.c.h.b16 %v75
    %v514 = vunpack.c.l.b16 %v76
    %v515 = vunpack.c.h.b16 %v76
    %v516 = vunpack.c.l.b16 %v77
    %v517 = vunpack.c.h.b16 %v77
    %v518 = vunpack.c.l.b16 %v78
    %v519 = vunpack.c.h.b16 %v78
    %v520 = vunpack.c.l.b16 %v79
    %v521 = vunpack.c.h.b16 %v79
    %v522 = vunpack.c.l.b16 %v80
    %v523 = vunpack.c.h.b16 %v80
    %v524 = vunpack.c.l.b16 %v81
    %v525 = vunpack.c.h.b16 %v81
    %v526 = vunpack.c.l.b16 %v82
    %v527 = vunpack.c.h.b16 %v82
    %v528 = vunpack.c.l.b16 %v83
    %v529 = vunpack.c.h.b16 %v83
    %v530 = vunpack.c.l.b16 %v84
    %v531 = vunpack.c.h.b16 %v84
    %v532 = vunpack.c.l.b16 %v85
    %v533 = vunpack.c.h.b16 %v85
    %v534 = vunpack.c.l.b16 %v86
    %v535 = vunpack.c.h.b16 %v86
    %v536 = vunpack.c.l.b16 %v87
    %v537 = vunpack.c.h.b16 %v87
    %v538 = vunpack.c.l.b16 %v88
    %v539 = vunpack.c.h.b16 %v88
    %v540 = vunpack.c.l.b16 %v89
    %v541 = vunpack.c.h.b16 %v89
    %v542 = vunpack.c.l.b16 %v90
    %v543 = vunpack.c.h.b16 %v90
    %v544 = vunpack.c.l.b16 %v91
    %v545 = vunpack.c.h.b16 %v91
    %v546 = vunpack.c.l.b16 %v92
    %v547 = vunpack.c.h.b16 %v92
    %v548 = vunpack.c.l.b16 %v93
    %v549 = vunpack.c.h.b16 %v93
    %v550 = vunpack.c.l.b16 %v94
    %v551 = vunpack.c.h.b16 %v94
    %v552 = vunpack.c.l.b16 %v95
    %v553 = vunpack.c.h.b16 %v95
    %v554 = vunpack.c.l.b16 %v96
    %v555 = vunpack.c.h.b16 %v96
    %v556 = vunpack.c.l.b16 %v97
    %v557 = vunpack.c.h.b16 %v97
    %v558 = vunpack.c.l.b16 %v98
    %v559 = vunpack.c.h.b16 %v98
    %v560 = vunpack.c.l.b16 %v99
    %v561 = vunpack.c.h.b16 %v99
    %v562 = vunpack.c.l.b16 %v100
    %v563 = vunpack.c.h.b16 %v100
    %v564 = vunpack.c.l.b16 %v101
    %v565 = vunpack.c.h.b16 %v101
    %v566 = vunpack.c.l.b16 %v102
    %v567 = vunpack.c.h.b16 %v102
    %v568 = vunpack.c.l.b16 %v103
    %v569 = vunpack.c.h.b16 %v103
    %v570 = vunpack.c.l.b16 %v104
    %v571 = vunpack.c.h.b16 %v104
    %v572 = vunpack.c.l.b16 %v105
    %v573 = vunpack.c.h.b16 %v105
    %v574 = vunpack.c.l.b16 %v106
    %v575 = vunpack.c.h.b16 %v106
    %v576 = vunpack.c.l.b16 %v107
    %v577 = vunpack.c.h.b16 %v107
    %v578 = vunpack.c.l.b16 %v108
    %v579 = vunpack.c.h.b16 %v108
    %v580 = vunpack.c.l.b16 %v109
    %v581 = vunpack.c.h.b16 %v109
    %v582 = vunpack.c.l.b16 %v110
    %v583 = vunpack.c.h.b16 %v110
    %v584 = vunpack.c.l.b16 %v111
    %v585 = vunpack.c.h.b16 %v111
    %v586 = vunpack.c.l.b16 %v112
    %v587 = vunpack.c.h.b16 %v112
    %v588 = vunpack.c.l.b16 %v113
    %v589 = vunpack.c.h.b16 %v113
    %v590 = vunpack.c.l.b16 %v114
    %v591 = vunpack.c.h.b16 %v114
    %v592 = vunpack.c.l.b16 %v115
    %v593 = vunpack.c.h.b16 %v115
    %v594 = vunpack.c.l.b16 %v116
    %v595 = vunpack.c.h.b16 %v116
    %v596 = vunpack.c.l.b16 %v117
    %v597 = vunpack.c.h.b16 %v117
    %v598 = vunpack.c.l.b16 %v118
    %v599 = vunpack.c.h.b16 %v118
    %v600 = vunpack.c.l.b16 %v119
    %v601 = vunpack.c.h.b16 %v119
    %v602 = vunpack.c.l.b16 %v120
    %v603 = vunpack.c.h.b16 %v120
    %v604 = vunpack.c.l.b16 %v121
    %v605 = vunpack.c.h.b16 %v121
    %v606 = vunpack.c.l.b16 %v122
    %v607 = vunpack.c.h.b16 %v122
    %v608 = vunpack.c.l.b16 %v123
    %v609 = vunpack.c.h.b16 %v123
    %v610 = vunpack.c.l.b16 %v124
    %v611 = vunpack.c.h.b16 %v124
    %v612 = vunpack.c.l.b16 %v125
    %v613 = vunpack.c.h.b16 %v125
    %v614 = vunpack.c.l.b16 %v126
    %v615 = vunpack.c.h.b16 %v126
    %v616 = vunpack.c.l.b16 %v127
    %v617 = vunpack.c.h.b16 %v127
    %v618 = vunpack.c.l.b16 %v128
    %v619 = vunpack.c.h.b16 %v128
    %v620 = vunpack.c.l.b16 %v129
    %v621 = vunpack.c.h.b16 %v129
    %v622 = vunpack.c.l.b16 %v130
    %v623 = vunpack.c.h.b16 %v130
    %v624 = vunpack.c.l.b16 %v131
    %v625 = vunpack.c.h.b16 %v131
    %v626 = vunpack.c.l.b16 %v132
    %v627 = vunpack.c.h.b16 %v132
    %v628 = vunpack.c.l.b16 %v133
    %v629 = vunpack.c.h.b16 %v133
    %v630 = vunpack.c.l.b16 %v134
    %v631 = vunpack.c.h.b16 %v134
    %v632 = vunpack.c.l.b16 %v135
    %v633 = vunpack.c.h.b16 %v135
    %v634 = vunpack.c.l.b16 %v136
    %v635 = vunpack.c.h.b16 %v136
    %v636 = vunpack.c.l.b16 %v137
    %v637 = vunpack.c.h.b16 %v137
    %v638 = vunpack.c.l.b16 %v138
    %v639 = vunpack.c.h.b16 %v138
    %v640 = vunpack.c.l.b16 %v139
    %v641 = vunpack.c.h.b16 %v139
    %v642 = vunpack.c.l.b16 %v140
    %v643 = vunpack.c.h.b16 %v140
    %v644 = vunpack.c.l.b16 %v141
    %v645 = vunpack.c.h.b16 %v141
    %v646 = vunpack.c.l.b16 %v142
    %v647 = vunpack.c.h.b16 %v142
    %v648 = vunpack.c.l.b16 %v143
    %v649 = vunpack.c.h.b16 %v143
    %v650 = vunpack.c.l.b16 %v144
    %v651 = vunpack.c.h.b16 %v144
    %v652 = vunpack.c.l.b16 %v145
    %v653 = vunpack.c.h.b16 %v145
    %v654 = vunpack.c.l.b16 %v146
    %v655 = vunpack.c.h.b16 %v146
    %v656 = vunpack.c.l.b16 %v147
    %v657 = vunpack.c.h.b16 %v147
    %v658 = vunpack.c.l.b16 %v148
    %v659 = vunpack.c.h.b16 %v148
    %v660 = vunpack.c.l.b16 %v149
    %v661 = vunpack.c.h.b16 %v149
    %v662 = vunpack.c.l.b16 %v150
    %v663 = vunpack.c.h.b16 %v150
    %v664 = vunpack.c.l.b16 %v151
    %v665 = vunpack.c.h.b16 %v151
    %v666 = vunpack.c.l.b16 %v152
    %v667 = vunpack.c.h.b16 %v152
    %v668 = vunpack.c.l.b16 %v153
    %v669 = vunpack.c.h.b16 %v153
    %v670 = vunpack.c.l.b16 %v154
    %v671 = vunpack.c.h.b16 %v154
    %v672 = vunpack.c.l.b16 %v155
    %v673 = vunpack.c.h.b16 %v155
    %v674 = vunpack.c.l.b16 %v156
    %v675 = vunpack.c.h.b16 %v156
    %v676 = vunpack.c.l.b16 %v157
    %v677 = vunpack.c.h.b16 %v157
    %v678 = vunpack.c.l.b16 %v158
    %v679 = vunpack.c.h.b16 %v158
    %v680 = vunpack.c.l.b16 %v159
    %v681 = vunpack.c.h.b16 %v159
    %v682 = vunpack.c.l.b16 %v160
    %v683 = vunpack.c.h.b16 %v160
    %v684 = vunpack.c.l.b16 %v161
    %v685 = vunpack.c.h.b16 %v161
    %v686 = vunpack.c.l.b16 %v162
    %v687 = vunpack.c.h.b16 %v162
    %v688 = vunpack.c.l.b16 %v163
    %v689 = vunpack.c.h.b16 %v163
    %v690 = vunpack.c.l.b16 %v164
    %v691 = vunpack.c.h.b16 %v164
    %v692 = vunpack.c.l.b16 %v165
    %v693 = vunpack.c.h.b16 %v165
    %v694 = vunpack.c.l.b16 %v166
    %v695 = vunpack.c.h.b16 %v166
    %v696 = vunpack.c.l.b16 %v167
    %v697 = vunpack.c.h.b16 %v167
    %v698 = vunpack.c.l.b16 %v168
    %v699 = vunpack.c.h.b16 %v168
    %v700 = vunpack.c.l.b16 %v169
    %v701 = vunpack.c.h.b16 %v169
    %v702 = vunpack.c.l.b16 %v170
    %v703 = vunpack.c.h.b16 %v170
    %v704 = vunpack.c.l.b16 %v171
    %v705 = vunpack.c.h.b16 %v171
    %v706 = vunpack.c.l.b16 %v172
    %v707 = vunpack.c.h.b16 %v172
    %v708 = vunpack.c.l.b16 %v173
    %v709 = vunpack.c.h.b16 %v173
    %v710 = vunpack.c.l.b16 %v174
    %v711 = vunpack.c.h.b16 %v174
    %v712 = vunpack.c.l.b16 %v175
    %v713 = vunpack.c.h.b16 %v175
    %v714 = vunpack.c.l.b16 %v176
    %v715 = vunpack.c.h.b16 %v176
    %v716 = vunpack.c.l.b16 %v177
    %v717 = vunpack.c.h.b16 %v177
    %v718 = vunpack.c.l.b16 %v178
    %v719 = vunpack.c.h.b16 %v178
    %v720 = vunpack.c.l.b16 %v179
    %v721 = vunpack.c.h.b16 %v179
    %v722 = vunpack.c.l.b16 %v180
    %v723 = vunpack.c.h.b16 %v180
    %v724 = vunpack.c.l.b16 %v181
    %v725 = vunpack.c.h.b16 %v181
    %v726 = vunpack.c.l.b16 %v182
    %v727 = vunpack.c.h.b16 %v182
    %v728 = vunpack.c.l.b16 %v183
    %v729 = vunpack.c.h.b16 %v183
    %v730 = vunpack.c.l.b16 %v184
    %v731 = vunpack.c.h.b16 %v184
    %v732 = vunpack.c.l.b16 %v185
    %v733 = vunpack.c.h.b16 %v185
    %v734 = vunpack.c.l.b16 %v186
    %v735 = vunpack.c.h.b16 %v186
    %v736 = vunpack.c.l.b16 %v187
    %v737 = vunpack.c.h.b16 %v187
    %v738 = vunpack.c.l.b16 %v188
    %v739 = vunpack.c.h.b16 %v188
    %v740 = vunpack.c.l.b16 %v189
    %v741 = vunpack.c.h.b16 %v189
    %v742 = vunpack.c.l.b16 %v190
    %v743 = vunpack.c.h.b16 %v190
    %v744 = vunpack.c.l.b16 %v191
    %v745 = vunpack.c.h.b16 %v191
    %v746 = vunpack.c.l.b16 %v192
    %v747 = vunpack.c.h.b16 %v192
    %v748 = vunpack.c.l.b16 %v193
    %v749 = vunpack.c.h.b16 %v193
    %v750 = vunpack.c.l.b16 %v194
    %v751 = vunpack.c.h.b16 %v194
    %v752 = vunpack.c.l.b16 %v195
    %v753 = vunpack.c.h.b16 %v195
    %v754 = vunpack.c.l.b16 %v196
    %v755 = vunpack.c.h.b16 %v196
    %v756 = vunpack.c.l.b16 %v197
    %v757 = vunpack.c.h.b16 %v197
    %v758 = vunpack.c.l.b16 %v198
    %v759 = vunpack.c.h.b16 %v198
    %v760 = vunpack.c.l.b16 %v199
    %v761 = vunpack.c.h.b16 %v199
    %v762 = vunpack.c.l.b16 %v200
    %v763 = vunpack.c.h.b16 %v200
    %v764 = vunpack.c.l.b16 %v201
    %v765 = vunpack.c.h.b16 %v201
    %v766 = vunpack.c.l.b16 %v202
    %v767 = vunpack.c.h.b16 %v202
    %v768 = vunpack.c.l.b16 %v203
    %v769 = vunpack.c.h.b16 %v203
    %v770 = vunpack.c.l.b16 %v204
    %v771 = vunpack.c.h.b16 %v204
    %v772 = vunpack.c.l.b16 %v205
    %v773 = vunpack.c.h.b16 %v205
    %v774 = vunpack.c.l.b16 %v206
    %v775 = vunpack.c.h.b16 %v206
    %v776 = vunpack.c.l.b16 %v207
    %v777 = vunpack.c.h.b16 %v207
    %v778 = vunpack.c.l.b16 %v208
    %v779 = vunpack.c.h.b16 %v208
    %v780 = vunpack.c.l.b16 %v209
    %v781 = vunpack.c.h.b16 %v209
    %v782 = vunpack.c.l.b16 %v210
    %v783 = vunpack.c.h.b16 %v210
    %v784 = vunpack.c.l.b16 %v211
    %v785 = vunpack.c.h.b16 %v211
    %v786 = vunpack.c.l.b16 %v212
    %v787 = vunpack.c.h.b16 %v212
    %v788 = vunpack.c.l.b16 %v213
    %v789 = vunpack.c.h.b16 %v213
    %v790 = vunpack.c.l.b16 %v214
    %v791 = vunpack.c.h.b16 %v214
    %v792 = vunpack.c.l.b16 %v215
    %v793 = vunpack.c.h.b16 %v215
    %v794 = vunpack.c.l.b16 %v216
    %v795 = vunpack.c.h.b16 %v216
    %v796 = vunpack.c.l.b16 %v217
    %v797 = vunpack.c.h.b16 %v217
    %v798 = vunpack.c.l.b16 %v218
    %v799 = vunpack.c.h.b16 %v218
    %v800 = vunpack.c.l.b16 %v219
    %v801 = vunpack.c.h.b16 %v219
    %v802 = vunpack.c.l.b16 %v220
    %v803 = vunpack.c.h.b16 %v220
    %v804 = vunpack.c.l.b16 %v221
    %v805 = vunpack.c.h.b16 %v221
    %v806 = vunpack.c.l.b16 %v222
    %v807 = vunpack.c.h.b16 %v222
    %v808 = vunpack.c.l.b16 %v223
    %v809 = vunpack.c.h.b16 %v223
    %v810 = vunpack.c.l.b16 %v224
    %v811 = vunpack.c.h.b16 %v224
    %v812 = vunpack.c.l.b16 %v225
    %v813 = vunpack.c.h.b16 %v225
    %v814 = vunpack.c.l.b16 %v226
    %v815 = vunpack.c.h.b16 %v226
    %v816 = vunpack.c.l.b16 %v227
    %v817 = vunpack.c.h.b16 %v227
    %v818 = vunpack.c.l.b16 %v228
    %v819 = vunpack.c.h.b16 %v228
    %v820 = vunpack.c.l.b16 %v229
    %v821 = vunpack.c.h.b16 %v229
    %v822 = vunpack.c.l.b16 %v230
    %v823 = vunpack.c.h.b16 %v230
    %v824 = vunpack.c.l.b16 %v231
    %v825 = vunpack.c.h.b16 %v231
    %v826 = vunpack.c.l.b16 %v232
    %v827 = vunpack.c.h.b16 %v232
    %v828 = vunpack.c.l.b16 %v233
    %v829 = vunpack.c.h.b16 %v233
    %v830 = vunpack.c.l.b16 %v234
    %v831 = vunpack.c.h.b16 %v234
    %v832 = vunpack.c.l.b16 %v235
    %v833 = vunpack.c.h.b16 %v235
    %v834 = vunpack.c.l.b16 %v236
    %v835 = vunpack.c.h.b16 %v236
    %v836 = vunpack.c.l.b16 %v237
    %v837 = vunpack.c.h.b16 %v237
    %v838 = vunpack.c.l.b16 %v238
    %v839 = vunpack.c.h.b16 %v238
    %v840 = vunpack.c.l.b16 %v239
    %v841 = vunpack.c.h.b16 %v239
    %v842 = vunpack.c.l.b16 %v240
    %v843 = vunpack.c.h.b16 %v240
    %v844 = vunpack.c.l.b16 %v241
    %v845 = vunpack.c.h.b16 %v241
    %v846 = vunpack.c.l.b16 %v242
    %v847 = vunpack.c.h.b16 %v242
    %v848 = vunpack.c.l.b16 %v243
    %v849 = vunpack.c.h.b16 %v243
    %v850 = vunpack.c.l.b16 %v244
    %v851 = vunpack.c.h.b16 %v244
    %v852 = vunpack.c.l.b16 %v245
    %v853 = vunpack.c.h.b16 %v245
    %v854 = vunpack.c.l.b16 %v246
    %v855 = vunpack.c.h.b16 %v246
    %v856 = vunpack.c.l.b16 %v247
    %v857 = vunpack.c.h.b16 %v247
    %v858 = vunpack.c.l.b16 %v248
    %v859 = vunpack.c.h.b16 %v248
    %v860 = vunpack.c.l.b16 %v249
    %v861 = vunpack.c.h.b16 %v249
    %v862 = vunpack.c.l.b16 %v250
    %v863 = vunpack.c.h.b16 %v250
    %v864 = vunpack.c.l.b16 %v251
    %v865 = vunpack.c.h.b16 %v251
    %v866 = vunpack.c.l.b16 %v252
    %v867 = vunpack.c.h.b16 %v252
    %v868 = vunpack.c.l.b16 %v253
    %v869 = vunpack.c.h.b16 %v253
    %v870 = vunpack.c.l.b16 %v254
    %v871 = vunpack.c.h.b16 %v254
    %v872 = vpack.c.b16 %v484, %v480
    %v873 = vpack.c.b16 %v485, %v481
    %v874 = vpack.c.b16 %v486, %v482
    %v875 = vpack.c.b16 %v487, %v483
    %v876 = vpack.c.b16 %v492, %v488
    %v877 = vpack.c.b16 %v493, %v489
    %v878 = vpack.c.b16 %v494, %v490
    %v879 = vpack.c.b16 %v495, %v491
    %v880 = vpack.c.b16 %v500, %v496
    %v881 = vpack.c.b16 %v501, %v497
    %v882 = vpack.c.b16 %v502, %v498
    %v883 = vpack.c.b16 %v503, %v499
    %v884 = vpack.c.b16 %v508, %v504
    %v885 = vpack.c.b16 %v509, %v505
    %v886 = vpack.c.b16 %v510, %v506
    %v887 = vpack.c.b16 %v511, %v507
    %v888 = vpack.c.b16 %v516, %v512
    %v889 = vpack.c.b16 %v517, %v513
    %v890 = vpack.c.b16 %v518, %v514
    %v891 = vpack.c.b16 %v519, %v515
    %v892 = vpack.c.b16 %v524, %v520
    %v893 = vpack.c.b16 %v525, %v521
    %v894 = vpack.c.b16 %v526, %v522
    %v895 = vpack.c.b16 %v527, %v523
    %v896 = vpack.c.b16 %v532, %v528
    %v897 = vpack.c.b16 %v533, %v529
    %v898 = vpack.c.b16 %v534, %v530
    %v899 = vpack.c.b16 %v535, %v531
    %v900 = vpack.c.b16 %v540, %v536
    %v901 = vpack.c.b16 %v541, %v537
    %v902 = vpack.c.b16 %v542, %v538
    %v903 = vpack.c.b16 %v543, %v539
    %v904 = vpack.c.b16 %v548, %v544
    %v905 = vpack.c.b16 %v549, %v545
    %v906 = vpack.c.b16 %v550, %v546
    %v907 = vpack.c.b16 %v551, %v547
    %v908 = vpack.c.b16 %v556, %v552
    %v909 = vpack.c.b16 %v557, %v553
    %v910 = vpack.c.b16 %v558, %v554
    %v911 = vpack.c.b16 %v559, %v555
    %v912 = vpack.c.b16 %v564, %v560
    %v913 = vpack.c.b16 %v565, %v561
    %v914 = vpack.c.b16 %v566, %v562
    %v915 = vpack.c.b16 %v567, %v563
    %v916 = vpack.c.b16 %v572, %v568
    %v917 = vpack.c.b16 %v573, %v569
    %v918 = vpack.c.b16 %v574, %v570
    %v919 = vpack.c.b16 %v575, %v571
    %v920 = vpack.c.b16 %v580, %v576
    %v921 = vpack.c.b16 %v581, %v577
    %v922 = vpack.c.b16 %v582, %v578
    %v923 = vpack.c.b16 %v583, %v579
    %v924 = vpack.c.b16 %v588, %v584
    %v925 = vpack.c.b16 %v589, %v585
    %v926 = vpack.c.b16 %v590, %v586
    %v927 = vpack.c.b16 %v591, %v587
    %v928 = vpack.c.b16 %v596, %v592
    %v929 = vpack.c.b16 %v597, %v593
    %v930 = vpack.c.b16 %v598, %v594
    %v931 = vpack.c.b16 %v599, %v595
    %v932 = vpack.c.b16 %v604, %v600
    %v933 = vpack.c.b16 %v605, %v601
    %v934 = vpack.c.b16 %v606, %v602
    %v935 = vpack.c.b16 %v607, %v603
    %v936 = vpack.c.b16 %v612, %v608
    %v937 = vpack.c.b16 %v613, %v609
    %v938 = vpack.c.b16 %v614, %v610
    %v939 = vpack.c.b16 %v615, %v611
    %v940 = vpack.c.b16 %v620, %v616
    %v941 = vpack.c.b16 %v621, %v617
    %v942 = vpack.c.b16 %v622, %v618
    %v943 = vpack.c.b16 %v623, %v619
    %v944 = vpack.c.b16 %v628, %v624
    %v945 = vpack.c.b16 %v629, %v625
    %v946 = vpack.c.b16 %v630, %v626
    %v947 = vpack.c.b16 %v631, %v627
    %v948 = vpack.c.b16 %v636, %v632
    %v949 = vpack.c.b16 %v637, %v633
    %v950 = vpack.c.b16 %v638, %v634
    %v951 = vpack.c.b16 %v639, %v635
    %v952 = vpack.c.b16 %v644, %v640
    %v953 = vpack.c.b16 %v645, %v641
    %v954 = vpack.c.b16 %v646, %v642
    %v955 = vpack.c.b16 %v647, %v643
    %v956 = vpack.c.b16 %v652, %v648
    %v957 = vpack.c.b16 %v653, %v649
    %v958 = vpack.c.b16 %v654, %v650
    %v959 = vpack.c.b16 %v655, %v651
    %v960 = vpack.c.b16 %v660, %v656
    %v961 = vpack.c.b16 %v661, %v657
    %v962 = vpack.c.b16 %v662, %v658
    %v963 = vpack.c.b16 %v663, %v659
    %v964 = vpack.c.b16 %v668, %v664
    %v965 = vpack.c.b16 %v669, %v665
    %v966 = vpack.c.b16 %v670, %v666
    %v967 = vpack.c.b16 %v671, %v667
    %v968 = vpack.c.b16 %v676, %v672
    %v969 = vpack.c.b16 %v677, %v673
    %v970 = vpack.c.b16 %v678, %v674
    %v971 = vpack.c.b16 %v679, %v675
    %v972 = vpack.c.b16 %v684, %v680
    %v973 = vpack.c.b16 %v685, %v681
    %v974 = vpack.c.b16 %v686, %v682
    %v975 = vpack.c.b16 %v687, %v683
    %v976 = vpack.c.b16 %v692, %v688
    %v977 = vpack.c.b16 %v693, %v689
    %v978 = vpack.c.b16 %v694, %v690
    %v979 = vpack.c.b16 %v695, %v691
    %v980 = vpack.c.b16 %v700, %v696
    %v981 = vpack.c.b16 %v701, %v697
    %v982 = vpack.c.b16 %v702, %v698
    %v983 = vpack.c.b16 %v703, %v699
    %v984 = vpack.c.b16 %v708, %v704
    %v985 = vpack.c.b16 %v709, %v705
    %v986 = vpack.c.b16 %v710, %v706
    %v987 = vpack.c.b16 %v711, %v707
    %v988 = vpack.c.b16 %v716, %v712
    %v989 = vpack.c.b16 %v717, %v713
    %v990 = vpack.c.b16 %v718, %v714
    %v991 = vpack.c.b16 %v719, %v715
    %v992 = vpack.c.b16 %v724, %v720
    %v993 = vpack.c.b16 %v725, %v721
    %v994 = vpack.c.b16 %v726, %v722
    %v995 = vpack.c.b16 %v727, %v723
    %v996 = vpack.c.b16 %v732, %v728
    %v997 = vpack.c.b16 %v733, %v729
    %v998 = vpack.c.b16 %v734, %v730
    %v999 = vpack.c.b16 %v735, %v731
    %v1000 = vpack.c.b16 %v740, %v736
    %v1001 = vpack.c.b16 %v741, %v737
    %v1002 = vpack.c.b16 %v742, %v738
    %v1003 = vpack.c.b16 %v743, %v739
    %v1004 = vpack.c.b16 %v748, %v744
    %v1005 = vpack.c.b16 %v749, %v745
    %v1006 = vpack.c.b16 %v750, %v746
    %v1007 = vpack.c.b16 %v751, %v747
    %v1008 = vpack.c.b16 %v756, %v752
    %v1009 = vpack.c.b16 %v757, %v753
    %v1010 = vpack.c.b16 %v758, %v754
    %v1011 = vpack.c.b16 %v759, %v755
    %v1012 = vpack.c.b16 %v764, %v760
    %v1013 = vpack.c.b16 %v765, %v761
    %v1014 = vpack.c.b16 %v766, %v762
    %v1015 = vpack.c.b16 %v767, %v763
    %v1016 = vpack.c.b16 %v772, %v768
    %v1017 = vpack.c.b16 %v773, %v769
    %v1018 = vpack.c.b16 %v774, %v770
    %v1019 = vpack.c.b16 %v775, %v771
    %v1020 = vpack.c.b16 %v780, %v776
    %v1021 = vpack.c.b16 %v781, %v777
    %v1022 = vpack.c.b16 %v782, %v778
    %v1023 = vpack.c.b16 %v783, %v779
    %v1024 = vpack.c.b16 %v788, %v784
    %v1025 = vpack.c.b16 %v789, %v785
    %v1026 = vpack.c.b16 %v790, %v786
    %v1027 = vpack.c.b16 %v791, %v787
    %v1028 = vpack.c.b16 %v796, %v792
    %v1029 = vpack.c.b16 %v797, %v793
    %v1030 = vpack.c.b16 %v798, %v794
    %v1031 = vpack.c.b16 %v799, %v795
    %v1032 = vpack.c.b16 %v804, %v800
    %v1033 = vpack.c.b16 %v805, %v801
    %v1034 = vpack.c.b16 %v806, %v802
    %v1035 = vpack.c.b16 %v807, %v803
    %v1036 = vpack.c.b16 %v812, %v808
    %v1037 = vpack.c.b16 %v813, %v809
    %v1038 = vpack.c.b16 %v814, %v810
    %v1039 = vpack.c.b16 %v815, %v811
    %v1040 = vpack.c.b16 %v820, %v816
    %v1041 = vpack.c.b16 %v821, %v817
    %v1042 = vpack.c.b16 %v822, %v818
    %v1043 = vpack.c.b16 %v823, %v819
    %v1044 = vpack.c.b16 %v828, %v824
    %v1045 = vpack.c.b16 %v829, %v825
    %v1046 = vpack.c.b16 %v830, %v826
    %v1047 = vpack.c.b16 %v831, %v827
    %v1048 = vpack.c.b16 %v836, %v832
    %v1049 = vpack.c.b16 %v837, %v833
    %v1050 = vpack.c.b16 %v838, %v834
    %v1051 = vpack.c.b16 %v839, %v835
    %v1052 = vpack.c.b16 %v844, %v840
    %v1053 = vpack.c.b16 %v845, %v841
    %v1054 = vpack.c.b16 %v846, %v842
    %v1055 = vpack.c.b16 %v847, %v843
    %v1056 = vpack.c.b16 %v852, %v848
    %v1057 = vpack.c.b16 %v853, %v849
    %v1058 = vpack.c.b16 %v854, %v850
    %v1059 = vpack.c.b16 %v855, %v851
    %v1060 = vpack.c.b16 %v860, %v856
    %v1061 = vpack.c.b16 %v861, %v857
    %v1062 = vpack.c.b16 %v862, %v858
    %v1063 = vpack.c.b16 %v863, %v859
    %v1064 = vpack.c.b16 %v868, %v864
    %v1065 = vpack.c.b16 %v869, %v865
    %v1066 = vpack.c.b16 %v870, %v866
    %v1067 = vpack.c.b16 %v871, %v867
    %vm1264 = vcmask 130048
    %v1266 = vsel %vm1264, %v262, 0
    %1268 = vmatprep.subr.bf16.mxu0 %v873
    %1269 = vmatpush1.bf16.msra.mxu0 %v872
    %1270 = vmatprep.subr.bf16.mxu0 %v877
    %1271 = vmatpush1.bf16.msra.mxu0 %v876
    %1272 = vmatprep.subr.bf16.mxu0 %v881
    %1273 = vmatpush1.bf16.msra.mxu0 %v880
    %1274 = vmatprep.subr.bf16.mxu0 %v885
    %1275 = vmatpush1.bf16.msra.mxu0 %v884
    %1276 = vmatprep.subr.bf16.mxu0 %v889
    %1277 = vmatpush1.bf16.msra.mxu0 %v888
    %1278 = vmatprep.subr.bf16.mxu0 %v893
    %1279 = vmatpush1.bf16.msra.mxu0 %v892
    %1280 = vmatprep.subr.bf16.mxu0 %v897
    %1281 = vmatpush1.bf16.msra.mxu0 %v896
    %1282 = vmatprep.subr.bf16.mxu0 %v901
    %1283 = vmatpush1.bf16.msra.mxu0 %v900
    %1284 = vmatprep.subr.bf16.mxu0 %v905
    %1285 = vmatpush1.bf16.msra.mxu0 %v904
    %1286 = vmatprep.subr.bf16.mxu0 %v909
    %1287 = vmatpush1.bf16.msra.mxu0 %v908
    %1288 = vmatprep.subr.bf16.mxu0 %v913
    %1289 = vmatpush1.bf16.msra.mxu0 %v912
    %1290 = vmatprep.subr.bf16.mxu0 %v917
    %1291 = vmatpush1.bf16.msra.mxu0 %v916
    %1292 = vmatprep.subr.bf16.mxu0 %v921
    %1293 = vmatpush1.bf16.msra.mxu0 %v920
    %1294 = vmatprep.subr.bf16.mxu0 %v925
    %1295 = vmatpush1.bf16.msra.mxu0 %v924
    %1296 = vmatprep.subr.bf16.mxu0 %v929
    %1297 = vmatpush1.bf16.msra.mxu0 %v928
    %1298 = vmatprep.subr.bf16.mxu0 %v933
    %1299 = vmatpush1.bf16.msra.mxu0 %v932
    %1300 = vmatprep.mubr.bf16.mxu0 %v257
    %1301 = vmatmul.mubr.bf16.gmra.mrb[0].mxu0 %v256
    %v1302 = vpop.f32.mrb[0].mxu0
    %v1303 = vadd.f32 %v267, %v1302
    %v1304 = vpop.f32.mrb[0].mxu0
    %v1305 = vadd.f32 %v271, %v1304
    %v1306 = vpop.f32.mrb[0].mxu0
    %v1307 = vpop.f32.mrb[0].mxu0
    %1308 = vdwg.mxu0
    %1309 = vmatprep.subr.bf16.mxu0 %v937
    %1310 = vmatpush1.bf16.msra.mxu0 %v936
    %1311 = vmatprep.subr.bf16.mxu0 %v941
    %1312 = vmatpush1.bf16.msra.mxu0 %v940
    %1313 = vmatprep.subr.bf16.mxu0 %v945
    %1314 = vmatpush1.bf16.msra.mxu0 %v944
    %1315 = vmatprep.subr.bf16.mxu0 %v949
    %1316 = vmatpush1.bf16.msra.mxu0 %v948
    %1317 = vmatprep.subr.bf16.mxu0 %v953
    %1318 = vmatpush1.bf16.msra.mxu0 %v952
    %1319 = vmatprep.subr.bf16.mxu0 %v957
    %1320 = vmatpush1.bf16.msra.mxu0 %v956
    %1321 = vmatprep.subr.bf16.mxu0 %v961
    %1322 = vmatpush1.bf16.msra.mxu0 %v960
    %1323 = vmatprep.subr.bf16.mxu0 %v965
    %1324 = vmatpush1.bf16.msra.mxu0 %v964
    %1325 = vmatprep.subr.bf16.mxu0 %v969
    %1326 = vmatpush1.bf16.msra.mxu0 %v968
    %1327 = vmatprep.subr.bf16.mxu0 %v973
    %1328 = vmatpush1.bf16.msra.mxu0 %v972
    %1329 = vmatprep.subr.bf16.mxu0 %v977
    %1330 = vmatpush1.bf16.msra.mxu0 %v976
    %1331 = vmatprep.subr.bf16.mxu0 %v981
    %1332 = vmatpush1.bf16.msra.mxu0 %v980
    %1333 = vmatprep.subr.bf16.mxu0 %v985
    %1334 = vmatpush1.bf16.msra.mxu0 %v984
    %1335 = vmatprep.subr.bf16.mxu0 %v989
    %1336 = vmatpush1.bf16.msra.mxu0 %v988
    %1337 = vmatprep.subr.bf16.mxu0 %v993
    %1338 = vmatpush1.bf16.msra.mxu0 %v992
    %1339 = vmatprep.subr.bf16.mxu0 %v997
    %1340 = vmatpush1.bf16.msra.mxu0 %v996
    %1341 = vmatprep.mubr.bf16.mxu0 %v259
    %1342 = vmatmul.mubr.bf16.gmra.mrb[0].mxu0 %v258
    %v1343 = vpop.f32.mrb[0].mxu0
    %v1344 = vadd.f32 %v1303, %v1343
    %v1345 = vpop.f32.mrb[0].mxu0
    %v1346 = vadd.f32 %v1305, %v1345
    %v1347 = vpop.f32.mrb[0].mxu0
    %v1348 = vpop.f32.mrb[0].mxu0
    %1349 = vdwg.mxu0
    %1350 = vmatprep.subr.bf16.mxu0 %v1001
    %1351 = vmatpush1.bf16.msra.mxu0 %v1000
    %1352 = vmatprep.subr.bf16.mxu0 %v1005
    %1353 = vmatpush1.bf16.msra.mxu0 %v1004
    %1354 = vmatprep.subr.bf16.mxu0 %v1009
    %1355 = vmatpush1.bf16.msra.mxu0 %v1008
    %1356 = vmatprep.subr.bf16.mxu0 %v1013
    %1357 = vmatpush1.bf16.msra.mxu0 %v1012
    %1358 = vmatprep.subr.bf16.mxu0 %v1017
    %1359 = vmatpush1.bf16.msra.mxu0 %v1016
    %1360 = vmatprep.subr.bf16.mxu0 %v1021
    %1361 = vmatpush1.bf16.msra.mxu0 %v1020
    %1362 = vmatprep.subr.bf16.mxu0 %v1025
    %1363 = vmatpush1.bf16.msra.mxu0 %v1024
    %1364 = vmatprep.subr.bf16.mxu0 %v1029
    %1365 = vmatpush1.bf16.msra.mxu0 %v1028
    %1366 = vmatprep.subr.bf16.mxu0 %v1033
    %1367 = vmatpush1.bf16.msra.mxu0 %v1032
    %1368 = vmatprep.subr.bf16.mxu0 %v1037
    %1369 = vmatpush1.bf16.msra.mxu0 %v1036
    %1370 = vmatprep.subr.bf16.mxu0 %v1041
    %1371 = vmatpush1.bf16.msra.mxu0 %v1040
    %1372 = vmatprep.subr.bf16.mxu0 %v1045
    %1373 = vmatpush1.bf16.msra.mxu0 %v1044
    %1374 = vmatprep.subr.bf16.mxu0 %v1049
    %1375 = vmatpush1.bf16.msra.mxu0 %v1048
    %1376 = vmatprep.subr.bf16.mxu0 %v1053
    %1377 = vmatpush1.bf16.msra.mxu0 %v1052
    %1378 = vmatprep.subr.bf16.mxu0 %v1057
    %1379 = vmatpush1.bf16.msra.mxu0 %v1056
    %1380 = vmatprep.subr.bf16.mxu0 %v1061
    %1381 = vmatpush1.bf16.msra.mxu0 %v1060
    %1382 = vmatprep.mubr.bf16.mxu0 %v261
    %1383 = vmatmul.mubr.bf16.gmra.mrb[0].mxu0 %v260
    %v1384 = vpop.f32.mrb[0].mxu0
    %v1385 = vadd.f32 %v1344, %v1384
    %v1386 = vpop.f32.mrb[0].mxu0
    %v1387 = vadd.f32 %v1346, %v1386
    %v1388 = vpop.f32.mrb[0].mxu0
    %v1389 = vpop.f32.mrb[0].mxu0
    %1390 = vdwg.mxu0
    %1391 = vmatprep.subr.bf16.mxu0 %v1065
    %1392 = vmatpush1.bf16.msra.mxu0 %v1064
    %1393 = vmatprep.subr.bf16.mxu0 0
    %1394 = vmatpush1.bf16.msra.mxu0 0
    %1395 = vmatprep.subr.bf16.mxu0 0
    %1396 = vmatpush1.bf16.msra.mxu0 0
    %1397 = vmatprep.subr.bf16.mxu0 0
    %1398 = vmatpush1.bf16.msra.mxu0 0
    %1399 = vmatprep.subr.bf16.mxu0 0
    %1400 = vmatpush1.bf16.msra.mxu0 0
    %1401 = vmatprep.subr.bf16.mxu0 0
    %1402 = vmatpush1.bf16.msra.mxu0 0
    %1403 = vmatprep.subr.bf16.mxu0 0
    %1404 = vmatpush1.bf16.msra.mxu0 0
    %1405 = vmatprep.subr.bf16.mxu0 0
    %1406 = vmatpush1.bf16.msra.mxu0 0
    %1407 = vmatprep.subr.bf16.mxu0 0
    %1408 = vmatpush1.bf16.msra.mxu0 0
    %1409 = vmatprep.subr.bf16.mxu0 0
    %1410 = vmatpush1.bf16.msra.mxu0 0
    %1411 = vmatprep.subr.bf16.mxu0 0
    %1412 = vmatpush1.bf16.msra.mxu0 0
    %1413 = vmatprep.subr.bf16.mxu0 0
    %1414 = vmatpush1.bf16.msra.mxu0 0
    %1415 = vmatprep.subr.bf16.mxu0 0
    %1416 = vmatpush1.bf16.msra.mxu0 0
    %1417 = vmatprep.subr.bf16.mxu0 0
    %1418 = vmatpush1.bf16.msra.mxu0 0
    %1419 = vmatprep.subr.bf16.mxu0 0
    %1420 = vmatpush1.bf16.msra.mxu0 0
    %1421 = vmatprep.subr.bf16.mxu0 0
    %1422 = vmatpush1.bf16.msra.mxu0 0
    %1423 = vmatprep.mubr.bf16.mxu0 0
    %1424 = vmatmul.mubr.bf16.gmra.mrb[0].mxu0 %v1266
    %v1425 = vpop.f32.mrb[0].mxu0
    %v1426 = vadd.f32 %v1385, %v1425
    %v1427 = vpop.f32.mrb[0].mxu0
    %v1428 = vadd.f32 %v1387, %v1427
    %v1429 = vpop.f32.mrb[0].mxu0
    %v1430 = vpop.f32.mrb[0].mxu0
    %1431 = vdwg.mxu0
    %1432 = vmatprep.subr.bf16.mxu0 %v875
    %1433 = vmatpush1.bf16.msra.mxu0 %v874
    %1434 = vmatprep.subr.bf16.mxu0 %v879
    %1435 = vmatpush1.bf16.msra.mxu0 %v878
    %1436 = vmatprep.subr.bf16.mxu0 %v883
    %1437 = vmatpush1.bf16.msra.mxu0 %v882
    %1438 = vmatprep.subr.bf16.mxu0 %v887
    %1439 = vmatpush1.bf16.msra.mxu0 %v886
    %1440 = vmatprep.subr.bf16.mxu0 %v891
    %1441 = vmatpush1.bf16.msra.mxu0 %v890
    %1442 = vmatprep.subr.bf16.mxu0 %v895
    %1443 = vmatpush1.bf16.msra.mxu0 %v894
    %1444 = vmatprep.subr.bf16.mxu0 %v899
    %1445 = vmatpush1.bf16.msra.mxu0 %v898
    %1446 = vmatprep.subr.bf16.mxu0 %v903
    %1447 = vmatpush1.bf16.msra.mxu0 %v902
    %1448 = vmatprep.subr.bf16.mxu0 %v907
    %1449 = vmatpush1.bf16.msra.mxu0 %v906
    %1450 = vmatprep.subr.bf16.mxu0 %v911
    %1451 = vmatpush1.bf16.msra.mxu0 %v910
    %1452 = vmatprep.subr.bf16.mxu0 %v915
    %1453 = vmatpush1.bf16.msra.mxu0 %v914
    %1454 = vmatprep.subr.bf16.mxu0 %v919
    %1455 = vmatpush1.bf16.msra.mxu0 %v918
    %1456 = vmatprep.subr.bf16.mxu0 %v923
    %1457 = vmatpush1.bf16.msra.mxu0 %v922
    %1458 = vmatprep.subr.bf16.mxu0 %v927
    %1459 = vmatpush1.bf16.msra.mxu0 %v926
    %1460 = vmatprep.subr.bf16.mxu0 %v931
    %1461 = vmatpush1.bf16.msra.mxu0 %v930
    %1462 = vmatprep.subr.bf16.mxu0 %v935
    %1463 = vmatpush1.bf16.msra.mxu0 %v934
    %1464 = vmatprep.mubr.bf16.mxu0 %v257
    %1465 = vmatmul.mubr.bf16.gmra.mrb[0].mxu0 %v256
    %v1466 = vpop.f32.mrb[0].mxu0
    %v1467 = vadd.f32 %v275, %v1466
    %v1468 = vpop.f32.mrb[0].mxu0
    %v1469 = vadd.f32 %v279, %v1468
    %v1470 = vpop.f32.mrb[0].mxu0
    %v1471 = vpop.f32.mrb[0].mxu0
    %1472 = vdwg.mxu0
    %1473 = vmatprep.subr.bf16.mxu0 %v939
    %1474 = vmatpush1.bf16.msra.mxu0 %v938
    %1475 = vmatprep.subr.bf16.mxu0 %v943
    %1476 = vmatpush1.bf16.msra.mxu0 %v942
    %1477 = vmatprep.subr.bf16.mxu0 %v947
    %1478 = vmatpush1.bf16.msra.mxu0 %v946
    %1479 = vmatprep.subr.bf16.mxu0 %v951
    %1480 = vmatpush1.bf16.msra.mxu0 %v950
    %1481 = vmatprep.subr.bf16.mxu0 %v955
    %1482 = vmatpush1.bf16.msra.mxu0 %v954
    %1483 = vmatprep.subr.bf16.mxu0 %v959
    %1484 = vmatpush1.bf16.msra.mxu0 %v958
    %1485 = vmatprep.subr.bf16.mxu0 %v963
    %1486 = vmatpush1.bf16.msra.mxu0 %v962
    %1487 = vmatprep.subr.bf16.mxu0 %v967
    %1488 = vmatpush1.bf16.msra.mxu0 %v966
    %1489 = vmatprep.subr.bf16.mxu0 %v971
    %1490 = vmatpush1.bf16.msra.mxu0 %v970
    %1491 = vmatprep.subr.bf16.mxu0 %v975
    %1492 = vmatpush1.bf16.msra.mxu0 %v974
    %1493 = vmatprep.subr.bf16.mxu0 %v979
    %1494 = vmatpush1.bf16.msra.mxu0 %v978
    %1495 = vmatprep.subr.bf16.mxu0 %v983
    %1496 = vmatpush1.bf16.msra.mxu0 %v982
    %1497 = vmatprep.subr.bf16.mxu0 %v987
    %1498 = vmatpush1.bf16.msra.mxu0 %v986
    %1499 = vmatprep.subr.bf16.mxu0 %v991
    %1500 = vmatpush1.bf16.msra.mxu0 %v990
    %1501 = vmatprep.subr.bf16.mxu0 %v995
    %1502 = vmatpush1.bf16.msra.mxu0 %v994
    %1503 = vmatprep.subr.bf16.mxu0 %v999
    %1504 = vmatpush1.bf16.msra.mxu0 %v998
    %1505 = vmatprep.mubr.bf16.mxu0 %v259
    %1506 = vmatmul.mubr.bf16.gmra.mrb[0].mxu0 %v258
    %v1507 = vpop.f32.mrb[0].mxu0
    %v1508 = vadd.f32 %v1467, %v1507
    %v1509 = vpop.f32.mrb[0].mxu0
    %v1510 = vadd.f32 %v1469, %v1509
    %v1511 = vpop.f32.mrb[0].mxu0
    %v1512 = vpop.f32.mrb[0].mxu0
    %1513 = vdwg.mxu0
    %1514 = vmatprep.subr.bf16.mxu0 %v1003
    %1515 = vmatpush1.bf16.msra.mxu0 %v1002
    %1516 = vmatprep.subr.bf16.mxu0 %v1007
    %1517 = vmatpush1.bf16.msra.mxu0 %v1006
    %1518 = vmatprep.subr.bf16.mxu0 %v1011
    %1519 = vmatpush1.bf16.msra.mxu0 %v1010
    %1520 = vmatprep.subr.bf16.mxu0 %v1015
    %1521 = vmatpush1.bf16.msra.mxu0 %v1014
    %1522 = vmatprep.subr.bf16.mxu0 %v1019
    %1523 = vmatpush1.bf16.msra.mxu0 %v1018
    %1524 = vmatprep.subr.bf16.mxu0 %v1023
    %1525 = vmatpush1.bf16.msra.mxu0 %v1022
    %1526 = vmatprep.subr.bf16.mxu0 %v1027
    %1527 = vmatpush1.bf16.msra.mxu0 %v1026
    %1528 = vmatprep.subr.bf16.mxu0 %v1031
    %1529 = vmatpush1.bf16.msra.mxu0 %v1030
    %1530 = vmatprep.subr.bf16.mxu0 %v1035
    %1531 = vmatpush1.bf16.msra.mxu0 %v1034
    %1532 = vmatprep.subr.bf16.mxu0 %v1039
    %1533 = vmatpush1.bf16.msra.mxu0 %v1038
    %1534 = vmatprep.subr.bf16.mxu0 %v1043
    %1535 = vmatpush1.bf16.msra.mxu0 %v1042
    %1536 = vmatprep.subr.bf16.mxu0 %v1047
    %1537 = vmatpush1.bf16.msra.mxu0 %v1046
    %1538 = vmatprep.subr.bf16.mxu0 %v1051
    %1539 = vmatpush1.bf16.msra.mxu0 %v1050
    %1540 = vmatprep.subr.bf16.mxu0 %v1055
    %1541 = vmatpush1.bf16.msra.mxu0 %v1054
    %1542 = vmatprep.subr.bf16.mxu0 %v1059
    %1543 = vmatpush1.bf16.msra.mxu0 %v1058
    %1544 = vmatprep.subr.bf16.mxu0 %v1063
    %1545 = vmatpush1.bf16.msra.mxu0 %v1062
    %1546 = vmatprep.mubr.bf16.mxu0 %v261
    %1547 = vmatmul.mubr.bf16.gmra.mrb[0].mxu0 %v260
    %v1548 = vpop.f32.mrb[0].mxu0
    %v1549 = vadd.f32 %v1508, %v1548
    %v1550 = vpop.f32.mrb[0].mxu0
    %v1551 = vadd.f32 %v1510, %v1550
    %v1552 = vpop.f32.mrb[0].mxu0
    %v1553 = vpop.f32.mrb[0].mxu0
    %1554 = vdwg.mxu0
    %1555 = vmatprep.subr.bf16.mxu0 %v1067
    %1556 = vmatpush1.bf16.msra.mxu0 %v1066
    %1557 = vmatprep.subr.bf16.mxu0 0
    %1558 = vmatpush1.bf16.msra.mxu0 0
    %1559 = vmatprep.subr.bf16.mxu0 0
    %1560 = vmatpush1.bf16.msra.mxu0 0
    %1561 = vmatprep.subr.bf16.mxu0 0
    %1562 = vmatpush1.bf16.msra.mxu0 0
    %1563 = vmatprep.subr.bf16.mxu0 0
    %1564 = vmatpush1.bf16.msra.mxu0 0
    %1565 = vmatprep.subr.bf16.mxu0 0
    %1566 = vmatpush1.bf16.msra.mxu0 0
    %1567 = vmatprep.subr.bf16.mxu0 0
    %1568 = vmatpush1.bf16.msra.mxu0 0
    %1569 = vmatprep.subr.bf16.mxu0 0
    %1570 = vmatpush1.bf16.msra.mxu0 0
    %1571 = vmatprep.subr.bf16.mxu0 0
    %1572 = vmatpush1.bf16.msra.mxu0 0
    %1573 = vmatprep.subr.bf16.mxu0 0
    %1574 = vmatpush1.bf16.msra.mxu0 0
    %1575 = vmatprep.subr.bf16.mxu0 0
    %1576 = vmatpush1.bf16.msra.mxu0 0
    %1577 = vmatprep.subr.bf16.mxu0 0
    %1578 = vmatpush1.bf16.msra.mxu0 0
    %1579 = vmatprep.subr.bf16.mxu0 0
    %1580 = vmatpush1.bf16.msra.mxu0 0
    %1581 = vmatprep.subr.bf16.mxu0 0
    %1582 = vmatpush1.bf16.msra.mxu0 0
    %1583 = vmatprep.subr.bf16.mxu0 0
    %1584 = vmatpush1.bf16.msra.mxu0 0
    %1585 = vmatprep.subr.bf16.mxu0 0
    %1586 = vmatpush1.bf16.msra.mxu0 0
    %1587 = vmatprep.mubr.bf16.mxu0 0
    %1588 = vmatmul.mubr.bf16.gmra.mrb[0].mxu0 %v1266
    %v1589 = vpop.f32.mrb[0].mxu0
    %v1590 = vadd.f32 %v1549, %v1589
    %v1591 = vpop.f32.mrb[0].mxu0
    %v1592 = vadd.f32 %v1551, %v1591
    %v1593 = vpop.f32.mrb[0].mxu0
    %v1594 = vpop.f32.mrb[0].mxu0
    %1595 = vdwg.mxu0
    %v1596 = vmax.f32 %v1426, 0.0
    %v1597 = vmax.f32 %v1428, 0.0
    %v1598 = vmax.f32 %v1590, 0.0
    %v1599 = vmax.f32 %v1592, 0.0
    %v1600 = vld [vmem:[%s3] sm:$0xf]
    %v1601 = vld [vmem:[%s3 + $0x4] sm:$0xf]
    %v1602 = vld [vmem:[%s3 + $0x8] sm:$0xf]
    %v1603 = vld [vmem:[%s3 + $0xc] sm:$0xf]
    %v1604 = vld [vmem:[%s3 + $0x10] sm:$0xf]
    %v1605 = vld [vmem:[%s3 + $0x14] sm:$0xf]
    %v1606 = vld [vmem:[%s3 + $0x18] sm:$0xf]
    %v1607 = vld [vmem:[%s3 + $0x1c] sm:$0xf]
    %v1608 = vld [vmem:[%s3 + $0x20] sm:$0xf]
    %v1609 = vld [vmem:[%s3 + $0x24] sm:$0xf]
    %v1610 = vld [vmem:[%s3 + $0x28] sm:$0xf]
    %v1611 = vld [vmem:[%s3 + $0x2c] sm:$0xf]
    %v1612 = vld [vmem:[%s3 + $0x30] sm:$0xf]
    %v1613 = vld [vmem:[%s3 + $0x34] sm:$0xf]
    %v1614 = vld [vmem:[%s3 + $0x38] sm:$0xf]
    %v1615 = vld [vmem:[%s3 + $0x3c] sm:$0xf]
    %v1616 = vld [vmem:[%s3 + $0x40] sm:$0xf]
    %v1617 = vld [vmem:[%s3 + $0x44] sm:$0xf]
    %v1618 = vld [vmem:[%s3 + $0x48] sm:$0xf]
    %v1619 = vld [vmem:[%s3 + $0x4c] sm:$0xf]
    %v1620 = vld [vmem:[%s3 + $0x50] sm:$0xf]
    %v1621 = vld [vmem:[%s3 + $0x54] sm:$0xf]
    %v1622 = vld [vmem:[%s3 + $0x58] sm:$0xf]
    %v1623 = vld [vmem:[%s3 + $0x5c] sm:$0xf]
    %v1624 = vld [vmem:[%s3 + $0x60] sm:$0xf]
    %v1625 = vld [vmem:[%s3 + $0x64] sm:$0xf]
    %v1626 = vld [vmem:[%s3 + $0x68] sm:$0xf]
    %v1627 = vld [vmem:[%s3 + $0x6c] sm:$0xf]
    %v1628 = vld [vmem:[%s3 + $0x70] sm:$0xf]
    %v1629 = vld [vmem:[%s3 + $0x74] sm:$0xf]
    %v1630 = vld [vmem:[%s3 + $0x78] sm:$0xf]
    %v1631 = vld [vmem:[%s3 + $0x7c] sm:$0xf]
    %v1632 = vld [vmem:[%s3 + $0x80] sm:$0xf]
    %v1633 = vld [vmem:[%s3 + $0x84] sm:$0xf]
    %v1634 = vld [vmem:[%s3 + $0x88] sm:$0xf]
    %v1635 = vld [vmem:[%s3 + $0x8c] sm:$0xf]
    %v1636 = vld [vmem:[%s3 + $0x90] sm:$0xf]
    %v1637 = vld [vmem:[%s3 + $0x94] sm:$0xf]
    %v1638 = vld [vmem:[%s3 + $0x98] sm:$0xf]
    %v1639 = vld [vmem:[%s3 + $0x9c] sm:$0xf]
    %v1640 = vld [vmem:[%s3 + $0xa0] sm:$0xf]
    %v1641 = vld [vmem:[%s3 + $0xa4] sm:$0xf]
    %v1642 = vld [vmem:[%s3 + $0xa8] sm:$0xf]
    %v1643 = vld [vmem:[%s3 + $0xac] sm:$0xf]
    %v1644 = vld [vmem:[%s3 + $0xb0] sm:$0xf]
    %v1645 = vld [vmem:[%s3 + $0xb4] sm:$0xf]
    %v1646 = vld [vmem:[%s3 + $0xb8] sm:$0xf]
    %v1647 = vld [vmem:[%s3 + $0xbc] sm:$0xf]
    %v1648 = vld [vmem:[%s3 + $0xc0] sm:$0xf]
    %v1649 = vld [vmem:[%s3 + $0xc4] sm:$0xf]
    %v1650 = vld [vmem:[%s3 + $0xc8] sm:$0xf]
    %v1651 = vld [vmem:[%s3 + $0xcc] sm:$0xf]
    %v1652 = vld [vmem:[%s3 + $0xd0] sm:$0xf]
    %v1653 = vld [vmem:[%s3 + $0xd4] sm:$0xf]
    %v1654 = vld [vmem:[%s3 + $0xd8] sm:$0xf]
    %v1655 = vld [vmem:[%s3 + $0xdc] sm:$0xf]
    %v1656 = vld [vmem:[%s3 + $0xe0] sm:$0xf]
    %v1657 = vld [vmem:[%s3 + $0xe4] sm:$0xf]
    %v1658 = vld [vmem:[%s3 + $0xe8] sm:$0xf]
    %v1659 = vld [vmem:[%s3 + $0xec] sm:$0xf]
    %v1660 = vld [vmem:[%s3 + $0xf0] sm:$0xf]
    %v1661 = vld [vmem:[%s3 + $0xf4] sm:$0xf]
    %v1662 = vld [vmem:[%s3 + $0xf8] sm:$0xf]
    %v1663 = vld [vmem:[%s3 + $0xfc] sm:$0xf]
    %v1664 = vld [vmem:[%s4] sm:$0x1]
    %v1665 = vpack.c.bf16 %v1596, %v1596
    %v1666 = vpack.c.bf16 %v1597, %v1597
    %v1667 = vpack.c.bf16 %v1598, %v1598
    %v1668 = vpack.c.bf16 %v1599, %v1599
    %v1670 = vlaneseq
    %v1671 = vshrl.u32 %v1670, 7
    %v1672 = vsub.s32 0, %v1671
    %v1673 = vrot.slane %v1664, %v1672
    %v1739 = vunpack.c.l.b16 %v1600
    %v1740 = vunpack.c.l.b16 %v1601
    %v1741 = vunpack.c.l.b16 %v1602
    %v1742 = vunpack.c.l.b16 %v1603
    %v1743 = vunpack.c.l.b16 %v1604
    %v1744 = vunpack.c.l.b16 %v1605
    %v1745 = vunpack.c.l.b16 %v1606
    %v1746 = vunpack.c.l.b16 %v1607
    %v1747 = vunpack.c.l.b16 %v1608
    %v1748 = vunpack.c.l.b16 %v1609
    %v1749 = vunpack.c.l.b16 %v1610
    %v1750 = vunpack.c.l.b16 %v1611
    %v1751 = vunpack.c.l.b16 %v1612
    %v1752 = vunpack.c.l.b16 %v1613
    %v1753 = vunpack.c.l.b16 %v1614
    %v1754 = vunpack.c.l.b16 %v1615
    %v1755 = vunpack.c.l.b16 %v1616
    %v1756 = vunpack.c.l.b16 %v1617
    %v1757 = vunpack.c.l.b16 %v1618
    %v1758 = vunpack.c.l.b16 %v1619
    %v1759 = vunpack.c.l.b16 %v1620
    %v1760 = vunpack.c.l.b16 %v1621
    %v1761 = vunpack.c.l.b16 %v1622
    %v1762 = vunpack.c.l.b16 %v1623
    %v1763 = vunpack.c.l.b16 %v1624
    %v1764 = vunpack.c.l.b16 %v1625
    %v1765 = vunpack.c.l.b16 %v1626
    %v1766 = vunpack.c.l.b16 %v1627
    %v1767 = vunpack.c.l.b16 %v1628
    %v1768 = vunpack.c.l.b16 %v1629
    %v1769 = vunpack.c.l.b16 %v1630
    %v1770 = vunpack.c.l.b16 %v1631
    %v1771 = vunpack.c.l.b16 %v1632
    %v1772 = vunpack.c.l.b16 %v1633
    %v1773 = vunpack.c.l.b16 %v1634
    %v1774 = vunpack.c.l.b16 %v1635
    %v1775 = vunpack.c.l.b16 %v1636
    %v1776 = vunpack.c.l.b16 %v1637
    %v1777 = vunpack.c.l.b16 %v1638
    %v1778 = vunpack.c.l.b16 %v1639
    %v1779 = vunpack.c.l.b16 %v1640
    %v1780 = vunpack.c.l.b16 %v1641
    %v1781 = vunpack.c.l.b16 %v1642
    %v1782 = vunpack.c.l.b16 %v1643
    %v1783 = vunpack.c.l.b16 %v1644
    %v1784 = vunpack.c.l.b16 %v1645
    %v1785 = vunpack.c.l.b16 %v1646
    %v1786 = vunpack.c.l.b16 %v1647
    %v1787 = vunpack.c.l.b16 %v1648
    %v1788 = vunpack.c.l.b16 %v1649
    %v1789 = vunpack.c.l.b16 %v1650
    %v1790 = vunpack.c.l.b16 %v1651
    %v1791 = vunpack.c.l.b16 %v1652
    %v1792 = vunpack.c.l.b16 %v1653
    %v1793 = vunpack.c.l.b16 %v1654
    %v1794 = vunpack.c.l.b16 %v1655
    %v1795 = vunpack.c.l.b16 %v1656
    %v1796 = vunpack.c.l.b16 %v1657
    %v1797 = vunpack.c.l.b16 %v1658
    %v1798 = vunpack.c.l.b16 %v1659
    %v1799 = vunpack.c.l.b16 %v1660
    %v1800 = vunpack.c.l.b16 %v1661
    %v1801 = vunpack.c.l.b16 %v1662
    %v1802 = vunpack.c.l.b16 %v1663
    %v1803 = vpack.c.b16 %v1740, %v1739
    %v1804 = vpack.c.b16 %v1742, %v1741
    %v1805 = vpack.c.b16 %v1744, %v1743
    %v1806 = vpack.c.b16 %v1746, %v1745
    %v1807 = vpack.c.b16 %v1748, %v1747
    %v1808 = vpack.c.b16 %v1750, %v1749
    %v1809 = vpack.c.b16 %v1752, %v1751
    %v1810 = vpack.c.b16 %v1754, %v1753
    %v1811 = vpack.c.b16 %v1756, %v1755
    %v1812 = vpack.c.b16 %v1758, %v1757
    %v1813 = vpack.c.b16 %v1760, %v1759
    %v1814 = vpack.c.b16 %v1762, %v1761
    %v1815 = vpack.c.b16 %v1764, %v1763
    %v1816 = vpack.c.b16 %v1766, %v1765
    %v1817 = vpack.c.b16 %v1768, %v1767
    %v1818 = vpack.c.b16 %v1770, %v1769
    %v1819 = vpack.c.b16 %v1772, %v1771
    %v1820 = vpack.c.b16 %v1774, %v1773
    %v1821 = vpack.c.b16 %v1776, %v1775
    %v1822 = vpack.c.b16 %v1778, %v1777
    %v1823 = vpack.c.b16 %v1780, %v1779
    %v1824 = vpack.c.b16 %v1782, %v1781
    %v1825 = vpack.c.b16 %v1784, %v1783
    %v1826 = vpack.c.b16 %v1786, %v1785
    %v1827 = vpack.c.b16 %v1788, %v1787
    %v1828 = vpack.c.b16 %v1790, %v1789
    %v1829 = vpack.c.b16 %v1792, %v1791
    %v1830 = vpack.c.b16 %v1794, %v1793
    %v1831 = vpack.c.b16 %v1796, %v1795
    %v1832 = vpack.c.b16 %v1798, %v1797
    %v1833 = vpack.c.b16 %v1800, %v1799
    %v1834 = vpack.c.b16 %v1802, %v1801
    %1867 = vmatprep.subr.bf16.mxu0 0
    %1868 = vmatpush1.bf16.msra.mxu0 %v1803
    %1869 = vmatprep.subr.bf16.mxu0 0
    %1870 = vmatpush1.bf16.msra.mxu0 %v1804
    %1871 = vmatprep.subr.bf16.mxu0 0
    %1872 = vmatpush1.bf16.msra.mxu0 %v1805
    %1873 = vmatprep.subr.bf16.mxu0 0
    %1874 = vmatpush1.bf16.msra.mxu0 %v1806
    %1875 = vmatprep.subr.bf16.mxu0 0
    %1876 = vmatpush1.bf16.msra.mxu0 %v1807
    %1877 = vmatprep.subr.bf16.mxu0 0
    %1878 = vmatpush1.bf16.msra.mxu0 %v1808
    %1879 = vmatprep.subr.bf16.mxu0 0
    %1880 = vmatpush1.bf16.msra.mxu0 %v1809
    %1881 = vmatprep.subr.bf16.mxu0 0
    %1882 = vmatpush1.bf16.msra.mxu0 %v1810
    %1883 = vmatprep.subr.bf16.mxu0 0
    %1884 = vmatpush1.bf16.msra.mxu0 %v1811
    %1885 = vmatprep.subr.bf16.mxu0 0
    %1886 = vmatpush1.bf16.msra.mxu0 %v1812
    %1887 = vmatprep.subr.bf16.mxu0 0
    %1888 = vmatpush1.bf16.msra.mxu0 %v1813
    %1889 = vmatprep.subr.bf16.mxu0 0
    %1890 = vmatpush1.bf16.msra.mxu0 %v1814
    %1891 = vmatprep.subr.bf16.mxu0 0
    %1892 = vmatpush1.bf16.msra.mxu0 %v1815
    %1893 = vmatprep.subr.bf16.mxu0 0
    %1894 = vmatpush1.bf16.msra.mxu0 %v1816
    %1895 = vmatprep.subr.bf16.mxu0 0
    %1896 = vmatpush1.bf16.msra.mxu0 %v1817
    %1897 = vmatprep.subr.bf16.mxu0 0
    %1898 = vmatpush1.bf16.msra.mxu0 %v1818
    %1899 = vmatprep.mubr.bf16.mxu0 %v1666
    %1900 = vmatmul.mubr.bf16.gmra.mrb[0].mxu0 %v1665
    %v1901 = vpop.f32.mrb[0].mxu0
    %v1902 = vadd.f32 %v1673, %v1901
    %v1903 = vpop.f32.mrb[0].mxu0
    %v1904 = vpop.f32.mrb[0].mxu0
    %v1905 = vpop.f32.mrb[0].mxu0
    %1906 = vdwg.mxu0
    %1907 = vmatprep.subr.bf16.mxu0 0
    %1908 = vmatpush1.bf16.msra.mxu0 %v1819
    %1909 = vmatprep.subr.bf16.mxu0 0
    %1910 = vmatpush1.bf16.msra.mxu0 %v1820
    %1911 = vmatprep.subr.bf16.mxu0 0
    %1912 = vmatpush1.bf16.msra.mxu0 %v1821
    %1913 = vmatprep.subr.bf16.mxu0 0
    %1914 = vmatpush1.bf16.msra.mxu0 %v1822
    %1915 = vmatprep.subr.bf16.mxu0 0
    %1916 = vmatpush1.bf16.msra.mxu0 %v1823
    %1917 = vmatprep.subr.bf16.mxu0 0
    %1918 = vmatpush1.bf16.msra.mxu0 %v1824
    %1919 = vmatprep.subr.bf16.mxu0 0
    %1920 = vmatpush1.bf16.msra.mxu0 %v1825
    %1921 = vmatprep.subr.bf16.mxu0 0
    %1922 = vmatpush1.bf16.msra.mxu0 %v1826
    %1923 = vmatprep.subr.bf16.mxu0 0
    %1924 = vmatpush1.bf16.msra.mxu0 %v1827
    %1925 = vmatprep.subr.bf16.mxu0 0
    %1926 = vmatpush1.bf16.msra.mxu0 %v1828
    %1927 = vmatprep.subr.bf16.mxu0 0
    %1928 = vmatpush1.bf16.msra.mxu0 %v1829
    %1929 = vmatprep.subr.bf16.mxu0 0
    %1930 = vmatpush1.bf16.msra.mxu0 %v1830
    %1931 = vmatprep.subr.bf16.mxu0 0
    %1932 = vmatpush1.bf16.msra.mxu0 %v1831
    %1933 = vmatprep.subr.bf16.mxu0 0
    %1934 = vmatpush1.bf16.msra.mxu0 %v1832
    %1935 = vmatprep.subr.bf16.mxu0 0
    %1936 = vmatpush1.bf16.msra.mxu0 %v1833
    %1937 = vmatprep.subr.bf16.mxu0 0
    %1938 = vmatpush1.bf16.msra.mxu0 %v1834
    %1939 = vmatprep.mubr.bf16.mxu0 %v1668
    %1940 = vmatmul.mubr.bf16.gmra.mrb[0].mxu0 %v1667
    %v1941 = vpop.f32.mrb[0].mxu0
    %v1942 = vadd.f32 %v1902, %v1941
    %v1943 = vpop.f32.mrb[0].mxu0
    %v1944 = vpop.f32.mrb[0].mxu0
    %v1945 = vpop.f32.mrb[0].mxu0
    %1946 = vdwg.mxu0
    %v1947 = vmax.f32 %v1942, 0.0
    %v1948 = vld [vmem:[%s5] sm:$0xf]
    %v1949 = vld [vmem:[%s5 + $0x4] sm:$0xf]
    %v1950 = vld [vmem:[%s5 + $0x8] sm:$0xf]
    %v1951 = vld [vmem:[%s5 + $0xc] sm:$0xf]
    %v1952 = vld [vmem:[%s5 + $0x10] sm:$0xf]
    %v1953 = vld [vmem:[%s5 + $0x14] sm:$0xf]
    %v1954 = vld [vmem:[%s5 + $0x18] sm:$0xf]
    %v1955 = vld [vmem:[%s5 + $0x1c] sm:$0xf]
    %v1956 = vld [vmem:[%s5 + $0x20] sm:$0xf]
    %v1957 = vld [vmem:[%s5 + $0x24] sm:$0xf]
    %v1958 = vld [vmem:[%s5 + $0x28] sm:$0xf]
    %v1959 = vld [vmem:[%s5 + $0x2c] sm:$0xf]
    %v1960 = vld [vmem:[%s5 + $0x30] sm:$0xf]
    %v1961 = vld [vmem:[%s5 + $0x34] sm:$0xf]
    %v1962 = vld [vmem:[%s5 + $0x38] sm:$0xf]
    %v1963 = vld [vmem:[%s5 + $0x3c] sm:$0xf]
    %v1964 = vld [vmem:[%s6] sm:$0x1]
    %v1965 = vpack.c.bf16 %v1947, %v1947
    %v1967 = vlaneseq
    %v1968 = vshrl.u32 %v1967, 7
    %v1969 = vsub.s32 0, %v1968
    %v1970 = vrot.slane %v1964, %v1969
    %v1988 = vunpack.c.l.b16 %v1948
    %v1989 = vunpack.c.l.b16 %v1949
    %v1990 = vunpack.c.l.b16 %v1950
    %v1991 = vunpack.c.l.b16 %v1951
    %v1992 = vunpack.c.l.b16 %v1952
    %v1993 = vunpack.c.l.b16 %v1953
    %v1994 = vunpack.c.l.b16 %v1954
    %v1995 = vunpack.c.l.b16 %v1955
    %v1996 = vunpack.c.l.b16 %v1956
    %v1997 = vunpack.c.l.b16 %v1957
    %v1998 = vunpack.c.l.b16 %v1958
    %v1999 = vunpack.c.l.b16 %v1959
    %v2000 = vunpack.c.l.b16 %v1960
    %v2001 = vunpack.c.l.b16 %v1961
    %v2002 = vunpack.c.l.b16 %v1962
    %v2003 = vunpack.c.l.b16 %v1963
    %v2004 = vpack.c.b16 %v1989, %v1988
    %v2005 = vpack.c.b16 %v1991, %v1990
    %v2006 = vpack.c.b16 %v1993, %v1992
    %v2007 = vpack.c.b16 %v1995, %v1994
    %v2008 = vpack.c.b16 %v1997, %v1996
    %v2009 = vpack.c.b16 %v1999, %v1998
    %v2010 = vpack.c.b16 %v2001, %v2000
    %v2011 = vpack.c.b16 %v2003, %v2002
    %2020 = vmatprep.subr.bf16.mxu0 0
    %2021 = vmatpush1.bf16.msra.mxu0 %v2004
    %2022 = vmatprep.subr.bf16.mxu0 0
    %2023 = vmatpush1.bf16.msra.mxu0 %v2005
    %2024 = vmatprep.subr.bf16.mxu0 0
    %2025 = vmatpush1.bf16.msra.mxu0 %v2006
    %2026 = vmatprep.subr.bf16.mxu0 0
    %2027 = vmatpush1.bf16.msra.mxu0 %v2007
    %2028 = vmatprep.subr.bf16.mxu0 0
    %2029 = vmatpush1.bf16.msra.mxu0 %v2008
    %2030 = vmatprep.subr.bf16.mxu0 0
    %2031 = vmatpush1.bf16.msra.mxu0 %v2009
    %2032 = vmatprep.subr.bf16.mxu0 0
    %2033 = vmatpush1.bf16.msra.mxu0 %v2010
    %2034 = vmatprep.subr.bf16.mxu0 0
    %2035 = vmatpush1.bf16.msra.mxu0 %v2011
    %2036 = vmatprep.subr.bf16.mxu0 0
    %2037 = vmatpush1.bf16.msra.mxu0 0
    %2038 = vmatprep.subr.bf16.mxu0 0
    %2039 = vmatpush1.bf16.msra.mxu0 0
    %2040 = vmatprep.subr.bf16.mxu0 0
    %2041 = vmatpush1.bf16.msra.mxu0 0
    %2042 = vmatprep.subr.bf16.mxu0 0
    %2043 = vmatpush1.bf16.msra.mxu0 0
    %2044 = vmatprep.subr.bf16.mxu0 0
    %2045 = vmatpush1.bf16.msra.mxu0 0
    %2046 = vmatprep.subr.bf16.mxu0 0
    %2047 = vmatpush1.bf16.msra.mxu0 0
    %2048 = vmatprep.subr.bf16.mxu0 0
    %2049 = vmatpush1.bf16.msra.mxu0 0
    %2050 = vmatprep.subr.bf16.mxu0 0
    %2051 = vmatpush1.bf16.msra.mxu0 0
    %2052 = vmatprep.mubr.bf16.mxu0 0
    %2053 = vmatmul.mubr.bf16.gmra.mrb[0].mxu0 %v1965
    %v2054 = vpop.f32.mrb[0].mxu0
    %v2055 = vadd.f32 %v1970, %v2054
    %v2056 = vpop.f32.mrb[0].mxu0
    %v2057 = vpop.f32.mrb[0].mxu0
    %v2058 = vpop.f32.mrb[0].mxu0
    %2059 = vdwg.mxu0
    %v2060 = vmax.f32 %v2055, 0.0
    %v2061 = vld [vmem:[%s7] sm:$0xf]
    %v2062 = vld [vmem:[%s7 + $0x4] sm:$0xf]
    %v2063 = vld [vmem:[%s7 + $0x8] sm:$0xf]
    %v2064 = vld [vmem:[%s7 + $0xc] sm:$0xf]
    %v2065 = vld [vmem:[%s7 + $0x10] sm:$0xf]
    %v2066 = vld [vmem:[%s7 + $0x14] sm:$0xf]
    %v2067 = vld [vmem:[%s7 + $0x18] sm:$0xf]
    %v2068 = vld [vmem:[%s7 + $0x1c] sm:$0xf]
    %v2069 = vld [vmem:[%s7 + $0x20] sm:$0xf]
    %v2070 = vld [vmem:[%s7 + $0x24] sm:$0xf]
    %v2071 = vld [vmem:[%s7 + $0x28] sm:$0xf]
    %v2072 = vld [vmem:[%s7 + $0x2c] sm:$0xf]
    %v2073 = vld [vmem:[%s7 + $0x30] sm:$0xf]
    %v2074 = vld [vmem:[%s7 + $0x34] sm:$0xf]
    %v2075 = vld [vmem:[%s7 + $0x38] sm:$0xf]
    %v2076 = vld [vmem:[%s7 + $0x3c] sm:$0xf]
    %v2077 = vld [vmem:[%s8] sm:$0x1]
    %v2078 = vpack.c.bf16 %v2060, %v2060
    %v2080 = vlaneseq
    %v2081 = vshrl.u32 %v2080, 7
    %v2082 = vsub.s32 0, %v2081
    %v2083 = vrot.slane %v2077, %v2082
    %v2101 = vunpack.c.l.b16 %v2061
    %v2102 = vunpack.c.l.b16 %v2062
    %v2103 = vunpack.c.l.b16 %v2063
    %v2104 = vunpack.c.l.b16 %v2064
    %v2105 = vunpack.c.l.b16 %v2065
    %v2106 = vunpack.c.l.b16 %v2066
    %v2107 = vunpack.c.l.b16 %v2067
    %v2108 = vunpack.c.l.b16 %v2068
    %v2109 = vunpack.c.l.b16 %v2069
    %v2110 = vunpack.c.l.b16 %v2070
    %v2111 = vunpack.c.l.b16 %v2071
    %v2112 = vunpack.c.l.b16 %v2072
    %v2113 = vunpack.c.l.b16 %v2073
    %v2114 = vunpack.c.l.b16 %v2074
    %v2115 = vunpack.c.l.b16 %v2075
    %v2116 = vunpack.c.l.b16 %v2076
    %v2117 = vpack.c.b16 %v2102, %v2101
    %v2118 = vpack.c.b16 %v2104, %v2103
    %v2119 = vpack.c.b16 %v2106, %v2105
    %v2120 = vpack.c.b16 %v2108, %v2107
    %v2121 = vpack.c.b16 %v2110, %v2109
    %v2122 = vpack.c.b16 %v2112, %v2111
    %v2123 = vpack.c.b16 %v2114, %v2113
    %v2124 = vpack.c.b16 %v2116, %v2115
    %2133 = vmatprep.subr.bf16.mxu0 0
    %2134 = vmatpush1.bf16.msra.mxu0 %v2117
    %2135 = vmatprep.subr.bf16.mxu0 0
    %2136 = vmatpush1.bf16.msra.mxu0 %v2118
    %2137 = vmatprep.subr.bf16.mxu0 0
    %2138 = vmatpush1.bf16.msra.mxu0 %v2119
    %2139 = vmatprep.subr.bf16.mxu0 0
    %2140 = vmatpush1.bf16.msra.mxu0 %v2120
    %2141 = vmatprep.subr.bf16.mxu0 0
    %2142 = vmatpush1.bf16.msra.mxu0 %v2121
    %2143 = vmatprep.subr.bf16.mxu0 0
    %2144 = vmatpush1.bf16.msra.mxu0 %v2122
    %2145 = vmatprep.subr.bf16.mxu0 0
    %2146 = vmatpush1.bf16.msra.mxu0 %v2123
    %2147 = vmatprep.subr.bf16.mxu0 0
    %2148 = vmatpush1.bf16.msra.mxu0 %v2124
    %2149 = vmatprep.subr.bf16.mxu0 0
    %2150 = vmatpush1.bf16.msra.mxu0 0
    %2151 = vmatprep.subr.bf16.mxu0 0
    %2152 = vmatpush1.bf16.msra.mxu0 0
    %2153 = vmatprep.subr.bf16.mxu0 0
    %2154 = vmatpush1.bf16.msra.mxu0 0
    %2155 = vmatprep.subr.bf16.mxu0 0
    %2156 = vmatpush1.bf16.msra.mxu0 0
    %2157 = vmatprep.subr.bf16.mxu0 0
    %2158 = vmatpush1.bf16.msra.mxu0 0
    %2159 = vmatprep.subr.bf16.mxu0 0
    %2160 = vmatpush1.bf16.msra.mxu0 0
    %2161 = vmatprep.subr.bf16.mxu0 0
    %2162 = vmatpush1.bf16.msra.mxu0 0
    %2163 = vmatprep.subr.bf16.mxu0 0
    %2164 = vmatpush1.bf16.msra.mxu0 0
    %2165 = vmatprep.mubr.bf16.mxu0 0
    %2166 = vmatmul.mubr.bf16.gmra.mrb[0].mxu0 %v2078
    %v2167 = vpop.f32.mrb[0].mxu0
    %v2168 = vadd.f32 %v2083, %v2167
    %v2169 = vpop.f32.mrb[0].mxu0
    %v2170 = vpop.f32.mrb[0].mxu0
    %v2171 = vpop.f32.mrb[0].mxu0
    %2172 = vdwg.mxu0
    %v2173 = vmax.f32 %v2168, 0.0
    %v2174 = vld [vmem:[%s9] sm:$0xf]
    %v2175 = vld [vmem:[%s9 + $0x4] sm:$0xf]
    %v2176 = vld [vmem:[%s9 + $0x8] sm:$0xf]
    %v2177 = vld [vmem:[%s9 + $0xc] sm:$0xf]
    %v2178 = vld [vmem:[%s9 + $0x10] sm:$0xf]
    %v2179 = vld [vmem:[%s9 + $0x14] sm:$0xf]
    %v2180 = vld [vmem:[%s9 + $0x18] sm:$0xf]
    %v2181 = vld [vmem:[%s9 + $0x1c] sm:$0xf]
    %v2182 = vld [vmem:[%s9 + $0x20] sm:$0xf]
    %v2183 = vld [vmem:[%s9 + $0x24] sm:$0xf]
    %v2184 = vld [vmem:[%s9 + $0x28] sm:$0xf]
    %v2185 = vld [vmem:[%s9 + $0x2c] sm:$0xf]
    %v2186 = vld [vmem:[%s9 + $0x30] sm:$0xf]
    %v2187 = vld [vmem:[%s9 + $0x34] sm:$0xf]
    %v2188 = vld [vmem:[%s9 + $0x38] sm:$0xf]
    %v2189 = vld [vmem:[%s9 + $0x3c] sm:$0xf]
    %v2190 = vld [vmem:[%s10] sm:$0x1]
    %v2191 = vpack.c.bf16 %v2173, %v2173
    %v2193 = vlaneseq
    %v2194 = vshrl.u32 %v2193, 7
    %v2195 = vsub.s32 0, %v2194
    %v2196 = vrot.slane %v2190, %v2195
    %v2214 = vunpack.c.l.b16 %v2174
    %v2215 = vunpack.c.l.b16 %v2175
    %v2216 = vunpack.c.l.b16 %v2176
    %v2217 = vunpack.c.l.b16 %v2177
    %v2218 = vunpack.c.l.b16 %v2178
    %v2219 = vunpack.c.l.b16 %v2179
    %v2220 = vunpack.c.l.b16 %v2180
    %v2221 = vunpack.c.l.b16 %v2181
    %v2222 = vunpack.c.l.b16 %v2182
    %v2223 = vunpack.c.l.b16 %v2183
    %v2224 = vunpack.c.l.b16 %v2184
    %v2225 = vunpack.c.l.b16 %v2185
    %v2226 = vunpack.c.l.b16 %v2186
    %v2227 = vunpack.c.l.b16 %v2187
    %v2228 = vunpack.c.l.b16 %v2188
    %v2229 = vunpack.c.l.b16 %v2189
    %v2230 = vpack.c.b16 %v2215, %v2214
    %v2231 = vpack.c.b16 %v2217, %v2216
    %v2232 = vpack.c.b16 %v2219, %v2218
    %v2233 = vpack.c.b16 %v2221, %v2220
    %v2234 = vpack.c.b16 %v2223, %v2222
    %v2235 = vpack.c.b16 %v2225, %v2224
    %v2236 = vpack.c.b16 %v2227, %v2226
    %v2237 = vpack.c.b16 %v2229, %v2228
    %2246 = vmatprep.subr.bf16.mxu0 0
    %2247 = vmatpush1.bf16.msra.mxu0 %v2230
    %2248 = vmatprep.subr.bf16.mxu0 0
    %2249 = vmatpush1.bf16.msra.mxu0 %v2231
    %2250 = vmatprep.subr.bf16.mxu0 0
    %2251 = vmatpush1.bf16.msra.mxu0 %v2232
    %2252 = vmatprep.subr.bf16.mxu0 0
    %2253 = vmatpush1.bf16.msra.mxu0 %v2233
    %2254 = vmatprep.subr.bf16.mxu0 0
    %2255 = vmatpush1.bf16.msra.mxu0 %v2234
    %2256 = vmatprep.subr.bf16.mxu0 0
    %2257 = vmatpush1.bf16.msra.mxu0 %v2235
    %2258 = vmatprep.subr.bf16.mxu0 0
    %2259 = vmatpush1.bf16.msra.mxu0 %v2236
    %2260 = vmatprep.subr.bf16.mxu0 0
    %2261 = vmatpush1.bf16.msra.mxu0 %v2237
    %2262 = vmatprep.subr.bf16.mxu0 0
    %2263 = vmatpush1.bf16.msra.mxu0 0
    %2264 = vmatprep.subr.bf16.mxu0 0
    %2265 = vmatpush1.bf16.msra.mxu0 0
    %2266 = vmatprep.subr.bf16.mxu0 0
    %2267 = vmatpush1.bf16.msra.mxu0 0
    %2268 = vmatprep.subr.bf16.mxu0 0
    %2269 = vmatpush1.bf16.msra.mxu0 0
    %2270 = vmatprep.subr.bf16.mxu0 0
    %2271 = vmatpush1.bf16.msra.mxu0 0
    %2272 = vmatprep.subr.bf16.mxu0 0
    %2273 = vmatpush1.bf16.msra.mxu0 0
    %2274 = vmatprep.subr.bf16.mxu0 0
    %2275 = vmatpush1.bf16.msra.mxu0 0
    %2276 = vmatprep.subr.bf16.mxu0 0
    %2277 = vmatpush1.bf16.msra.mxu0 0
    %2278 = vmatprep.mubr.bf16.mxu0 0
    %2279 = vmatmul.mubr.bf16.gmra.mrb[0].mxu0 %v2191
    %v2280 = vpop.f32.mrb[0].mxu0
    %v2281 = vadd.f32 %v2196, %v2280
    %v2282 = vpop.f32.mrb[0].mxu0
    %v2283 = vpop.f32.mrb[0].mxu0
    %v2284 = vpop.f32.mrb[0].mxu0
    %2285 = vdwg.mxu0
    %v2286 = vmax.f32 %v2281, 0.0
    %v2287 = vld [vmem:[%s11] sm:$0xff]
    %v2288 = vld [vmem:[%s11 + $0x8] sm:$0xff]
    %v2289 = vld [vmem:[%s11 + $0x10] sm:$0xff]
    %v2290 = vld [vmem:[%s11 + $0x18] sm:$0xff]
    %v2291 = vld [vmem:[%s11 + $0x20] sm:$0xff]
    %v2292 = vld [vmem:[%s11 + $0x28] sm:$0xff]
    %v2293 = vld [vmem:[%s11 + $0x30] sm:$0xff]
    %v2294 = vld [vmem:[%s11 + $0x38] sm:$0xff]
    %v2295 = vld [vmem:[%s11 + $0x40] sm:$0xff]
    %v2296 = vld [vmem:[%s11 + $0x48] sm:$0xff]
    %v2297 = vld [vmem:[%s11 + $0x50] sm:$0xff]
    %v2298 = vld [vmem:[%s11 + $0x58] sm:$0xff]
    %v2299 = vld [vmem:[%s11 + $0x60] sm:$0xff]
    %v2300 = vld [vmem:[%s11 + $0x68] sm:$0xff]
    %v2301 = vld [vmem:[%s11 + $0x70] sm:$0xff]
    %v2302 = vld [vmem:[%s11 + $0x78] sm:$0xff]
    %v2303 = vld [vmem:[%s11 + $0x80] sm:$0xff]
    %v2304 = vld [vmem:[%s11 + $0x88] sm:$0xff]
    %v2305 = vld [vmem:[%s11 + $0x90] sm:$0xff]
    %v2306 = vld [vmem:[%s11 + $0x98] sm:$0xff]
    %v2307 = vld [vmem:[%s11 + $0xa0] sm:$0xff]
    %v2308 = vld [vmem:[%s11 + $0xa8] sm:$0xff]
    %v2309 = vld [vmem:[%s11 + $0xb0] sm:$0xff]
    %v2310 = vld [vmem:[%s11 + $0xb8] sm:$0xff]
    %v2311 = vld [vmem:[%s11 + $0xc0] sm:$0xff]
    %v2312 = vld [vmem:[%s11 + $0xc8] sm:$0xff]
    %v2313 = vld [vmem:[%s11 + $0xd0] sm:$0xff]
    %v2314 = vld [vmem:[%s11 + $0xd8] sm:$0xff]
    %v2315 = vld [vmem:[%s11 + $0xe0] sm:$0xff]
    %v2316 = vld [vmem:[%s11 + $0xe8] sm:$0xff]
    %v2317 = vld [vmem:[%s11 + $0xf0] sm:$0xff]
    %v2318 = vld [vmem:[%s11 + $0xf8] sm:$0xff]
    %v2319 = vld [vmem:[%s12] sm:$0xf]
    %v2320 = vpack.c.bf16 %v2286, %v2286
    %v2322 = vlaneseq
    %v2323 = vshrl.u32 %v2322, 7
    %v2324 = vsub.s32 0, %v2323
    %v2325 = vrot.slane %v2319, %v2324
    %v2326 = vlaneseq
    %v2327 = vshrl.u32 %v2326, 7
    %v2328 = vsub.s32 1, %v2327
    %v2329 = vrot.slane %v2319, %v2328
    %v2330 = vlaneseq
    %v2331 = vshrl.u32 %v2330, 7
    %v2332 = vsub.s32 2, %v2331
    %v2333 = vrot.slane %v2319, %v2332
    %v2334 = vlaneseq
    %v2335 = vshrl.u32 %v2334, 7
    %v2336 = vsub.s32 3, %v2335
    %v2337 = vrot.slane %v2319, %v2336
    %v2374 = vunpack.c.l.b16 %v2287
    %v2375 = vunpack.c.h.b16 %v2287
    %v2376 = vunpack.c.l.b16 %v2288
    %v2377 = vunpack.c.h.b16 %v2288
    %v2378 = vunpack.c.l.b16 %v2289
    %v2379 = vunpack.c.h.b16 %v2289
    %v2380 = vunpack.c.l.b16 %v2290
    %v2381 = vunpack.c.h.b16 %v2290
    %v2382 = vunpack.c.l.b16 %v2291
    %v2383 = vunpack.c.h.b16 %v2291
    %v2384 = vunpack.c.l.b16 %v2292
    %v2385 = vunpack.c.h.b16 %v2292
    %v2386 = vunpack.c.l.b16 %v2293
    %v2387 = vunpack.c.h.b16 %v2293
    %v2388 = vunpack.c.l.b16 %v2294
    %v2389 = vunpack.c.h.b16 %v2294
    %v2390 = vunpack.c.l.b16 %v2295
    %v2391 = vunpack.c.h.b16 %v2295
    %v2392 = vunpack.c.l.b16 %v2296
    %v2393 = vunpack.c.h.b16 %v2296
    %v2394 = vunpack.c.l.b16 %v2297
    %v2395 = vunpack.c.h.b16 %v2297
    %v2396 = vunpack.c.l.b16 %v2298
    %v2397 = vunpack.c.h.b16 %v2298
    %v2398 = vunpack.c.l.b16 %v2299
    %v2399 = vunpack.c.h.b16 %v2299
    %v2400 = vunpack.c.l.b16 %v2300
    %v2401 = vunpack.c.h.b16 %v2300
    %v2402 = vunpack.c.l.b16 %v2301
    %v2403 = vunpack.c.h.b16 %v2301
    %v2404 = vunpack.c.l.b16 %v2302
    %v2405 = vunpack.c.h.b16 %v2302
    %v2406 = vunpack.c.l.b16 %v2303
    %v2407 = vunpack.c.h.b16 %v2303
    %v2408 = vunpack.c.l.b16 %v2304
    %v2409 = vunpack.c.h.b16 %v2304
    %v2410 = vunpack.c.l.b16 %v2305
    %v2411 = vunpack.c.h.b16 %v2305
    %v2412 = vunpack.c.l.b16 %v2306
    %v2413 = vunpack.c.h.b16 %v2306
    %v2414 = vunpack.c.l.b16 %v2307
    %v2415 = vunpack.c.h.b16 %v2307
    %v2416 = vunpack.c.l.b16 %v2308
    %v2417 = vunpack.c.h.b16 %v2308
    %v2418 = vunpack.c.l.b16 %v2309
    %v2419 = vunpack.c.h.b16 %v2309
    %v2420 = vunpack.c.l.b16 %v2310
    %v2421 = vunpack.c.h.b16 %v2310
    %v2422 = vunpack.c.l.b16 %v2311
    %v2423 = vunpack.c.h.b16 %v2311
    %v2424 = vunpack.c.l.b16 %v2312
    %v2425 = vunpack.c.h.b16 %v2312
    %v2426 = vunpack.c.l.b16 %v2313
    %v2427 = vunpack.c.h.b16 %v2313
    %v2428 = vunpack.c.l.b16 %v2314
    %v2429 = vunpack.c.h.b16 %v2314
    %v2430 = vunpack.c.l.b16 %v2315
    %v2431 = vunpack.c.h.b16 %v2315
    %v2432 = vunpack.c.l.b16 %v2316
    %v2433 = vunpack.c.h.b16 %v2316
    %v2434 = vunpack.c.l.b16 %v2317
    %v2435 = vunpack.c.h.b16 %v2317
    %v2436 = vunpack.c.l.b16 %v2318
    %v2437 = vunpack.c.h.b16 %v2318
    %v2438 = vpack.c.b16 %v2378, %v2374
    %v2439 = vpack.c.b16 %v2379, %v2375
    %v2440 = vpack.c.b16 %v2380, %v2376
    %v2441 = vpack.c.b16 %v2381, %v2377
    %v2442 = vpack.c.b16 %v2386, %v2382
    %v2443 = vpack.c.b16 %v2387, %v2383
    %v2444 = vpack.c.b16 %v2388, %v2384
    %v2445 = vpack.c.b16 %v2389, %v2385
    %v2446 = vpack.c.b16 %v2394, %v2390
    %v2447 = vpack.c.b16 %v2395, %v2391
    %v2448 = vpack.c.b16 %v2396, %v2392
    %v2449 = vpack.c.b16 %v2397, %v2393
    %v2450 = vpack.c.b16 %v2402, %v2398
    %v2451 = vpack.c.b16 %v2403, %v2399
    %v2452 = vpack.c.b16 %v2404, %v2400
    %v2453 = vpack.c.b16 %v2405, %v2401
    %v2454 = vpack.c.b16 %v2410, %v2406
    %v2455 = vpack.c.b16 %v2411, %v2407
    %v2456 = vpack.c.b16 %v2412, %v2408
    %v2457 = vpack.c.b16 %v2413, %v2409
    %v2458 = vpack.c.b16 %v2418, %v2414
    %v2459 = vpack.c.b16 %v2419, %v2415
    %v2460 = vpack.c.b16 %v2420, %v2416
    %v2461 = vpack.c.b16 %v2421, %v2417
    %v2462 = vpack.c.b16 %v2426, %v2422
    %v2463 = vpack.c.b16 %v2427, %v2423
    %v2464 = vpack.c.b16 %v2428, %v2424
    %v2465 = vpack.c.b16 %v2429, %v2425
    %v2466 = vpack.c.b16 %v2434, %v2430
    %v2467 = vpack.c.b16 %v2435, %v2431
    %v2468 = vpack.c.b16 %v2436, %v2432
    %v2469 = vpack.c.b16 %v2437, %v2433
    %2502 = vmatprep.subr.bf16.mxu0 %v2439
    %2503 = vmatpush1.bf16.msra.mxu0 %v2438
    %2504 = vmatprep.subr.bf16.mxu0 %v2443
    %2505 = vmatpush1.bf16.msra.mxu0 %v2442
    %2506 = vmatprep.subr.bf16.mxu0 %v2447
    %2507 = vmatpush1.bf16.msra.mxu0 %v2446
    %2508 = vmatprep.subr.bf16.mxu0 %v2451
    %2509 = vmatpush1.bf16.msra.mxu0 %v2450
    %2510 = vmatprep.subr.bf16.mxu0 %v2455
    %2511 = vmatpush1.bf16.msra.mxu0 %v2454
    %2512 = vmatprep.subr.bf16.mxu0 %v2459
    %2513 = vmatpush1.bf16.msra.mxu0 %v2458
    %2514 = vmatprep.subr.bf16.mxu0 %v2463
    %2515 = vmatpush1.bf16.msra.mxu0 %v2462
    %2516 = vmatprep.subr.bf16.mxu0 %v2467
    %2517 = vmatpush1.bf16.msra.mxu0 %v2466
    %2518 = vmatprep.subr.bf16.mxu0 0
    %2519 = vmatpush1.bf16.msra.mxu0 0
    %2520 = vmatprep.subr.bf16.mxu0 0
    %2521 = vmatpush1.bf16.msra.mxu0 0
    %2522 = vmatprep.subr.bf16.mxu0 0
    %2523 = vmatpush1.bf16.msra.mxu0 0
    %2524 = vmatprep.subr.bf16.mxu0 0
    %2525 = vmatpush1.bf16.msra.mxu0 0
    %2526 = vmatprep.subr.bf16.mxu0 0
    %2527 = vmatpush1.bf16.msra.mxu0 0
    %2528 = vmatprep.subr.bf16.mxu0 0
    %2529 = vmatpush1.bf16.msra.mxu0 0
    %2530 = vmatprep.subr.bf16.mxu0 0
    %2531 = vmatpush1.bf16.msra.mxu0 0
    %2532 = vmatprep.subr.bf16.mxu0 0
    %2533 = vmatpush1.bf16.msra.mxu0 0
    %2534 = vmatprep.mubr.bf16.mxu0 0
    %2535 = vmatmul.mubr.bf16.gmra.mrb[0].mxu0 %v2320
    %v2536 = vpop.f32.mrb[0].mxu0
    %v2537 = vadd.f32 %v2325, %v2536
    %v2538 = vpop.f32.mrb[0].mxu0
    %v2539 = vadd.f32 %v2329, %v2538
    %v2540 = vpop.f32.mrb[0].mxu0
    %v2541 = vpop.f32.mrb[0].mxu0
    %2542 = vdwg.mxu0
    %2543 = vmatprep.subr.bf16.mxu0 %v2441
    %2544 = vmatpush1.bf16.msra.mxu0 %v2440
    %2545 = vmatprep.subr.bf16.mxu0 %v2445
    %2546 = vmatpush1.bf16.msra.mxu0 %v2444
    %2547 = vmatprep.subr.bf16.mxu0 %v2449
    %2548 = vmatpush1.bf16.msra.mxu0 %v2448
    %2549 = vmatprep.subr.bf16.mxu0 %v2453
    %2550 = vmatpush1.bf16.msra.mxu0 %v2452
    %2551 = vmatprep.subr.bf16.mxu0 %v2457
    %2552 = vmatpush1.bf16.msra.mxu0 %v2456
    %2553 = vmatprep.subr.bf16.mxu0 %v2461
    %2554 = vmatpush1.bf16.msra.mxu0 %v2460
    %2555 = vmatprep.subr.bf16.mxu0 %v2465
    %2556 = vmatpush1.bf16.msra.mxu0 %v2464
    %2557 = vmatprep.subr.bf16.mxu0 %v2469
    %2558 = vmatpush1.bf16.msra.mxu0 %v2468
    %2559 = vmatprep.subr.bf16.mxu0 0
    %2560 = vmatpush1.bf16.msra.mxu0 0
    %2561 = vmatprep.subr.bf16.mxu0 0
    %2562 = vmatpush1.bf16.msra.mxu0 0
    %2563 = vmatprep.subr.bf16.mxu0 0
    %2564 = vmatpush1.bf16.msra.mxu0 0
    %2565 = vmatprep.subr.bf16.mxu0 0
    %2566 = vmatpush1.bf16.msra.mxu0 0
    %2567 = vmatprep.subr.bf16.mxu0 0
    %2568 = vmatpush1.bf16.msra.mxu0 0
    %2569 = vmatprep.subr.bf16.mxu0 0
    %2570 = vmatpush1.bf16.msra.mxu0 0
    %2571 = vmatprep.subr.bf16.mxu0 0
    %2572 = vmatpush1.bf16.msra.mxu0 0
    %2573 = vmatprep.subr.bf16.mxu0 0
    %2574 = vmatpush1.bf16.msra.mxu0 0
    %2575 = vmatprep.mubr.bf16.mxu0 0
    %2576 = vmatmul.mubr.bf16.gmra.mrb[0].mxu0 %v2320
    %v2577 = vpop.f32.mrb[0].mxu0
    %v2578 = vadd.f32 %v2333, %v2577
    %v2579 = vpop.f32.mrb[0].mxu0
    %v2580 = vadd.f32 %v2337, %v2579
    %v2581 = vpop.f32.mrb[0].mxu0
    %v2582 = vpop.f32.mrb[0].mxu0
    %2583 = vdwg.mxu0
    %v2584 = vmax.f32 %v2537, 0.0
    %v2585 = vmax.f32 %v2539, 0.0
    %v2586 = vmax.f32 %v2578, 0.0
    %v2587 = vmax.f32 %v2580, 0.0
    %v2588 = vld [vmem:[%s13] sm:$0xff]
    %v2589 = vld [vmem:[%s13 + $0x8] sm:$0xff]
    %v2590 = vld [vmem:[%s13 + $0x10] sm:$0xff]
    %v2591 = vld [vmem:[%s13 + $0x18] sm:$0xf]
    %v2592 = vld [vmem:[%s13 + $0x1c] sm:$0xff]
    %v2593 = vld [vmem:[%s13 + $0x24] sm:$0xff]
    %v2594 = vld [vmem:[%s13 + $0x2c] sm:$0xff]
    %v2595 = vld [vmem:[%s13 + $0x34] sm:$0xf]
    %v2596 = vld [vmem:[%s13 + $0x38] sm:$0xff]
    %v2597 = vld [vmem:[%s13 + $0x40] sm:$0xff]
    %v2598 = vld [vmem:[%s13 + $0x48] sm:$0xff]
    %v2599 = vld [vmem:[%s13 + $0x50] sm:$0xf]
    %v2600 = vld [vmem:[%s13 + $0x54] sm:$0xff]
    %v2601 = vld [vmem:[%s13 + $0x5c] sm:$0xff]
    %v2602 = vld [vmem:[%s13 + $0x64] sm:$0xff]
    %v2603 = vld [vmem:[%s13 + $0x6c] sm:$0xf]
    %v2604 = vld [vmem:[%s13 + $0x70] sm:$0xff]
    %v2605 = vld [vmem:[%s13 + $0x78] sm:$0xff]
    %v2606 = vld [vmem:[%s13 + $0x80] sm:$0xff]
    %v2607 = vld [vmem:[%s13 + $0x88] sm:$0xf]
    %v2608 = vld [vmem:[%s13 + $0x8c] sm:$0xff]
    %v2609 = vld [vmem:[%s13 + $0x94] sm:$0xff]
    %v2610 = vld [vmem:[%s13 + $0x9c] sm:$0xff]
    %v2611 = vld [vmem:[%s13 + $0xa4] sm:$0xf]
    %v2612 = vld [vmem:[%s13 + $0xa8] sm:$0xff]
    %v2613 = vld [vmem:[%s13 + $0xb0] sm:$0xff]
    %v2614 = vld [vmem:[%s13 + $0xb8] sm:$0xff]
    %v2615 = vld [vmem:[%s13 + $0xc0] sm:$0xf]
    %v2616 = vld [vmem:[%s13 + $0xc4] sm:$0xff]
    %v2617 = vld [vmem:[%s13 + $0xcc] sm:$0xff]
    %v2618 = vld [vmem:[%s13 + $0xd4] sm:$0xff]
    %v2619 = vld [vmem:[%s13 + $0xdc] sm:$0xf]
    %v2620 = vld [vmem:[%s13 + $0xe0] sm:$0xff]
    %v2621 = vld [vmem:[%s13 + $0xe8] sm:$0xff]
    %v2622 = vld [vmem:[%s13 + $0xf0] sm:$0xff]
    %v2623 = vld [vmem:[%s13 + $0xf8] sm:$0xf]
    %v2624 = vld [vmem:[%s13 + $0xfc] sm:$0xff]
    %v2625 = vld [vmem:[%s13 + $0x104] sm:$0xff]
    %v2626 = vld [vmem:[%s13 + $0x10c] sm:$0xff]
    %v2627 = vld [vmem:[%s13 + $0x114] sm:$0xf]
    %v2628 = vld [vmem:[%s13 + $0x118] sm:$0xff]
    %v2629 = vld [vmem:[%s13 + $0x120] sm:$0xff]
    %v2630 = vld [vmem:[%s13 + $0x128] sm:$0xff]
    %v2631 = vld [vmem:[%s13 + $0x130] sm:$0xf]
    %v2632 = vld [vmem:[%s13 + $0x134] sm:$0xff]
    %v2633 = vld [vmem:[%s13 + $0x13c] sm:$0xff]
    %v2634 = vld [vmem:[%s13 + $0x144] sm:$0xff]
    %v2635 = vld [vmem:[%s13 + $0x14c] sm:$0xf]
    %v2636 = vld [vmem:[%s13 + $0x150] sm:$0xff]
    %v2637 = vld [vmem:[%s13 + $0x158] sm:$0xff]
    %v2638 = vld [vmem:[%s13 + $0x160] sm:$0xff]
    %v2639 = vld [vmem:[%s13 + $0x168] sm:$0xf]
    %v2640 = vld [vmem:[%s13 + $0x16c] sm:$0xff]
    %v2641 = vld [vmem:[%s13 + $0x174] sm:$0xff]
    %v2642 = vld [vmem:[%s13 + $0x17c] sm:$0xff]
    %v2643 = vld [vmem:[%s13 + $0x184] sm:$0xf]
    %v2644 = vld [vmem:[%s13 + $0x188] sm:$0xff]
    %v2645 = vld [vmem:[%s13 + $0x190] sm:$0xff]
    %v2646 = vld [vmem:[%s13 + $0x198] sm:$0xff]
    %v2647 = vld [vmem:[%s13 + $0x1a0] sm:$0xf]
    %v2648 = vld [vmem:[%s13 + $0x1a4] sm:$0xff]
    %v2649 = vld [vmem:[%s13 + $0x1ac] sm:$0xff]
    %v2650 = vld [vmem:[%s13 + $0x1b4] sm:$0xff]
    %v2651 = vld [vmem:[%s13 + $0x1bc] sm:$0xf]
    %v2652 = vld [vmem:[%s13 + $0x1c0] sm:$0xff]
    %v2653 = vld [vmem:[%s13 + $0x1c8] sm:$0xff]
    %v2654 = vld [vmem:[%s13 + $0x1d0] sm:$0xff]
    %v2655 = vld [vmem:[%s13 + $0x1d8] sm:$0xf]
    %v2656 = vld [vmem:[%s13 + $0x1dc] sm:$0xff]
    %v2657 = vld [vmem:[%s13 + $0x1e4] sm:$0xff]
    %v2658 = vld [vmem:[%s13 + $0x1ec] sm:$0xff]
    %v2659 = vld [vmem:[%s13 + $0x1f4] sm:$0xf]
    %v2660 = vld [vmem:[%s13 + $0x1f8] sm:$0xff]
    %v2661 = vld [vmem:[%s13 + $0x200] sm:$0xff]
    %v2662 = vld [vmem:[%s13 + $0x208] sm:$0xff]
    %v2663 = vld [vmem:[%s13 + $0x210] sm:$0xf]
    %v2664 = vld [vmem:[%s13 + $0x214] sm:$0xff]
    %v2665 = vld [vmem:[%s13 + $0x21c] sm:$0xff]
    %v2666 = vld [vmem:[%s13 + $0x224] sm:$0xff]
    %v2667 = vld [vmem:[%s13 + $0x22c] sm:$0xf]
    %v2668 = vld [vmem:[%s13 + $0x230] sm:$0xff]
    %v2669 = vld [vmem:[%s13 + $0x238] sm:$0xff]
    %v2670 = vld [vmem:[%s13 + $0x240] sm:$0xff]
    %v2671 = vld [vmem:[%s13 + $0x248] sm:$0xf]
    %v2672 = vld [vmem:[%s13 + $0x24c] sm:$0xff]
    %v2673 = vld [vmem:[%s13 + $0x254] sm:$0xff]
    %v2674 = vld [vmem:[%s13 + $0x25c] sm:$0xff]
    %v2675 = vld [vmem:[%s13 + $0x264] sm:$0xf]
    %v2676 = vld [vmem:[%s13 + $0x268] sm:$0xff]
    %v2677 = vld [vmem:[%s13 + $0x270] sm:$0xff]
    %v2678 = vld [vmem:[%s13 + $0x278] sm:$0xff]
    %v2679 = vld [vmem:[%s13 + $0x280] sm:$0xf]
    %v2680 = vld [vmem:[%s13 + $0x284] sm:$0xff]
    %v2681 = vld [vmem:[%s13 + $0x28c] sm:$0xff]
    %v2682 = vld [vmem:[%s13 + $0x294] sm:$0xff]
    %v2683 = vld [vmem:[%s13 + $0x29c] sm:$0xf]
    %v2684 = vld [vmem:[%s13 + $0x2a0] sm:$0xff]
    %v2685 = vld [vmem:[%s13 + $0x2a8] sm:$0xff]
    %v2686 = vld [vmem:[%s13 + $0x2b0] sm:$0xff]
    %v2687 = vld [vmem:[%s13 + $0x2b8] sm:$0xf]
    %v2688 = vld [vmem:[%s13 + $0x2bc] sm:$0xff]
    %v2689 = vld [vmem:[%s13 + $0x2c4] sm:$0xff]
    %v2690 = vld [vmem:[%s13 + $0x2cc] sm:$0xff]
    %v2691 = vld [vmem:[%s13 + $0x2d4] sm:$0xf]
    %v2692 = vld [vmem:[%s13 + $0x2d8] sm:$0xff]
    %v2693 = vld [vmem:[%s13 + $0x2e0] sm:$0xff]
    %v2694 = vld [vmem:[%s13 + $0x2e8] sm:$0xff]
    %v2695 = vld [vmem:[%s13 + $0x2f0] sm:$0xf]
    %v2696 = vld [vmem:[%s13 + $0x2f4] sm:$0xff]
    %v2697 = vld [vmem:[%s13 + $0x2fc] sm:$0xff]
    %v2698 = vld [vmem:[%s13 + $0x304] sm:$0xff]
    %v2699 = vld [vmem:[%s13 + $0x30c] sm:$0xf]
    %v2700 = vld [vmem:[%s13 + $0x310] sm:$0xff]
    %v2701 = vld [vmem:[%s13 + $0x318] sm:$0xff]
    %v2702 = vld [vmem:[%s13 + $0x320] sm:$0xff]
    %v2703 = vld [vmem:[%s13 + $0x328] sm:$0xf]
    %v2704 = vld [vmem:[%s13 + $0x32c] sm:$0xff]
    %v2705 = vld [vmem:[%s13 + $0x334] sm:$0xff]
    %v2706 = vld [vmem:[%s13 + $0x33c] sm:$0xff]
    %v2707 = vld [vmem:[%s13 + $0x344] sm:$0xf]
    %v2708 = vld [vmem:[%s13 + $0x348] sm:$0xff]
    %v2709 = vld [vmem:[%s13 + $0x350] sm:$0xff]
    %v2710 = vld [vmem:[%s13 + $0x358] sm:$0xff]
    %v2711 = vld [vmem:[%s13 + $0x360] sm:$0xf]
    %v2712 = vld [vmem:[%s13 + $0x364] sm:$0xff]
    %v2713 = vld [vmem:[%s13 + $0x36c] sm:$0xff]
    %v2714 = vld [vmem:[%s13 + $0x374] sm:$0xff]
    %v2715 = vld [vmem:[%s13 + $0x37c] sm:$0xf]
    %v2716 = vld [vmem:[%s13 + $0x380] sm:$0xff]
    %v2717 = vld [vmem:[%s13 + $0x388] sm:$0xff]
    %v2718 = vld [vmem:[%s13 + $0x390] sm:$0xff]
    %v2719 = vld [vmem:[%s13 + $0x398] sm:$0xf]
    %v2720 = vld [vmem:[%s13 + $0x39c] sm:$0xff]
    %v2721 = vld [vmem:[%s13 + $0x3a4] sm:$0xff]
    %v2722 = vld [vmem:[%s13 + $0x3ac] sm:$0xff]
    %v2723 = vld [vmem:[%s13 + $0x3b4] sm:$0xf]
    %v2724 = vld [vmem:[%s13 + $0x3b8] sm:$0xff]
    %v2725 = vld [vmem:[%s13 + $0x3c0] sm:$0xff]
    %v2726 = vld [vmem:[%s13 + $0x3c8] sm:$0xff]
    %v2727 = vld [vmem:[%s13 + $0x3d0] sm:$0xf]
    %v2728 = vld [vmem:[%s13 + $0x3d4] sm:$0xff]
    %v2729 = vld [vmem:[%s13 + $0x3dc] sm:$0xff]
    %v2730 = vld [vmem:[%s13 + $0x3e4] sm:$0xff]
    %v2731 = vld [vmem:[%s13 + $0x3ec] sm:$0xf]
    %v2732 = vld [vmem:[%s13 + $0x3f0] sm:$0xff]
    %v2733 = vld [vmem:[%s13 + $0x3f8] sm:$0xff]
    %v2734 = vld [vmem:[%s13 + $0x400] sm:$0xff]
    %v2735 = vld [vmem:[%s13 + $0x408] sm:$0xf]
    %v2736 = vld [vmem:[%s13 + $0x40c] sm:$0xff]
    %v2737 = vld [vmem:[%s13 + $0x414] sm:$0xff]
    %v2738 = vld [vmem:[%s13 + $0x41c] sm:$0xff]
    %v2739 = vld [vmem:[%s13 + $0x424] sm:$0xf]
    %v2740 = vld [vmem:[%s13 + $0x428] sm:$0xff]
    %v2741 = vld [vmem:[%s13 + $0x430] sm:$0xff]
    %v2742 = vld [vmem:[%s13 + $0x438] sm:$0xff]
    %v2743 = vld [vmem:[%s13 + $0x440] sm:$0xf]
    %v2744 = vld [vmem:[%s13 + $0x444] sm:$0xff]
    %v2745 = vld [vmem:[%s13 + $0x44c] sm:$0xff]
    %v2746 = vld [vmem:[%s13 + $0x454] sm:$0xff]
    %v2747 = vld [vmem:[%s13 + $0x45c] sm:$0xf]
    %v2748 = vld [vmem:[%s13 + $0x460] sm:$0xff]
    %v2749 = vld [vmem:[%s13 + $0x468] sm:$0xff]
    %v2750 = vld [vmem:[%s13 + $0x470] sm:$0xff]
    %v2751 = vld [vmem:[%s13 + $0x478] sm:$0xf]
    %v2752 = vld [vmem:[%s13 + $0x47c] sm:$0xff]
    %v2753 = vld [vmem:[%s13 + $0x484] sm:$0xff]
    %v2754 = vld [vmem:[%s13 + $0x48c] sm:$0xff]
    %v2755 = vld [vmem:[%s13 + $0x494] sm:$0xf]
    %v2756 = vld [vmem:[%s13 + $0x498] sm:$0xff]
    %v2757 = vld [vmem:[%s13 + $0x4a0] sm:$0xff]
    %v2758 = vld [vmem:[%s13 + $0x4a8] sm:$0xff]
    %v2759 = vld [vmem:[%s13 + $0x4b0] sm:$0xf]
    %v2760 = vld [vmem:[%s13 + $0x4b4] sm:$0xff]
    %v2761 = vld [vmem:[%s13 + $0x4bc] sm:$0xff]
    %v2762 = vld [vmem:[%s13 + $0x4c4] sm:$0xff]
    %v2763 = vld [vmem:[%s13 + $0x4cc] sm:$0xf]
    %v2764 = vld [vmem:[%s13 + $0x4d0] sm:$0xff]
    %v2765 = vld [vmem:[%s13 + $0x4d8] sm:$0xff]
    %v2766 = vld [vmem:[%s13 + $0x4e0] sm:$0xff]
    %v2767 = vld [vmem:[%s13 + $0x4e8] sm:$0xf]
    %v2768 = vld [vmem:[%s13 + $0x4ec] sm:$0xff]
    %v2769 = vld [vmem:[%s13 + $0x4f4] sm:$0xff]
    %v2770 = vld [vmem:[%s13 + $0x4fc] sm:$0xff]
    %v2771 = vld [vmem:[%s13 + $0x504] sm:$0xf]
    %v2772 = vld [vmem:[%s13 + $0x508] sm:$0xff]
    %v2773 = vld [vmem:[%s13 + $0x510] sm:$0xff]
    %v2774 = vld [vmem:[%s13 + $0x518] sm:$0xff]
    %v2775 = vld [vmem:[%s13 + $0x520] sm:$0xf]
    %v2776 = vld [vmem:[%s13 + $0x524] sm:$0xff]
    %v2777 = vld [vmem:[%s13 + $0x52c] sm:$0xff]
    %v2778 = vld [vmem:[%s13 + $0x534] sm:$0xff]
    %v2779 = vld [vmem:[%s13 + $0x53c] sm:$0xf]
    %v2780 = vld [vmem:[%s13 + $0x540] sm:$0xff]
    %v2781 = vld [vmem:[%s13 + $0x548] sm:$0xff]
    %v2782 = vld [vmem:[%s13 + $0x550] sm:$0xff]
    %v2783 = vld [vmem:[%s13 + $0x558] sm:$0xf]
    %v2784 = vld [vmem:[%s13 + $0x55c] sm:$0xff]
    %v2785 = vld [vmem:[%s13 + $0x564] sm:$0xff]
    %v2786 = vld [vmem:[%s13 + $0x56c] sm:$0xff]
    %v2787 = vld [vmem:[%s13 + $0x574] sm:$0xf]
    %v2788 = vld [vmem:[%s13 + $0x578] sm:$0xff]
    %v2789 = vld [vmem:[%s13 + $0x580] sm:$0xff]
    %v2790 = vld [vmem:[%s13 + $0x588] sm:$0xff]
    %v2791 = vld [vmem:[%s13 + $0x590] sm:$0xf]
    %v2792 = vld [vmem:[%s13 + $0x594] sm:$0xff]
    %v2793 = vld [vmem:[%s13 + $0x59c] sm:$0xff]
    %v2794 = vld [vmem:[%s13 + $0x5a4] sm:$0xff]
    %v2795 = vld [vmem:[%s13 + $0x5ac] sm:$0xf]
    %v2796 = vld [vmem:[%s13 + $0x5b0] sm:$0xff]
    %v2797 = vld [vmem:[%s13 + $0x5b8] sm:$0xff]
    %v2798 = vld [vmem:[%s13 + $0x5c0] sm:$0xff]
    %v2799 = vld [vmem:[%s13 + $0x5c8] sm:$0xf]
    %v2800 = vld [vmem:[%s13 + $0x5cc] sm:$0xff]
    %v2801 = vld [vmem:[%s13 + $0x5d4] sm:$0xff]
    %v2802 = vld [vmem:[%s13 + $0x5dc] sm:$0xff]
    %v2803 = vld [vmem:[%s13 + $0x5e4] sm:$0xf]
    %v2804 = vld [vmem:[%s13 + $0x5e8] sm:$0xff]
    %v2805 = vld [vmem:[%s13 + $0x5f0] sm:$0xff]
    %v2806 = vld [vmem:[%s13 + $0x5f8] sm:$0xff]
    %v2807 = vld [vmem:[%s13 + $0x600] sm:$0xf]
    %v2808 = vld [vmem:[%s13 + $0x604] sm:$0xff]
    %v2809 = vld [vmem:[%s13 + $0x60c] sm:$0xff]
    %v2810 = vld [vmem:[%s13 + $0x614] sm:$0xff]
    %v2811 = vld [vmem:[%s13 + $0x61c] sm:$0xf]
    %v2812 = vld [vmem:[%s13 + $0x620] sm:$0xff]
    %v2813 = vld [vmem:[%s13 + $0x628] sm:$0xff]
    %v2814 = vld [vmem:[%s13 + $0x630] sm:$0xff]
    %v2815 = vld [vmem:[%s13 + $0x638] sm:$0xf]
    %v2816 = vld [vmem:[%s13 + $0x63c] sm:$0xff]
    %v2817 = vld [vmem:[%s13 + $0x644] sm:$0xff]
    %v2818 = vld [vmem:[%s13 + $0x64c] sm:$0xff]
    %v2819 = vld [vmem:[%s13 + $0x654] sm:$0xf]
    %v2820 = vld [vmem:[%s13 + $0x658] sm:$0xff]
    %v2821 = vld [vmem:[%s13 + $0x660] sm:$0xff]
    %v2822 = vld [vmem:[%s13 + $0x668] sm:$0xff]
    %v2823 = vld [vmem:[%s13 + $0x670] sm:$0xf]
    %v2824 = vld [vmem:[%s13 + $0x674] sm:$0xff]
    %v2825 = vld [vmem:[%s13 + $0x67c] sm:$0xff]
    %v2826 = vld [vmem:[%s13 + $0x684] sm:$0xff]
    %v2827 = vld [vmem:[%s13 + $0x68c] sm:$0xf]
    %v2828 = vld [vmem:[%s13 + $0x690] sm:$0xff]
    %v2829 = vld [vmem:[%s13 + $0x698] sm:$0xff]
    %v2830 = vld [vmem:[%s13 + $0x6a0] sm:$0xff]
    %v2831 = vld [vmem:[%s13 + $0x6a8] sm:$0xf]
    %v2832 = vld [vmem:[%s13 + $0x6ac] sm:$0xff]
    %v2833 = vld [vmem:[%s13 + $0x6b4] sm:$0xff]
    %v2834 = vld [vmem:[%s13 + $0x6bc] sm:$0xff]
    %v2835 = vld [vmem:[%s13 + $0x6c4] sm:$0xf]
    %v2836 = vld [vmem:[%s13 + $0x6c8] sm:$0xff]
    %v2837 = vld [vmem:[%s13 + $0x6d0] sm:$0xff]
    %v2838 = vld [vmem:[%s13 + $0x6d8] sm:$0xff]
    %v2839 = vld [vmem:[%s13 + $0x6e0] sm:$0xf]
    %v2840 = vld [vmem:[%s13 + $0x6e4] sm:$0xff]
    %v2841 = vld [vmem:[%s13 + $0x6ec] sm:$0xff]
    %v2842 = vld [vmem:[%s13 + $0x6f4] sm:$0xff]
    %v2843 = vld [vmem:[%s13 + $0x6fc] sm:$0xf]
    %v2844 = vld [vmem:[%s14] sm:$0x7f]
    %v2845 = vpack.c.bf16 %v2584, %v2584
    %v2846 = vpack.c.bf16 %v2585, %v2585
    %v2847 = vpack.c.bf16 %v2586, %v2586
    %v2848 = vpack.c.bf16 %v2587, %v2587
    %v2850 = vlaneseq
    %v2851 = vshrl.u32 %v2850, 7
    %v2852 = vsub.s32 0, %v2851
    %v2853 = vrot.slane %v2844, %v2852
    %v2854 = vlaneseq
    %v2855 = vshrl.u32 %v2854, 7
    %v2856 = vsub.s32 1, %v2855
    %v2857 = vrot.slane %v2844, %v2856
    %v2858 = vlaneseq
    %v2859 = vshrl.u32 %v2858, 7
    %v2860 = vsub.s32 2, %v2859
    %v2861 = vrot.slane %v2844, %v2860
    %v2862 = vlaneseq
    %v2863 = vshrl.u32 %v2862, 7
    %v2864 = vsub.s32 3, %v2863
    %v2865 = vrot.slane %v2844, %v2864
    %v2866 = vlaneseq
    %v2867 = vshrl.u32 %v2866, 7
    %v2868 = vsub.s32 4, %v2867
    %v2869 = vrot.slane %v2844, %v2868
    %v2870 = vlaneseq
    %v2871 = vshrl.u32 %v2870, 7
    %v2872 = vsub.s32 5, %v2871
    %v2873 = vrot.slane %v2844, %v2872
    %v2874 = vlaneseq
    %v2875 = vshrl.u32 %v2874, 7
    %v2876 = vsub.s32 6, %v2875
    %v2877 = vrot.slane %v2844, %v2876
    %v3141 = vunpack.c.l.b16 %v2588
    %v3142 = vunpack.c.h.b16 %v2588
    %v3143 = vunpack.c.l.b16 %v2589
    %v3144 = vunpack.c.h.b16 %v2589
    %v3145 = vunpack.c.l.b16 %v2590
    %v3146 = vunpack.c.h.b16 %v2590
    %v3147 = vunpack.c.l.b16 %v2591
    %v3148 = vunpack.c.l.b16 %v2592
    %v3149 = vunpack.c.h.b16 %v2592
    %v3150 = vunpack.c.l.b16 %v2593
    %v3151 = vunpack.c.h.b16 %v2593
    %v3152 = vunpack.c.l.b16 %v2594
    %v3153 = vunpack.c.h.b16 %v2594
    %v3154 = vunpack.c.l.b16 %v2595
    %v3155 = vunpack.c.l.b16 %v2596
    %v3156 = vunpack.c.h.b16 %v2596
    %v3157 = vunpack.c.l.b16 %v2597
    %v3158 = vunpack.c.h.b16 %v2597
    %v3159 = vunpack.c.l.b16 %v2598
    %v3160 = vunpack.c.h.b16 %v2598
    %v3161 = vunpack.c.l.b16 %v2599
    %v3162 = vunpack.c.l.b16 %v2600
    %v3163 = vunpack.c.h.b16 %v2600
    %v3164 = vunpack.c.l.b16 %v2601
    %v3165 = vunpack.c.h.b16 %v2601
    %v3166 = vunpack.c.l.b16 %v2602
    %v3167 = vunpack.c.h.b16 %v2602
    %v3168 = vunpack.c.l.b16 %v2603
    %v3169 = vunpack.c.l.b16 %v2604
    %v3170 = vunpack.c.h.b16 %v2604
    %v3171 = vunpack.c.l.b16 %v2605
    %v3172 = vunpack.c.h.b16 %v2605
    %v3173 = vunpack.c.l.b16 %v2606
    %v3174 = vunpack.c.h.b16 %v2606
    %v3175 = vunpack.c.l.b16 %v2607
    %v3176 = vunpack.c.l.b16 %v2608
    %v3177 = vunpack.c.h.b16 %v2608
    %v3178 = vunpack.c.l.b16 %v2609
    %v3179 = vunpack.c.h.b16 %v2609
    %v3180 = vunpack.c.l.b16 %v2610
    %v3181 = vunpack.c.h.b16 %v2610
    %v3182 = vunpack.c.l.b16 %v2611
    %v3183 = vunpack.c.l.b16 %v2612
    %v3184 = vunpack.c.h.b16 %v2612
    %v3185 = vunpack.c.l.b16 %v2613
    %v3186 = vunpack.c.h.b16 %v2613
    %v3187 = vunpack.c.l.b16 %v2614
    %v3188 = vunpack.c.h.b16 %v2614
    %v3189 = vunpack.c.l.b16 %v2615
    %v3190 = vunpack.c.l.b16 %v2616
    %v3191 = vunpack.c.h.b16 %v2616
    %v3192 = vunpack.c.l.b16 %v2617
    %v3193 = vunpack.c.h.b16 %v2617
    %v3194 = vunpack.c.l.b16 %v2618
    %v3195 = vunpack.c.h.b16 %v2618
    %v3196 = vunpack.c.l.b16 %v2619
    %v3197 = vunpack.c.l.b16 %v2620
    %v3198 = vunpack.c.h.b16 %v2620
    %v3199 = vunpack.c.l.b16 %v2621
    %v3200 = vunpack.c.h.b16 %v2621
    %v3201 = vunpack.c.l.b16 %v2622
    %v3202 = vunpack.c.h.b16 %v2622
    %v3203 = vunpack.c.l.b16 %v2623
    %v3204 = vunpack.c.l.b16 %v2624
    %v3205 = vunpack.c.h.b16 %v2624
    %v3206 = vunpack.c.l.b16 %v2625
    %v3207 = vunpack.c.h.b16 %v2625
    %v3208 = vunpack.c.l.b16 %v2626
    %v3209 = vunpack.c.h.b16 %v2626
    %v3210 = vunpack.c.l.b16 %v2627
    %v3211 = vunpack.c.l.b16 %v2628
    %v3212 = vunpack.c.h.b16 %v2628
    %v3213 = vunpack.c.l.b16 %v2629
    %v3214 = vunpack.c.h.b16 %v2629
    %v3215 = vunpack.c.l.b16 %v2630
    %v3216 = vunpack.c.h.b16 %v2630
    %v3217 = vunpack.c.l.b16 %v2631
    %v3218 = vunpack.c.l.b16 %v2632
    %v3219 = vunpack.c.h.b16 %v2632
    %v3220 = vunpack.c.l.b16 %v2633
    %v3221 = vunpack.c.h.b16 %v2633
    %v3222 = vunpack.c.l.b16 %v2634
    %v3223 = vunpack.c.h.b16 %v2634
    %v3224 = vunpack.c.l.b16 %v2635
    %v3225 = vunpack.c.l.b16 %v2636
    %v3226 = vunpack.c.h.b16 %v2636
    %v3227 = vunpack.c.l.b16 %v2637
    %v3228 = vunpack.c.h.b16 %v2637
    %v3229 = vunpack.c.l.b16 %v2638
    %v3230 = vunpack.c.h.b16 %v2638
    %v3231 = vunpack.c.l.b16 %v2639
    %v3232 = vunpack.c.l.b16 %v2640
    %v3233 = vunpack.c.h.b16 %v2640
    %v3234 = vunpack.c.l.b16 %v2641
    %v3235 = vunpack.c.h.b16 %v2641
    %v3236 = vunpack.c.l.b16 %v2642
    %v3237 = vunpack.c.h.b16 %v2642
    %v3238 = vunpack.c.l.b16 %v2643
    %v3239 = vunpack.c.l.b16 %v2644
    %v3240 = vunpack.c.h.b16 %v2644
    %v3241 = vunpack.c.l.b16 %v2645
    %v3242 = vunpack.c.h.b16 %v2645
    %v3243 = vunpack.c.l.b16 %v2646
    %v3244 = vunpack.c.h.b16 %v2646
    %v3245 = vunpack.c.l.b16 %v2647
    %v3246 = vunpack.c.l.b16 %v2648
    %v3247 = vunpack.c.h.b16 %v2648
    %v3248 = vunpack.c.l.b16 %v2649
    %v3249 = vunpack.c.h.b16 %v2649
    %v3250 = vunpack.c.l.b16 %v2650
    %v3251 = vunpack.c.h.b16 %v2650
    %v3252 = vunpack.c.l.b16 %v2651
    %v3253 = vunpack.c.l.b16 %v2652
    %v3254 = vunpack.c.h.b16 %v2652
    %v3255 = vunpack.c.l.b16 %v2653
    %v3256 = vunpack.c.h.b16 %v2653
    %v3257 = vunpack.c.l.b16 %v2654
    %v3258 = vunpack.c.h.b16 %v2654
    %v3259 = vunpack.c.l.b16 %v2655
    %v3260 = vunpack.c.l.b16 %v2656
    %v3261 = vunpack.c.h.b16 %v2656
    %v3262 = vunpack.c.l.b16 %v2657
    %v3263 = vunpack.c.h.b16 %v2657
    %v3264 = vunpack.c.l.b16 %v2658
    %v3265 = vunpack.c.h.b16 %v2658
    %v3266 = vunpack.c.l.b16 %v2659
    %v3267 = vunpack.c.l.b16 %v2660
    %v3268 = vunpack.c.h.b16 %v2660
    %v3269 = vunpack.c.l.b16 %v2661
    %v3270 = vunpack.c.h.b16 %v2661
    %v3271 = vunpack.c.l.b16 %v2662
    %v3272 = vunpack.c.h.b16 %v2662
    %v3273 = vunpack.c.l.b16 %v2663
    %v3274 = vunpack.c.l.b16 %v2664
    %v3275 = vunpack.c.h.b16 %v2664
    %v3276 = vunpack.c.l.b16 %v2665
    %v3277 = vunpack.c.h.b16 %v2665
    %v3278 = vunpack.c.l.b16 %v2666
    %v3279 = vunpack.c.h.b16 %v2666
    %v3280 = vunpack.c.l.b16 %v2667
    %v3281 = vunpack.c.l.b16 %v2668
    %v3282 = vunpack.c.h.b16 %v2668
    %v3283 = vunpack.c.l.b16 %v2669
    %v3284 = vunpack.c.h.b16 %v2669
    %v3285 = vunpack.c.l.b16 %v2670
    %v3286 = vunpack.c.h.b16 %v2670
    %v3287 = vunpack.c.l.b16 %v2671
    %v3288 = vunpack.c.l.b16 %v2672
    %v3289 = vunpack.c.h.b16 %v2672
    %v3290 = vunpack.c.l.b16 %v2673
    %v3291 = vunpack.c.h.b16 %v2673
    %v3292 = vunpack.c.l.b16 %v2674
    %v3293 = vunpack.c.h.b16 %v2674
    %v3294 = vunpack.c.l.b16 %v2675
    %v3295 = vunpack.c.l.b16 %v2676
    %v3296 = vunpack.c.h.b16 %v2676
    %v3297 = vunpack.c.l.b16 %v2677
    %v3298 = vunpack.c.h.b16 %v2677
    %v3299 = vunpack.c.l.b16 %v2678
    %v3300 = vunpack.c.h.b16 %v2678
    %v3301 = vunpack.c.l.b16 %v2679
    %v3302 = vunpack.c.l.b16 %v2680
    %v3303 = vunpack.c.h.b16 %v2680
    %v3304 = vunpack.c.l.b16 %v2681
    %v3305 = vunpack.c.h.b16 %v2681
    %v3306 = vunpack.c.l.b16 %v2682
    %v3307 = vunpack.c.h.b16 %v2682
    %v3308 = vunpack.c.l.b16 %v2683
    %v3309 = vunpack.c.l.b16 %v2684
    %v3310 = vunpack.c.h.b16 %v2684
    %v3311 = vunpack.c.l.b16 %v2685
    %v3312 = vunpack.c.h.b16 %v2685
    %v3313 = vunpack.c.l.b16 %v2686
    %v3314 = vunpack.c.h.b16 %v2686
    %v3315 = vunpack.c.l.b16 %v2687
    %v3316 = vunpack.c.l.b16 %v2688
    %v3317 = vunpack.c.h.b16 %v2688
    %v3318 = vunpack.c.l.b16 %v2689
    %v3319 = vunpack.c.h.b16 %v2689
    %v3320 = vunpack.c.l.b16 %v2690
    %v3321 = vunpack.c.h.b16 %v2690
    %v3322 = vunpack.c.l.b16 %v2691
    %v3323 = vunpack.c.l.b16 %v2692
    %v3324 = vunpack.c.h.b16 %v2692
    %v3325 = vunpack.c.l.b16 %v2693
    %v3326 = vunpack.c.h.b16 %v2693
    %v3327 = vunpack.c.l.b16 %v2694
    %v3328 = vunpack.c.h.b16 %v2694
    %v3329 = vunpack.c.l.b16 %v2695
    %v3330 = vunpack.c.l.b16 %v2696
    %v3331 = vunpack.c.h.b16 %v2696
    %v3332 = vunpack.c.l.b16 %v2697
    %v3333 = vunpack.c.h.b16 %v2697
    %v3334 = vunpack.c.l.b16 %v2698
    %v3335 = vunpack.c.h.b16 %v2698
    %v3336 = vunpack.c.l.b16 %v2699
    %v3337 = vunpack.c.l.b16 %v2700
    %v3338 = vunpack.c.h.b16 %v2700
    %v3339 = vunpack.c.l.b16 %v2701
    %v3340 = vunpack.c.h.b16 %v2701
    %v3341 = vunpack.c.l.b16 %v2702
    %v3342 = vunpack.c.h.b16 %v2702
    %v3343 = vunpack.c.l.b16 %v2703
    %v3344 = vunpack.c.l.b16 %v2704
    %v3345 = vunpack.c.h.b16 %v2704
    %v3346 = vunpack.c.l.b16 %v2705
    %v3347 = vunpack.c.h.b16 %v2705
    %v3348 = vunpack.c.l.b16 %v2706
    %v3349 = vunpack.c.h.b16 %v2706
    %v3350 = vunpack.c.l.b16 %v2707
    %v3351 = vunpack.c.l.b16 %v2708
    %v3352 = vunpack.c.h.b16 %v2708
    %v3353 = vunpack.c.l.b16 %v2709
    %v3354 = vunpack.c.h.b16 %v2709
    %v3355 = vunpack.c.l.b16 %v2710
    %v3356 = vunpack.c.h.b16 %v2710
    %v3357 = vunpack.c.l.b16 %v2711
    %v3358 = vunpack.c.l.b16 %v2712
    %v3359 = vunpack.c.h.b16 %v2712
    %v3360 = vunpack.c.l.b16 %v2713
    %v3361 = vunpack.c.h.b16 %v2713
    %v3362 = vunpack.c.l.b16 %v2714
    %v3363 = vunpack.c.h.b16 %v2714
    %v3364 = vunpack.c.l.b16 %v2715
    %v3365 = vunpack.c.l.b16 %v2716
    %v3366 = vunpack.c.h.b16 %v2716
    %v3367 = vunpack.c.l.b16 %v2717
    %v3368 = vunpack.c.h.b16 %v2717
    %v3369 = vunpack.c.l.b16 %v2718
    %v3370 = vunpack.c.h.b16 %v2718
    %v3371 = vunpack.c.l.b16 %v2719
    %v3372 = vunpack.c.l.b16 %v2720
    %v3373 = vunpack.c.h.b16 %v2720
    %v3374 = vunpack.c.l.b16 %v2721
    %v3375 = vunpack.c.h.b16 %v2721
    %v3376 = vunpack.c.l.b16 %v2722
    %v3377 = vunpack.c.h.b16 %v2722
    %v3378 = vunpack.c.l.b16 %v2723
    %v3379 = vunpack.c.l.b16 %v2724
    %v3380 = vunpack.c.h.b16 %v2724
    %v3381 = vunpack.c.l.b16 %v2725
    %v3382 = vunpack.c.h.b16 %v2725
    %v3383 = vunpack.c.l.b16 %v2726
    %v3384 = vunpack.c.h.b16 %v2726
    %v3385 = vunpack.c.l.b16 %v2727
    %v3386 = vunpack.c.l.b16 %v2728
    %v3387 = vunpack.c.h.b16 %v2728
    %v3388 = vunpack.c.l.b16 %v2729
    %v3389 = vunpack.c.h.b16 %v2729
    %v3390 = vunpack.c.l.b16 %v2730
    %v3391 = vunpack.c.h.b16 %v2730
    %v3392 = vunpack.c.l.b16 %v2731
    %v3393 = vunpack.c.l.b16 %v2732
    %v3394 = vunpack.c.h.b16 %v2732
    %v3395 = vunpack.c.l.b16 %v2733
    %v3396 = vunpack.c.h.b16 %v2733
    %v3397 = vunpack.c.l.b16 %v2734
    %v3398 = vunpack.c.h.b16 %v2734
    %v3399 = vunpack.c.l.b16 %v2735
    %v3400 = vunpack.c.l.b16 %v2736
    %v3401 = vunpack.c.h.b16 %v2736
    %v3402 = vunpack.c.l.b16 %v2737
    %v3403 = vunpack.c.h.b16 %v2737
    %v3404 = vunpack.c.l.b16 %v2738
    %v3405 = vunpack.c.h.b16 %v2738
    %v3406 = vunpack.c.l.b16 %v2739
    %v3407 = vunpack.c.l.b16 %v2740
    %v3408 = vunpack.c.h.b16 %v2740
    %v3409 = vunpack.c.l.b16 %v2741
    %v3410 = vunpack.c.h.b16 %v2741
    %v3411 = vunpack.c.l.b16 %v2742
    %v3412 = vunpack.c.h.b16 %v2742
    %v3413 = vunpack.c.l.b16 %v2743
    %v3414 = vunpack.c.l.b16 %v2744
    %v3415 = vunpack.c.h.b16 %v2744
    %v3416 = vunpack.c.l.b16 %v2745
    %v3417 = vunpack.c.h.b16 %v2745
    %v3418 = vunpack.c.l.b16 %v2746
    %v3419 = vunpack.c.h.b16 %v2746
    %v3420 = vunpack.c.l.b16 %v2747
    %v3421 = vunpack.c.l.b16 %v2748
    %v3422 = vunpack.c.h.b16 %v2748
    %v3423 = vunpack.c.l.b16 %v2749
    %v3424 = vunpack.c.h.b16 %v2749
    %v3425 = vunpack.c.l.b16 %v2750
    %v3426 = vunpack.c.h.b16 %v2750
    %v3427 = vunpack.c.l.b16 %v2751
    %v3428 = vunpack.c.l.b16 %v2752
    %v3429 = vunpack.c.h.b16 %v2752
    %v3430 = vunpack.c.l.b16 %v2753
    %v3431 = vunpack.c.h.b16 %v2753
    %v3432 = vunpack.c.l.b16 %v2754
    %v3433 = vunpack.c.h.b16 %v2754
    %v3434 = vunpack.c.l.b16 %v2755
    %v3435 = vunpack.c.l.b16 %v2756
    %v3436 = vunpack.c.h.b16 %v2756
    %v3437 = vunpack.c.l.b16 %v2757
    %v3438 = vunpack.c.h.b16 %v2757
    %v3439 = vunpack.c.l.b16 %v2758
    %v3440 = vunpack.c.h.b16 %v2758
    %v3441 = vunpack.c.l.b16 %v2759
    %v3442 = vunpack.c.l.b16 %v2760
    %v3443 = vunpack.c.h.b16 %v2760
    %v3444 = vunpack.c.l.b16 %v2761
    %v3445 = vunpack.c.h.b16 %v2761
    %v3446 = vunpack.c.l.b16 %v2762
    %v3447 = vunpack.c.h.b16 %v2762
    %v3448 = vunpack.c.l.b16 %v2763
    %v3449 = vunpack.c.l.b16 %v2764
    %v3450 = vunpack.c.h.b16 %v2764
    %v3451 = vunpack.c.l.b16 %v2765
    %v3452 = vunpack.c.h.b16 %v2765
    %v3453 = vunpack.c.l.b16 %v2766
    %v3454 = vunpack.c.h.b16 %v2766
    %v3455 = vunpack.c.l.b16 %v2767
    %v3456 = vunpack.c.l.b16 %v2768
    %v3457 = vunpack.c.h.b16 %v2768
    %v3458 = vunpack.c.l.b16 %v2769
    %v3459 = vunpack.c.h.b16 %v2769
    %v3460 = vunpack.c.l.b16 %v2770
    %v3461 = vunpack.c.h.b16 %v2770
    %v3462 = vunpack.c.l.b16 %v2771
    %v3463 = vunpack.c.l.b16 %v2772
    %v3464 = vunpack.c.h.b16 %v2772
    %v3465 = vunpack.c.l.b16 %v2773
    %v3466 = vunpack.c.h.b16 %v2773
    %v3467 = vunpack.c.l.b16 %v2774
    %v3468 = vunpack.c.h.b16 %v2774
    %v3469 = vunpack.c.l.b16 %v2775
    %v3470 = vunpack.c.l.b16 %v2776
    %v3471 = vunpack.c.h.b16 %v2776
    %v3472 = vunpack.c.l.b16 %v2777
    %v3473 = vunpack.c.h.b16 %v2777
    %v3474 = vunpack.c.l.b16 %v2778
    %v3475 = vunpack.c.h.b16 %v2778
    %v3476 = vunpack.c.l.b16 %v2779
    %v3477 = vunpack.c.l.b16 %v2780
    %v3478 = vunpack.c.h.b16 %v2780
    %v3479 = vunpack.c.l.b16 %v2781
    %v3480 = vunpack.c.h.b16 %v2781
    %v3481 = vunpack.c.l.b16 %v2782
    %v3482 = vunpack.c.h.b16 %v2782
    %v3483 = vunpack.c.l.b16 %v2783
    %v3484 = vunpack.c.l.b16 %v2784
    %v3485 = vunpack.c.h.b16 %v2784
    %v3486 = vunpack.c.l.b16 %v2785
    %v3487 = vunpack.c.h.b16 %v2785
    %v3488 = vunpack.c.l.b16 %v2786
    %v3489 = vunpack.c.h.b16 %v2786
    %v3490 = vunpack.c.l.b16 %v2787
    %v3491 = vunpack.c.l.b16 %v2788
    %v3492 = vunpack.c.h.b16 %v2788
    %v3493 = vunpack.c.l.b16 %v2789
    %v3494 = vunpack.c.h.b16 %v2789
    %v3495 = vunpack.c.l.b16 %v2790
    %v3496 = vunpack.c.h.b16 %v2790
    %v3497 = vunpack.c.l.b16 %v2791
    %v3498 = vunpack.c.l.b16 %v2792
    %v3499 = vunpack.c.h.b16 %v2792
    %v3500 = vunpack.c.l.b16 %v2793
    %v3501 = vunpack.c.h.b16 %v2793
    %v3502 = vunpack.c.l.b16 %v2794
    %v3503 = vunpack.c.h.b16 %v2794
    %v3504 = vunpack.c.l.b16 %v2795
    %v3505 = vunpack.c.l.b16 %v2796
    %v3506 = vunpack.c.h.b16 %v2796
    %v3507 = vunpack.c.l.b16 %v2797
    %v3508 = vunpack.c.h.b16 %v2797
    %v3509 = vunpack.c.l.b16 %v2798
    %v3510 = vunpack.c.h.b16 %v2798
    %v3511 = vunpack.c.l.b16 %v2799
    %v3512 = vunpack.c.l.b16 %v2800
    %v3513 = vunpack.c.h.b16 %v2800
    %v3514 = vunpack.c.l.b16 %v2801
    %v3515 = vunpack.c.h.b16 %v2801
    %v3516 = vunpack.c.l.b16 %v2802
    %v3517 = vunpack.c.h.b16 %v2802
    %v3518 = vunpack.c.l.b16 %v2803
    %v3519 = vunpack.c.l.b16 %v2804
    %v3520 = vunpack.c.h.b16 %v2804
    %v3521 = vunpack.c.l.b16 %v2805
    %v3522 = vunpack.c.h.b16 %v2805
    %v3523 = vunpack.c.l.b16 %v2806
    %v3524 = vunpack.c.h.b16 %v2806
    %v3525 = vunpack.c.l.b16 %v2807
    %v3526 = vunpack.c.l.b16 %v2808
    %v3527 = vunpack.c.h.b16 %v2808
    %v3528 = vunpack.c.l.b16 %v2809
    %v3529 = vunpack.c.h.b16 %v2809
    %v3530 = vunpack.c.l.b16 %v2810
    %v3531 = vunpack.c.h.b16 %v2810
    %v3532 = vunpack.c.l.b16 %v2811
    %v3533 = vunpack.c.l.b16 %v2812
    %v3534 = vunpack.c.h.b16 %v2812
    %v3535 = vunpack.c.l.b16 %v2813
    %v3536 = vunpack.c.h.b16 %v2813
    %v3537 = vunpack.c.l.b16 %v2814
    %v3538 = vunpack.c.h.b16 %v2814
    %v3539 = vunpack.c.l.b16 %v2815
    %v3540 = vunpack.c.l.b16 %v2816
    %v3541 = vunpack.c.h.b16 %v2816
    %v3542 = vunpack.c.l.b16 %v2817
    %v3543 = vunpack.c.h.b16 %v2817
    %v3544 = vunpack.c.l.b16 %v2818
    %v3545 = vunpack.c.h.b16 %v2818
    %v3546 = vunpack.c.l.b16 %v2819
    %v3547 = vunpack.c.l.b16 %v2820
    %v3548 = vunpack.c.h.b16 %v2820
    %v3549 = vunpack.c.l.b16 %v2821
    %v3550 = vunpack.c.h.b16 %v2821
    %v3551 = vunpack.c.l.b16 %v2822
    %v3552 = vunpack.c.h.b16 %v2822
    %v3553 = vunpack.c.l.b16 %v2823
    %v3554 = vunpack.c.l.b16 %v2824
    %v3555 = vunpack.c.h.b16 %v2824
    %v3556 = vunpack.c.l.b16 %v2825
    %v3557 = vunpack.c.h.b16 %v2825
    %v3558 = vunpack.c.l.b16 %v2826
    %v3559 = vunpack.c.h.b16 %v2826
    %v3560 = vunpack.c.l.b16 %v2827
    %v3561 = vunpack.c.l.b16 %v2828
    %v3562 = vunpack.c.h.b16 %v2828
    %v3563 = vunpack.c.l.b16 %v2829
    %v3564 = vunpack.c.h.b16 %v2829
    %v3565 = vunpack.c.l.b16 %v2830
    %v3566 = vunpack.c.h.b16 %v2830
    %v3567 = vunpack.c.l.b16 %v2831
    %v3568 = vunpack.c.l.b16 %v2832
    %v3569 = vunpack.c.h.b16 %v2832
    %v3570 = vunpack.c.l.b16 %v2833
    %v3571 = vunpack.c.h.b16 %v2833
    %v3572 = vunpack.c.l.b16 %v2834
    %v3573 = vunpack.c.h.b16 %v2834
    %v3574 = vunpack.c.l.b16 %v2835
    %v3575 = vunpack.c.l.b16 %v2836
    %v3576 = vunpack.c.h.b16 %v2836
    %v3577 = vunpack.c.l.b16 %v2837
    %v3578 = vunpack.c.h.b16 %v2837
    %v3579 = vunpack.c.l.b16 %v2838
    %v3580 = vunpack.c.h.b16 %v2838
    %v3581 = vunpack.c.l.b16 %v2839
    %v3582 = vunpack.c.l.b16 %v2840
    %v3583 = vunpack.c.h.b16 %v2840
    %v3584 = vunpack.c.l.b16 %v2841
    %v3585 = vunpack.c.h.b16 %v2841
    %v3586 = vunpack.c.l.b16 %v2842
    %v3587 = vunpack.c.h.b16 %v2842
    %v3588 = vunpack.c.l.b16 %v2843
    %v3589 = vpack.c.b16 %v3148, %v3141
    %v3590 = vpack.c.b16 %v3149, %v3142
    %v3591 = vpack.c.b16 %v3150, %v3143
    %v3592 = vpack.c.b16 %v3151, %v3144
    %v3593 = vpack.c.b16 %v3152, %v3145
    %v3594 = vpack.c.b16 %v3153, %v3146
    %v3595 = vpack.c.b16 %v3154, %v3147
    %v3596 = vpack.c.b16 %v3162, %v3155
    %v3597 = vpack.c.b16 %v3163, %v3156
    %v3598 = vpack.c.b16 %v3164, %v3157
    %v3599 = vpack.c.b16 %v3165, %v3158
    %v3600 = vpack.c.b16 %v3166, %v3159
    %v3601 = vpack.c.b16 %v3167, %v3160
    %v3602 = vpack.c.b16 %v3168, %v3161
    %v3603 = vpack.c.b16 %v3176, %v3169
    %v3604 = vpack.c.b16 %v3177, %v3170
    %v3605 = vpack.c.b16 %v3178, %v3171
    %v3606 = vpack.c.b16 %v3179, %v3172
    %v3607 = vpack.c.b16 %v3180, %v3173
    %v3608 = vpack.c.b16 %v3181, %v3174
    %v3609 = vpack.c.b16 %v3182, %v3175
    %v3610 = vpack.c.b16 %v3190, %v3183
    %v3611 = vpack.c.b16 %v3191, %v3184
    %v3612 = vpack.c.b16 %v3192, %v3185
    %v3613 = vpack.c.b16 %v3193, %v3186
    %v3614 = vpack.c.b16 %v3194, %v3187
    %v3615 = vpack.c.b16 %v3195, %v3188
    %v3616 = vpack.c.b16 %v3196, %v3189
    %v3617 = vpack.c.b16 %v3204, %v3197
    %v3618 = vpack.c.b16 %v3205, %v3198
    %v3619 = vpack.c.b16 %v3206, %v3199
    %v3620 = vpack.c.b16 %v3207, %v3200
    %v3621 = vpack.c.b16 %v3208, %v3201
    %v3622 = vpack.c.b16 %v3209, %v3202
    %v3623 = vpack.c.b16 %v3210, %v3203
    %v3624 = vpack.c.b16 %v3218, %v3211
    %v3625 = vpack.c.b16 %v3219, %v3212
    %v3626 = vpack.c.b16 %v3220, %v3213
    %v3627 = vpack.c.b16 %v3221, %v3214
    %v3628 = vpack.c.b16 %v3222, %v3215
    %v3629 = vpack.c.b16 %v3223, %v3216
    %v3630 = vpack.c.b16 %v3224, %v3217
    %v3631 = vpack.c.b16 %v3232, %v3225
    %v3632 = vpack.c.b16 %v3233, %v3226
    %v3633 = vpack.c.b16 %v3234, %v3227
    %v3634 = vpack.c.b16 %v3235, %v3228
    %v3635 = vpack.c.b16 %v3236, %v3229
    %v3636 = vpack.c.b16 %v3237, %v3230
    %v3637 = vpack.c.b16 %v3238, %v3231
    %v3638 = vpack.c.b16 %v3246, %v3239
    %v3639 = vpack.c.b16 %v3247, %v3240
    %v3640 = vpack.c.b16 %v3248, %v3241
    %v3641 = vpack.c.b16 %v3249, %v3242
    %v3642 = vpack.c.b16 %v3250, %v3243
    %v3643 = vpack.c.b16 %v3251, %v3244
    %v3644 = vpack.c.b16 %v3252, %v3245
    %v3645 = vpack.c.b16 %v3260, %v3253
    %v3646 = vpack.c.b16 %v3261, %v3254
    %v3647 = vpack.c.b16 %v3262, %v3255
    %v3648 = vpack.c.b16 %v3263, %v3256
    %v3649 = vpack.c.b16 %v3264, %v3257
    %v3650 = vpack.c.b16 %v3265, %v3258
    %v3651 = vpack.c.b16 %v3266, %v3259
    %v3652 = vpack.c.b16 %v3274, %v3267
    %v3653 = vpack.c.b16 %v3275, %v3268
    %v3654 = vpack.c.b16 %v3276, %v3269
    %v3655 = vpack.c.b16 %v3277, %v3270
    %v3656 = vpack.c.b16 %v3278, %v3271
    %v3657 = vpack.c.b16 %v3279, %v3272
    %v3658 = vpack.c.b16 %v3280, %v3273
    %v3659 = vpack.c.b16 %v3288, %v3281
    %v3660 = vpack.c.b16 %v3289, %v3282
    %v3661 = vpack.c.b16 %v3290, %v3283
    %v3662 = vpack.c.b16 %v3291, %v3284
    %v3663 = vpack.c.b16 %v3292, %v3285
    %v3664 = vpack.c.b16 %v3293, %v3286
    %v3665 = vpack.c.b16 %v3294, %v3287
    %v3666 = vpack.c.b16 %v3302, %v3295
    %v3667 = vpack.c.b16 %v3303, %v3296
    %v3668 = vpack.c.b16 %v3304, %v3297
    %v3669 = vpack.c.b16 %v3305, %v3298
    %v3670 = vpack.c.b16 %v3306, %v3299
    %v3671 = vpack.c.b16 %v3307, %v3300
    %v3672 = vpack.c.b16 %v3308, %v3301
    %v3673 = vpack.c.b16 %v3316, %v3309
    %v3674 = vpack.c.b16 %v3317, %v3310
    %v3675 = vpack.c.b16 %v3318, %v3311
    %v3676 = vpack.c.b16 %v3319, %v3312
    %v3677 = vpack.c.b16 %v3320, %v3313
    %v3678 = vpack.c.b16 %v3321, %v3314
    %v3679 = vpack.c.b16 %v3322, %v3315
    %v3680 = vpack.c.b16 %v3330, %v3323
    %v3681 = vpack.c.b16 %v3331, %v3324
    %v3682 = vpack.c.b16 %v3332, %v3325
    %v3683 = vpack.c.b16 %v3333, %v3326
    %v3684 = vpack.c.b16 %v3334, %v3327
    %v3685 = vpack.c.b16 %v3335, %v3328
    %v3686 = vpack.c.b16 %v3336, %v3329
    %v3687 = vpack.c.b16 %v3344, %v3337
    %v3688 = vpack.c.b16 %v3345, %v3338
    %v3689 = vpack.c.b16 %v3346, %v3339
    %v3690 = vpack.c.b16 %v3347, %v3340
    %v3691 = vpack.c.b16 %v3348, %v3341
    %v3692 = vpack.c.b16 %v3349, %v3342
    %v3693 = vpack.c.b16 %v3350, %v3343
    %v3694 = vpack.c.b16 %v3358, %v3351
    %v3695 = vpack.c.b16 %v3359, %v3352
    %v3696 = vpack.c.b16 %v3360, %v3353
    %v3697 = vpack.c.b16 %v3361, %v3354
    %v3698 = vpack.c.b16 %v3362, %v3355
    %v3699 = vpack.c.b16 %v3363, %v3356
    %v3700 = vpack.c.b16 %v3364, %v3357
    %v3701 = vpack.c.b16 %v3372, %v3365
    %v3702 = vpack.c.b16 %v3373, %v3366
    %v3703 = vpack.c.b16 %v3374, %v3367
    %v3704 = vpack.c.b16 %v3375, %v3368
    %v3705 = vpack.c.b16 %v3376, %v3369
    %v3706 = vpack.c.b16 %v3377, %v3370
    %v3707 = vpack.c.b16 %v3378, %v3371
    %v3708 = vpack.c.b16 %v3386, %v3379
    %v3709 = vpack.c.b16 %v3387, %v3380
    %v3710 = vpack.c.b16 %v3388, %v3381
    %v3711 = vpack.c.b16 %v3389, %v3382
    %v3712 = vpack.c.b16 %v3390, %v3383
    %v3713 = vpack.c.b16 %v3391, %v3384
    %v3714 = vpack.c.b16 %v3392, %v3385
    %v3715 = vpack.c.b16 %v3400, %v3393
    %v3716 = vpack.c.b16 %v3401, %v3394
    %v3717 = vpack.c.b16 %v3402, %v3395
    %v3718 = vpack.c.b16 %v3403, %v3396
    %v3719 = vpack.c.b16 %v3404, %v3397
    %v3720 = vpack.c.b16 %v3405, %v3398
    %v3721 = vpack.c.b16 %v3406, %v3399
    %v3722 = vpack.c.b16 %v3414, %v3407
    %v3723 = vpack.c.b16 %v3415, %v3408
    %v3724 = vpack.c.b16 %v3416, %v3409
    %v3725 = vpack.c.b16 %v3417, %v3410
    %v3726 = vpack.c.b16 %v3418, %v3411
    %v3727 = vpack.c.b16 %v3419, %v3412
    %v3728 = vpack.c.b16 %v3420, %v3413
    %v3729 = vpack.c.b16 %v3428, %v3421
    %v3730 = vpack.c.b16 %v3429, %v3422
    %v3731 = vpack.c.b16 %v3430, %v3423
    %v3732 = vpack.c.b16 %v3431, %v3424
    %v3733 = vpack.c.b16 %v3432, %v3425
    %v3734 = vpack.c.b16 %v3433, %v3426
    %v3735 = vpack.c.b16 %v3434, %v3427
    %v3736 = vpack.c.b16 %v3442, %v3435
    %v3737 = vpack.c.b16 %v3443, %v3436
    %v3738 = vpack.c.b16 %v3444, %v3437
    %v3739 = vpack.c.b16 %v3445, %v3438
    %v3740 = vpack.c.b16 %v3446, %v3439
    %v3741 = vpack.c.b16 %v3447, %v3440
    %v3742 = vpack.c.b16 %v3448, %v3441
    %v3743 = vpack.c.b16 %v3456, %v3449
    %v3744 = vpack.c.b16 %v3457, %v3450
    %v3745 = vpack.c.b16 %v3458, %v3451
    %v3746 = vpack.c.b16 %v3459, %v3452
    %v3747 = vpack.c.b16 %v3460, %v3453
    %v3748 = vpack.c.b16 %v3461, %v3454
    %v3749 = vpack.c.b16 %v3462, %v3455
    %v3750 = vpack.c.b16 %v3470, %v3463
    %v3751 = vpack.c.b16 %v3471, %v3464
    %v3752 = vpack.c.b16 %v3472, %v3465
    %v3753 = vpack.c.b16 %v3473, %v3466
    %v3754 = vpack.c.b16 %v3474, %v3467
    %v3755 = vpack.c.b16 %v3475, %v3468
    %v3756 = vpack.c.b16 %v3476, %v3469
    %v3757 = vpack.c.b16 %v3484, %v3477
    %v3758 = vpack.c.b16 %v3485, %v3478
    %v3759 = vpack.c.b16 %v3486, %v3479
    %v3760 = vpack.c.b16 %v3487, %v3480
    %v3761 = vpack.c.b16 %v3488, %v3481
    %v3762 = vpack.c.b16 %v3489, %v3482
    %v3763 = vpack.c.b16 %v3490, %v3483
    %v3764 = vpack.c.b16 %v3498, %v3491
    %v3765 = vpack.c.b16 %v3499, %v3492
    %v3766 = vpack.c.b16 %v3500, %v3493
    %v3767 = vpack.c.b16 %v3501, %v3494
    %v3768 = vpack.c.b16 %v3502, %v3495
    %v3769 = vpack.c.b16 %v3503, %v3496
    %v3770 = vpack.c.b16 %v3504, %v3497
    %v3771 = vpack.c.b16 %v3512, %v3505
    %v3772 = vpack.c.b16 %v3513, %v3506
    %v3773 = vpack.c.b16 %v3514, %v3507
    %v3774 = vpack.c.b16 %v3515, %v3508
    %v3775 = vpack.c.b16 %v3516, %v3509
    %v3776 = vpack.c.b16 %v3517, %v3510
    %v3777 = vpack.c.b16 %v3518, %v3511
    %v3778 = vpack.c.b16 %v3526, %v3519
    %v3779 = vpack.c.b16 %v3527, %v3520
    %v3780 = vpack.c.b16 %v3528, %v3521
    %v3781 = vpack.c.b16 %v3529, %v3522
    %v3782 = vpack.c.b16 %v3530, %v3523
    %v3783 = vpack.c.b16 %v3531, %v3524
    %v3784 = vpack.c.b16 %v3532, %v3525
    %v3785 = vpack.c.b16 %v3540, %v3533
    %v3786 = vpack.c.b16 %v3541, %v3534
    %v3787 = vpack.c.b16 %v3542, %v3535
    %v3788 = vpack.c.b16 %v3543, %v3536
    %v3789 = vpack.c.b16 %v3544, %v3537
    %v3790 = vpack.c.b16 %v3545, %v3538
    %v3791 = vpack.c.b16 %v3546, %v3539
    %v3792 = vpack.c.b16 %v3554, %v3547
    %v3793 = vpack.c.b16 %v3555, %v3548
    %v3794 = vpack.c.b16 %v3556, %v3549
    %v3795 = vpack.c.b16 %v3557, %v3550
    %v3796 = vpack.c.b16 %v3558, %v3551
    %v3797 = vpack.c.b16 %v3559, %v3552
    %v3798 = vpack.c.b16 %v3560, %v3553
    %v3799 = vpack.c.b16 %v3568, %v3561
    %v3800 = vpack.c.b16 %v3569, %v3562
    %v3801 = vpack.c.b16 %v3570, %v3563
    %v3802 = vpack.c.b16 %v3571, %v3564
    %v3803 = vpack.c.b16 %v3572, %v3565
    %v3804 = vpack.c.b16 %v3573, %v3566
    %v3805 = vpack.c.b16 %v3574, %v3567
    %v3806 = vpack.c.b16 %v3582, %v3575
    %v3807 = vpack.c.b16 %v3583, %v3576
    %v3808 = vpack.c.b16 %v3584, %v3577
    %v3809 = vpack.c.b16 %v3585, %v3578
    %v3810 = vpack.c.b16 %v3586, %v3579
    %v3811 = vpack.c.b16 %v3587, %v3580
    %v3812 = vpack.c.b16 %v3588, %v3581
    %4037 = vmatprep.subr.bf16.mxu0 %v3590
    %4038 = vmatpush1.bf16.msra.mxu0 %v3589
    %4039 = vmatprep.subr.bf16.mxu0 %v3597
    %4040 = vmatpush1.bf16.msra.mxu0 %v3596
    %4041 = vmatprep.subr.bf16.mxu0 %v3604
    %4042 = vmatpush1.bf16.msra.mxu0 %v3603
    %4043 = vmatprep.subr.bf16.mxu0 %v3611
    %4044 = vmatpush1.bf16.msra.mxu0 %v3610
    %4045 = vmatprep.subr.bf16.mxu0 %v3618
    %4046 = vmatpush1.bf16.msra.mxu0 %v3617
    %4047 = vmatprep.subr.bf16.mxu0 %v3625
    %4048 = vmatpush1.bf16.msra.mxu0 %v3624
    %4049 = vmatprep.subr.bf16.mxu0 %v3632
    %4050 = vmatpush1.bf16.msra.mxu0 %v3631
    %4051 = vmatprep.subr.bf16.mxu0 %v3639
    %4052 = vmatpush1.bf16.msra.mxu0 %v3638
    %4053 = vmatprep.subr.bf16.mxu0 %v3646
    %4054 = vmatpush1.bf16.msra.mxu0 %v3645
    %4055 = vmatprep.subr.bf16.mxu0 %v3653
    %4056 = vmatpush1.bf16.msra.mxu0 %v3652
    %4057 = vmatprep.subr.bf16.mxu0 %v3660
    %4058 = vmatpush1.bf16.msra.mxu0 %v3659
    %4059 = vmatprep.subr.bf16.mxu0 %v3667
    %4060 = vmatpush1.bf16.msra.mxu0 %v3666
    %4061 = vmatprep.subr.bf16.mxu0 %v3674
    %4062 = vmatpush1.bf16.msra.mxu0 %v3673
    %4063 = vmatprep.subr.bf16.mxu0 %v3681
    %4064 = vmatpush1.bf16.msra.mxu0 %v3680
    %4065 = vmatprep.subr.bf16.mxu0 %v3688
    %4066 = vmatpush1.bf16.msra.mxu0 %v3687
    %4067 = vmatprep.subr.bf16.mxu0 %v3695
    %4068 = vmatpush1.bf16.msra.mxu0 %v3694
    %4069 = vmatprep.mubr.bf16.mxu0 %v2846
    %4070 = vmatmul.mubr.bf16.gmra.mrb[0].mxu0 %v2845
    %v4071 = vpop.f32.mrb[0].mxu0
    %v4072 = vadd.f32 %v2853, %v4071
    %v4073 = vpop.f32.mrb[0].mxu0
    %v4074 = vadd.f32 %v2857, %v4073
    %v4075 = vpop.f32.mrb[0].mxu0
    %v4076 = vpop.f32.mrb[0].mxu0
    %4077 = vdwg.mxu0
    %4078 = vmatprep.subr.bf16.mxu0 %v3702
    %4079 = vmatpush1.bf16.msra.mxu0 %v3701
    %4080 = vmatprep.subr.bf16.mxu0 %v3709
    %4081 = vmatpush1.bf16.msra.mxu0 %v3708
    %4082 = vmatprep.subr.bf16.mxu0 %v3716
    %4083 = vmatpush1.bf16.msra.mxu0 %v3715
    %4084 = vmatprep.subr.bf16.mxu0 %v3723
    %4085 = vmatpush1.bf16.msra.mxu0 %v3722
    %4086 = vmatprep.subr.bf16.mxu0 %v3730
    %4087 = vmatpush1.bf16.msra.mxu0 %v3729
    %4088 = vmatprep.subr.bf16.mxu0 %v3737
    %4089 = vmatpush1.bf16.msra.mxu0 %v3736
    %4090 = vmatprep.subr.bf16.mxu0 %v3744
    %4091 = vmatpush1.bf16.msra.mxu0 %v3743
    %4092 = vmatprep.subr.bf16.mxu0 %v3751
    %4093 = vmatpush1.bf16.msra.mxu0 %v3750
    %4094 = vmatprep.subr.bf16.mxu0 %v3758
    %4095 = vmatpush1.bf16.msra.mxu0 %v3757
    %4096 = vmatprep.subr.bf16.mxu0 %v3765
    %4097 = vmatpush1.bf16.msra.mxu0 %v3764
    %4098 = vmatprep.subr.bf16.mxu0 %v3772
    %4099 = vmatpush1.bf16.msra.mxu0 %v3771
    %4100 = vmatprep.subr.bf16.mxu0 %v3779
    %4101 = vmatpush1.bf16.msra.mxu0 %v3778
    %4102 = vmatprep.subr.bf16.mxu0 %v3786
    %4103 = vmatpush1.bf16.msra.mxu0 %v3785
    %4104 = vmatprep.subr.bf16.mxu0 %v3793
    %4105 = vmatpush1.bf16.msra.mxu0 %v3792
    %4106 = vmatprep.subr.bf16.mxu0 %v3800
    %4107 = vmatpush1.bf16.msra.mxu0 %v3799
    %4108 = vmatprep.subr.bf16.mxu0 %v3807
    %4109 = vmatpush1.bf16.msra.mxu0 %v3806
    %4110 = vmatprep.mubr.bf16.mxu0 %v2848
    %4111 = vmatmul.mubr.bf16.gmra.mrb[0].mxu0 %v2847
    %v4112 = vpop.f32.mrb[0].mxu0
    %v4113 = vadd.f32 %v4072, %v4112
    %v4114 = vpop.f32.mrb[0].mxu0
    %v4115 = vadd.f32 %v4074, %v4114
    %v4116 = vpop.f32.mrb[0].mxu0
    %v4117 = vpop.f32.mrb[0].mxu0
    %4118 = vdwg.mxu0
    %4119 = vmatprep.subr.bf16.mxu0 %v3592
    %4120 = vmatpush1.bf16.msra.mxu0 %v3591
    %4121 = vmatprep.subr.bf16.mxu0 %v3599
    %4122 = vmatpush1.bf16.msra.mxu0 %v3598
    %4123 = vmatprep.subr.bf16.mxu0 %v3606
    %4124 = vmatpush1.bf16.msra.mxu0 %v3605
    %4125 = vmatprep.subr.bf16.mxu0 %v3613
    %4126 = vmatpush1.bf16.msra.mxu0 %v3612
    %4127 = vmatprep.subr.bf16.mxu0 %v3620
    %4128 = vmatpush1.bf16.msra.mxu0 %v3619
    %4129 = vmatprep.subr.bf16.mxu0 %v3627
    %4130 = vmatpush1.bf16.msra.mxu0 %v3626
    %4131 = vmatprep.subr.bf16.mxu0 %v3634
    %4132 = vmatpush1.bf16.msra.mxu0 %v3633
    %4133 = vmatprep.subr.bf16.mxu0 %v3641
    %4134 = vmatpush1.bf16.msra.mxu0 %v3640
    %4135 = vmatprep.subr.bf16.mxu0 %v3648
    %4136 = vmatpush1.bf16.msra.mxu0 %v3647
    %4137 = vmatprep.subr.bf16.mxu0 %v3655
    %4138 = vmatpush1.bf16.msra.mxu0 %v3654
    %4139 = vmatprep.subr.bf16.mxu0 %v3662
    %4140 = vmatpush1.bf16.msra.mxu0 %v3661
    %4141 = vmatprep.subr.bf16.mxu0 %v3669
    %4142 = vmatpush1.bf16.msra.mxu0 %v3668
    %4143 = vmatprep.subr.bf16.mxu0 %v3676
    %4144 = vmatpush1.bf16.msra.mxu0 %v3675
    %4145 = vmatprep.subr.bf16.mxu0 %v3683
    %4146 = vmatpush1.bf16.msra.mxu0 %v3682
    %4147 = vmatprep.subr.bf16.mxu0 %v3690
    %4148 = vmatpush1.bf16.msra.mxu0 %v3689
    %4149 = vmatprep.subr.bf16.mxu0 %v3697
    %4150 = vmatpush1.bf16.msra.mxu0 %v3696
    %4151 = vmatprep.mubr.bf16.mxu0 %v2846
    %4152 = vmatmul.mubr.bf16.gmra.mrb[0].mxu0 %v2845
    %v4153 = vpop.f32.mrb[0].mxu0
    %v4154 = vadd.f32 %v2861, %v4153
    %v4155 = vpop.f32.mrb[0].mxu0
    %v4156 = vadd.f32 %v2865, %v4155
    %v4157 = vpop.f32.mrb[0].mxu0
    %v4158 = vpop.f32.mrb[0].mxu0
    %4159 = vdwg.mxu0
    %4160 = vmatprep.subr.bf16.mxu0 %v3704
    %4161 = vmatpush1.bf16.msra.mxu0 %v3703
    %4162 = vmatprep.subr.bf16.mxu0 %v3711
    %4163 = vmatpush1.bf16.msra.mxu0 %v3710
    %4164 = vmatprep.subr.bf16.mxu0 %v3718
    %4165 = vmatpush1.bf16.msra.mxu0 %v3717
    %4166 = vmatprep.subr.bf16.mxu0 %v3725
    %4167 = vmatpush1.bf16.msra.mxu0 %v3724
    %4168 = vmatprep.subr.bf16.mxu0 %v3732
    %4169 = vmatpush1.bf16.msra.mxu0 %v3731
    %4170 = vmatprep.subr.bf16.mxu0 %v3739
    %4171 = vmatpush1.bf16.msra.mxu0 %v3738
    %4172 = vmatprep.subr.bf16.mxu0 %v3746
    %4173 = vmatpush1.bf16.msra.mxu0 %v3745
    %4174 = vmatprep.subr.bf16.mxu0 %v3753
    %4175 = vmatpush1.bf16.msra.mxu0 %v3752
    %4176 = vmatprep.subr.bf16.mxu0 %v3760
    %4177 = vmatpush1.bf16.msra.mxu0 %v3759
    %4178 = vmatprep.subr.bf16.mxu0 %v3767
    %4179 = vmatpush1.bf16.msra.mxu0 %v3766
    %4180 = vmatprep.subr.bf16.mxu0 %v3774
    %4181 = vmatpush1.bf16.msra.mxu0 %v3773
    %4182 = vmatprep.subr.bf16.mxu0 %v3781
    %4183 = vmatpush1.bf16.msra.mxu0 %v3780
    %4184 = vmatprep.subr.bf16.mxu0 %v3788
    %4185 = vmatpush1.bf16.msra.mxu0 %v3787
    %4186 = vmatprep.subr.bf16.mxu0 %v3795
    %4187 = vmatpush1.bf16.msra.mxu0 %v3794
    %4188 = vmatprep.subr.bf16.mxu0 %v3802
    %4189 = vmatpush1.bf16.msra.mxu0 %v3801
    %4190 = vmatprep.subr.bf16.mxu0 %v3809
    %4191 = vmatpush1.bf16.msra.mxu0 %v3808
    %4192 = vmatprep.mubr.bf16.mxu0 %v2848
    %4193 = vmatmul.mubr.bf16.gmra.mrb[0].mxu0 %v2847
    %v4194 = vpop.f32.mrb[0].mxu0
    %v4195 = vadd.f32 %v4154, %v4194
    %v4196 = vpop.f32.mrb[0].mxu0
    %v4197 = vadd.f32 %v4156, %v4196
    %v4198 = vpop.f32.mrb[0].mxu0
    %v4199 = vpop.f32.mrb[0].mxu0
    %4200 = vdwg.mxu0
    %4201 = vmatprep.subr.bf16.mxu0 %v3594
    %4202 = vmatpush1.bf16.msra.mxu0 %v3593
    %4203 = vmatprep.subr.bf16.mxu0 %v3601
    %4204 = vmatpush1.bf16.msra.mxu0 %v3600
    %4205 = vmatprep.subr.bf16.mxu0 %v3608
    %4206 = vmatpush1.bf16.msra.mxu0 %v3607
    %4207 = vmatprep.subr.bf16.mxu0 %v3615
    %4208 = vmatpush1.bf16.msra.mxu0 %v3614
    %4209 = vmatprep.subr.bf16.mxu0 %v3622
    %4210 = vmatpush1.bf16.msra.mxu0 %v3621
    %4211 = vmatprep.subr.bf16.mxu0 %v3629
    %4212 = vmatpush1.bf16.msra.mxu0 %v3628
    %4213 = vmatprep.subr.bf16.mxu0 %v3636
    %4214 = vmatpush1.bf16.msra.mxu0 %v3635
    %4215 = vmatprep.subr.bf16.mxu0 %v3643
    %4216 = vmatpush1.bf16.msra.mxu0 %v3642
    %4217 = vmatprep.subr.bf16.mxu0 %v3650
    %4218 = vmatpush1.bf16.msra.mxu0 %v3649
    %4219 = vmatprep.subr.bf16.mxu0 %v3657
    %4220 = vmatpush1.bf16.msra.mxu0 %v3656
    %4221 = vmatprep.subr.bf16.mxu0 %v3664
    %4222 = vmatpush1.bf16.msra.mxu0 %v3663
    %4223 = vmatprep.subr.bf16.mxu0 %v3671
    %4224 = vmatpush1.bf16.msra.mxu0 %v3670
    %4225 = vmatprep.subr.bf16.mxu0 %v3678
    %4226 = vmatpush1.bf16.msra.mxu0 %v3677
    %4227 = vmatprep.subr.bf16.mxu0 %v3685
    %4228 = vmatpush1.bf16.msra.mxu0 %v3684
    %4229 = vmatprep.subr.bf16.mxu0 %v3692
    %4230 = vmatpush1.bf16.msra.mxu0 %v3691
    %4231 = vmatprep.subr.bf16.mxu0 %v3699
    %4232 = vmatpush1.bf16.msra.mxu0 %v3698
    %4233 = vmatprep.mubr.bf16.mxu0 %v2846
    %4234 = vmatmul.mubr.bf16.gmra.mrb[0].mxu0 %v2845
    %v4235 = vpop.f32.mrb[0].mxu0
    %v4236 = vadd.f32 %v2869, %v4235
    %v4237 = vpop.f32.mrb[0].mxu0
    %v4238 = vadd.f32 %v2873, %v4237
    %v4239 = vpop.f32.mrb[0].mxu0
    %v4240 = vpop.f32.mrb[0].mxu0
    %4241 = vdwg.mxu0
    %4242 = vmatprep.subr.bf16.mxu0 %v3706
    %4243 = vmatpush1.bf16.msra.mxu0 %v3705
    %4244 = vmatprep.subr.bf16.mxu0 %v3713
    %4245 = vmatpush1.bf16.msra.mxu0 %v3712
    %4246 = vmatprep.subr.bf16.mxu0 %v3720
    %4247 = vmatpush1.bf16.msra.mxu0 %v3719
    %4248 = vmatprep.subr.bf16.mxu0 %v3727
    %4249 = vmatpush1.bf16.msra.mxu0 %v3726
    %4250 = vmatprep.subr.bf16.mxu0 %v3734
    %4251 = vmatpush1.bf16.msra.mxu0 %v3733
    %4252 = vmatprep.subr.bf16.mxu0 %v3741
    %4253 = vmatpush1.bf16.msra.mxu0 %v3740
    %4254 = vmatprep.subr.bf16.mxu0 %v3748
    %4255 = vmatpush1.bf16.msra.mxu0 %v3747
    %4256 = vmatprep.subr.bf16.mxu0 %v3755
    %4257 = vmatpush1.bf16.msra.mxu0 %v3754
    %4258 = vmatprep.subr.bf16.mxu0 %v3762
    %4259 = vmatpush1.bf16.msra.mxu0 %v3761
    %4260 = vmatprep.subr.bf16.mxu0 %v3769
    %4261 = vmatpush1.bf16.msra.mxu0 %v3768
    %4262 = vmatprep.subr.bf16.mxu0 %v3776
    %4263 = vmatpush1.bf16.msra.mxu0 %v3775
    %4264 = vmatprep.subr.bf16.mxu0 %v3783
    %4265 = vmatpush1.bf16.msra.mxu0 %v3782
    %4266 = vmatprep.subr.bf16.mxu0 %v3790
    %4267 = vmatpush1.bf16.msra.mxu0 %v3789
    %4268 = vmatprep.subr.bf16.mxu0 %v3797
    %4269 = vmatpush1.bf16.msra.mxu0 %v3796
    %4270 = vmatprep.subr.bf16.mxu0 %v3804
    %4271 = vmatpush1.bf16.msra.mxu0 %v3803
    %4272 = vmatprep.subr.bf16.mxu0 %v3811
    %4273 = vmatpush1.bf16.msra.mxu0 %v3810
    %4274 = vmatprep.mubr.bf16.mxu0 %v2848
    %4275 = vmatmul.mubr.bf16.gmra.mrb[0].mxu0 %v2847
    %v4276 = vpop.f32.mrb[0].mxu0
    %v4277 = vadd.f32 %v4236, %v4276
    %v4278 = vpop.f32.mrb[0].mxu0
    %v4279 = vadd.f32 %v4238, %v4278
    %v4280 = vpop.f32.mrb[0].mxu0
    %v4281 = vpop.f32.mrb[0].mxu0
    %4282 = vdwg.mxu0
    %4283 = vmatprep.subr.bf16.mxu0 0
    %4284 = vmatpush1.bf16.msra.mxu0 %v3595
    %4285 = vmatprep.subr.bf16.mxu0 0
    %4286 = vmatpush1.bf16.msra.mxu0 %v3602
    %4287 = vmatprep.subr.bf16.mxu0 0
    %4288 = vmatpush1.bf16.msra.mxu0 %v3609
    %4289 = vmatprep.subr.bf16.mxu0 0
    %4290 = vmatpush1.bf16.msra.mxu0 %v3616
    %4291 = vmatprep.subr.bf16.mxu0 0
    %4292 = vmatpush1.bf16.msra.mxu0 %v3623
    %4293 = vmatprep.subr.bf16.mxu0 0
    %4294 = vmatpush1.bf16.msra.mxu0 %v3630
    %4295 = vmatprep.subr.bf16.mxu0 0
    %4296 = vmatpush1.bf16.msra.mxu0 %v3637
    %4297 = vmatprep.subr.bf16.mxu0 0
    %4298 = vmatpush1.bf16.msra.mxu0 %v3644
    %4299 = vmatprep.subr.bf16.mxu0 0
    %4300 = vmatpush1.bf16.msra.mxu0 %v3651
    %4301 = vmatprep.subr.bf16.mxu0 0
    %4302 = vmatpush1.bf16.msra.mxu0 %v3658
    %4303 = vmatprep.subr.bf16.mxu0 0
    %4304 = vmatpush1.bf16.msra.mxu0 %v3665
    %4305 = vmatprep.subr.bf16.mxu0 0
    %4306 = vmatpush1.bf16.msra.mxu0 %v3672
    %4307 = vmatprep.subr.bf16.mxu0 0
    %4308 = vmatpush1.bf16.msra.mxu0 %v3679
    %4309 = vmatprep.subr.bf16.mxu0 0
    %4310 = vmatpush1.bf16.msra.mxu0 %v3686
    %4311 = vmatprep.subr.bf16.mxu0 0
    %4312 = vmatpush1.bf16.msra.mxu0 %v3693
    %4313 = vmatprep.subr.bf16.mxu0 0
    %4314 = vmatpush1.bf16.msra.mxu0 %v3700
    %4315 = vmatprep.mubr.bf16.mxu0 %v2846
    %4316 = vmatmul.mubr.bf16.gmra.mrb[0].mxu0 %v2845
    %v4317 = vpop.f32.mrb[0].mxu0
    %v4318 = vadd.f32 %v2877, %v4317
    %v4319 = vpop.f32.mrb[0].mxu0
    %v4320 = vpop.f32.mrb[0].mxu0
    %v4321 = vpop.f32.mrb[0].mxu0
    %4322 = vdwg.mxu0
    %4323 = vmatprep.subr.bf16.mxu0 0
    %4324 = vmatpush1.bf16.msra.mxu0 %v3707
    %4325 = vmatprep.subr.bf16.mxu0 0
    %4326 = vmatpush1.bf16.msra.mxu0 %v3714
    %4327 = vmatprep.subr.bf16.mxu0 0
    %4328 = vmatpush1.bf16.msra.mxu0 %v3721
    %4329 = vmatprep.subr.bf16.mxu0 0
    %4330 = vmatpush1.bf16.msra.mxu0 %v3728
    %4331 = vmatprep.subr.bf16.mxu0 0
    %4332 = vmatpush1.bf16.msra.mxu0 %v3735
    %4333 = vmatprep.subr.bf16.mxu0 0
    %4334 = vmatpush1.bf16.msra.mxu0 %v3742
    %4335 = vmatprep.subr.bf16.mxu0 0
    %4336 = vmatpush1.bf16.msra.mxu0 %v3749
    %4337 = vmatprep.subr.bf16.mxu0 0
    %4338 = vmatpush1.bf16.msra.mxu0 %v3756
    %4339 = vmatprep.subr.bf16.mxu0 0
    %4340 = vmatpush1.bf16.msra.mxu0 %v3763
    %4341 = vmatprep.subr.bf16.mxu0 0
    %4342 = vmatpush1.bf16.msra.mxu0 %v3770
    %4343 = vmatprep.subr.bf16.mxu0 0
    %4344 = vmatpush1.bf16.msra.mxu0 %v3777
    %4345 = vmatprep.subr.bf16.mxu0 0
    %4346 = vmatpush1.bf16.msra.mxu0 %v3784
    %4347 = vmatprep.subr.bf16.mxu0 0
    %4348 = vmatpush1.bf16.msra.mxu0 %v3791
    %4349 = vmatprep.subr.bf16.mxu0 0
    %4350 = vmatpush1.bf16.msra.mxu0 %v3798
    %4351 = vmatprep.subr.bf16.mxu0 0
    %4352 = vmatpush1.bf16.msra.mxu0 %v3805
    %4353 = vmatprep.subr.bf16.mxu0 0
    %4354 = vmatpush1.bf16.msra.mxu0 %v3812
    %4355 = vmatprep.mubr.bf16.mxu0 %v2848
    %4356 = vmatmul.mubr.bf16.gmra.mrb[0].mxu0 %v2847
    %v4357 = vpop.f32.mrb[0].mxu0
    %v4358 = vadd.f32 %v4318, %v4357
    %v4359 = vpop.f32.mrb[0].mxu0
    %v4360 = vpop.f32.mrb[0].mxu0
    %v4361 = vpop.f32.mrb[0].mxu0
    %4362 = vdwg.mxu0
    %v4363 = vsub.f32 0.0, %v4113
    %v4364 = vsub.f32 0.0, %v4115
    %v4365 = vsub.f32 0.0, %v4195
    %v4366 = vsub.f32 0.0, %v4197
    %v4367 = vsub.f32 0.0, %v4277
    %v4368 = vsub.f32 0.0, %v4279
    %v4369 = vsub.f32 0.0, %v4358
    %v4370 = vmul.f32 %v4363, 1.442695
    %v4371 = vpow.pop %v4370
    %v4372 = vmul.f32 %v4364, 1.442695
    %v4373 = vpow.pop %v4372
    %v4374 = vmul.f32 %v4365, 1.442695
    %v4375 = vpow.pop %v4374
    %v4376 = vmul.f32 %v4366, 1.442695
    %v4377 = vpow.pop %v4376
    %v4378 = vmul.f32 %v4367, 1.442695
    %v4379 = vpow.pop %v4378
    %v4380 = vmul.f32 %v4368, 1.442695
    %v4381 = vpow.pop %v4380
    %v4382 = vmul.f32 %v4369, 1.442695
    %v4383 = vpow.pop %v4382
    %v4384 = vadd.f32 %v4371, 1.0
    %v4385 = vadd.f32 %v4373, 1.0
    %v4386 = vadd.f32 %v4375, 1.0
    %v4387 = vadd.f32 %v4377, 1.0
    %v4388 = vadd.f32 %v4379, 1.0
    %v4389 = vadd.f32 %v4381, 1.0
    %v4390 = vadd.f32 %v4383, 1.0
    %v4391 = vrcp.pop %v4384
    %v4392 = vrcp.pop %v4385
    %v4393 = vrcp.pop %v4386
    %v4394 = vrcp.pop %v4387
    %v4395 = vrcp.pop %v4388
    %v4396 = vrcp.pop %v4389
    %v4397 = vrcp.pop %v4390
    %4398 = vst [vmem:[#allocation2] sm:$0xff] %v4391
    %4399 = vst [vmem:[#allocation2 + $0x8] sm:$0xff] %v4392
    %4400 = vst [vmem:[#allocation2 + $0x10] sm:$0xff] %v4393
    %4401 = vst [vmem:[#allocation2 + $0x18] sm:$0xff] %v4394
    %4402 = vst [vmem:[#allocation2 + $0x20] sm:$0xff] %v4395
    %4403 = vst [vmem:[#allocation2 + $0x28] sm:$0xff] %v4396
    %4404 = vst.msk [vmem:[#allocation2 + $0x30] sm:$0xff] %vm1264, %v4397
    // Predicated region
    $region62: #{ae_forward.1} parent=1 // pred_check
      _
    $region63: #{ae_forward.1} parent=1 // pred_check_branch
      %4406 = sbr.rel (0) target = $region65
    $region64: #{ae_forward.1} parent=1 // pred_region
      %s4408 = ssub.s32 896, 896
      %4409 = vsyncadd [#allocation3], %s4408
      %s4411 = sshll.u32 [#allocation2], 4
      %s4412 = int_to_ptr.vmem [resolvable:$true] %s4411
      %4414 = dma.vmem_to_hbm [thread:$0]  %s4412, 896, %s15, [#allocation3]
    $region65: #{ae_forward.1} parent=1 // pred_fallthru
      _
    // Predicated region
    $region66: #{ae_forward.1} parent=1 // pred_check
      _
    $region67: #{ae_forward.1} parent=1 // pred_check_branch
      %4416 = sbr.rel (0) target = $region69
    $region68: #{ae_forward.1} parent=1 // pred_region
      %4417 = dma.done [#allocation3], 896
    $region69: #{ae_forward.1} parent=1 // pred_fallthru
      _
    %4418 = vsyncpa [#allocation3], 1

</llo_original>
